<compile_context>
chip_gen: v5e
topology: v5e:2x2
jax: 0.10.0
libtpu: 0.0.40
codegen_flags: <defaults>
</compile_context>

<pallas_src>
import jax
import jax.numpy as jnp
from jax import lax
from jax.experimental import pallas as pl
from jax.experimental.pallas import tpu as pltpu


# ---------------------------------------------------------------------------
# Single fused kernel: conv1 -> pad -> conv2(full-res) -> flatten -> fc -> heads
# Activation layout inside the kernel: [TB, row, W*C] (lane-dense minor dim).
# ---------------------------------------------------------------------------
def _fused_forward_kernel(x_ref, w1_ref, b1_ref, w2_ref, b2_ref,
                          wfc_ref, bfc_ref, wh_ref, bh_ref, o_ref):
    TB, Hp, WpC = x_ref.shape            # x: [TB, H+2, (W+2)*C]  bf16 (pre-padded)
    H = Hp - 2
    WC1 = w1_ref.shape[2]                # W * C1
    WpC1 = w2_ref.shape[1]               # (W+2) * C1
    WC2 = w2_ref.shape[2]                # W * C2
    C1 = (WpC1 - WC1) // 2               # one padded pixel (= C1 lanes) per side

    x = x_ref[...]                                            # bf16

    # ---- conv1: 3 row-banded bf16 matmuls (kw taps folded into the weight) --
    acc1 = jnp.zeros((TB * H, WC1), jnp.float32)
    for kh in range(3):
        win = x[:, kh:kh + H, :].reshape(TB * H, WpC)         # bf16, contiguous slice
        acc1 = acc1 + jnp.dot(win, w1_ref[kh],
                              preferred_element_type=jnp.float32)
    a1 = jnp.maximum(acc1 + b1_ref[...], 0.0).astype(jnp.bfloat16)
    a1 = a1.reshape(TB, H, WC1)

    # ---- spatial zero-pad (pad=1) entirely in VMEM, lane-dense layout -------
    zc = jnp.zeros((TB, H, C1), jnp.bfloat16)
    a1p = jnp.concatenate([zc, a1, zc], axis=2)               # [TB, H, (W+2)*C1]
    zr = jnp.zeros((TB, 1, WpC1), jnp.bfloat16)
    a1p = jnp.concatenate([zr, a1p, zr], axis=1)              # [TB, H+2, (W+2)*C1]

    # ---- conv2 at stride 1 (stride-2 subsampling folded into wfc / flatten) -
    acc2 = jnp.zeros((TB * H, WC2), jnp.float32)
    for kh in range(3):
        win = a1p[:, kh:kh + H, :].reshape(TB * H, WpC1)
        acc2 = acc2 + jnp.dot(win, w2_ref[kh],
                              preferred_element_type=jnp.float32)
    a2 = jnp.maximum(acc2 + b2_ref[...], 0.0).astype(jnp.bfloat16)
    a2 = a2.reshape(TB, H, WC2)

    # ---- flatten the stride-2 rows: lane-concat of 128-aligned pieces -------
    feat = jnp.concatenate([a2[:, r, :] for r in range(0, H, 2)], axis=-1)

    # ---- fused FC (+ReLU) and concatenated (policy || value) heads ----------
    h = jnp.dot(feat, wfc_ref[...], preferred_element_type=jnp.float32)
    h = jnp.maximum(h + bfc_ref[...], 0.0)                    # f32 hidden
    out = jnp.dot(h, wh_ref[...],                             # f32 head matmul
                  preferred_element_type=jnp.float32) + bh_ref[...]
    o_ref[...] = out.reshape(TB, 1, -1).astype(o_ref.dtype)


# ---------------------------------------------------------------------------
# pallas_call wrapper (batch-tiled, "parallel" grid axis)
# ---------------------------------------------------------------------------
def actor_critic_forward_pallas(prep, xp2):
    """xp2: [B, H+2, (W+2)*C] bf16 (pre-padded, NHWC folded to lane-dense 2D)."""
    B, Hp, WpC = xp2.shape
    H = Hp - 2
    w1b, b1t = prep["w1b"], prep["b1t"]
    w2b, b2t = prep["w2b"], prep["b2t"]
    wfc, bfc = prep["wfc"], prep["bfc"]
    wh, bh = prep["wh"], prep["bh"]
    NP = wh.shape[1]
    WC1, WpC1, WC2 = w1b.shape[2], w2b.shape[1], w2b.shape[2]
    hidden = wfc.shape[1]

    # grid >= 2 for small B so both TensorCores are used on v7x; bigger tiles
    # for large B to amortize the ~0.35us per-step overhead on v5e/v6e.
    TB = 1 if B <= 8 else 8
    grid = (pl.cdiv(B, TB),)

    flops = int(B) * (2 * H * WpC * WC1 * 3 + 2 * H * WpC1 * WC2 * 3
                      + 2 * wfc.shape[0] * hidden + 2 * hidden * NP)
    bytes_accessed = int(
        xp2.size * 2 + w1b.size * 2 + w2b.size * 2 + wfc.size * 2
        + (b1t.size + b2t.size + bfc.size + wh.size + bh.size) * 4
        + B * NP * 4)

    out = pl.pallas_call(
        _fused_forward_kernel,
        out_shape=jax.ShapeDtypeStruct((B, 1, NP), jnp.float32),
        grid=grid,
        in_specs=[
            pl.BlockSpec((TB, Hp, WpC), lambda i: (i, 0, 0)),
            pl.BlockSpec(w1b.shape, lambda i: (0, 0, 0)),
            pl.BlockSpec(b1t.shape, lambda i: (0, 0)),
            pl.BlockSpec(w2b.shape, lambda i: (0, 0, 0)),
            pl.BlockSpec(b2t.shape, lambda i: (0, 0)),
            pl.BlockSpec(wfc.shape, lambda i: (0, 0)),
            pl.BlockSpec(bfc.shape, lambda i: (0, 0)),
            pl.BlockSpec(wh.shape, lambda i: (0, 0)),
            pl.BlockSpec(bh.shape, lambda i: (0, 0)),
        ],
        out_specs=pl.BlockSpec((TB, 1, NP), lambda i: (i, 0, 0)),
        compiler_params=pltpu.CompilerParams(
            dimension_semantics=("parallel",),
            vmem_limit_bytes=32 * 1024 * 1024),
        cost_estimate=pl.CostEstimate(flops=flops, transcendentals=0,
                                      bytes_accessed=bytes_accessed),
    )(xp2, w1b, b1t, w2b, b2t, wfc, bfc, wh, bh)
    return out.reshape(B, NP)


# ---------------------------------------------------------------------------
# Deterministic parameter init (PyTorch layout; mirrors ActorCriticCNNModel)
# ---------------------------------------------------------------------------
def init_params(obs_channels, H, W, num_outputs, hidden=64):
    key = jax.random.PRNGKey(0)
    ks = jax.random.split(key, 12)

    def glorot(k, shape, fan_in):
        return jax.random.normal(k, shape, jnp.float32) / jnp.sqrt(fan_in)

    c1, c2 = 16, 32
    params = {}
    params["conv1_w"] = glorot(ks[0], (c1, obs_channels, 3, 3), obs_channels * 9)
    params["conv1_b"] = 0.1 * jax.random.normal(ks[1], (c1,), jnp.float32)
    params["conv2_w"] = glorot(ks[2], (c2, c1, 3, 3), c1 * 9)
    params["conv2_b"] = 0.1 * jax.random.normal(ks[3], (c2,), jnp.float32)

    Ho1, Wo1 = H, W                               # conv1: stride 1, pad 1
    Ho2, Wo2 = (Ho1 + 1) // 2, (Wo1 + 1) // 2     # conv2: stride 2, pad 1
    flat = c2 * Ho2 * Wo2

    params["fc_w"] = glorot(ks[4], (flat, hidden), flat)
    params["fc_b"] = 0.1 * jax.random.normal(ks[5], (hidden,), jnp.float32)
    params["pi_w"] = glorot(ks[6], (hidden, num_outputs), hidden)
    params["pi_b"] = 0.1 * jax.random.normal(ks[7], (num_outputs,), jnp.float32)
    params["v_w"] = glorot(ks[8], (hidden, 1), hidden)
    params["v_b"] = 0.1 * jax.random.normal(ks[9], (1,), jnp.float32)
    return params


# ---------------------------------------------------------------------------
# One-time weight prep: fold conv kw taps into row-banded matmul weights, fold
# the stride-2 subsample + NCHW flatten order into the fc weight, concatenate
# + lane-pad the heads, and cast the MXU operands to bf16.
# ---------------------------------------------------------------------------
def _banded_conv_weight(w, Wdim):
    """w: [Cout, Cin, 3, 3] (OIHW).  Returns [3, (Wdim+2)*Cin, Wdim*Cout] where
    band[kh, wi*Cin+ci, wo*Cout+co] = w[co, ci, kh, wi-wo] if 0<=wi-wo<=2 else 0."""
    Cout, Cin, KH, KW = w.shape
    Wp = Wdim + 2
    wt = jnp.transpose(w, (2, 3, 1, 0))              # [kh, kw, ci, co]
    band = jnp.zeros((KH, Wp, Cin, Wdim, Cout), jnp.float32)
    wo_idx = jnp.arange(Wdim)
    for kw in range(KW):
        # band[kh, wo+kw, ci, wo, co] = wt[kh, kw, ci, co]   (no collisions)
        band = band.at[:, wo_idx + kw, :, wo_idx, :].set(wt[:, kw, :, :])
    return band.reshape(KH, Wp * Cin, Wdim * Cout)


def _prep_fc_weight(fc_w, H2, W2, C2, W):
    """fc_w rows are PyTorch NCHW-flatten of the stride-2 conv2 output.  Remap
    them onto our full-resolution even-row flatten (row index = h2*(W*C2) +
    c*C2 + co) with zero rows for the odd (discarded) columns."""
    hidden = fc_w.shape[1]
    wfc4 = fc_w.reshape(C2, H2, W2, hidden)                    # [co, h2, w2s, j]
    big = jnp.zeros((H2, W, C2, hidden), jnp.float32)          # [h2, c, co, j]
    big = big.at[:, 0::2, :, :].set(jnp.transpose(wfc4, (1, 2, 0, 3)))
    return big.reshape(H2 * W * C2, hidden)


def prepare_params(p, H, W):
    assert H % 2 == 0 and W % 2 == 0
    C1 = p["conv1_w"].shape[0]
    C2 = p["conv2_w"].shape[0]
    H2, W2 = (H + 1) // 2, (W + 1) // 2
    hidden = p["fc_w"].shape[1]
    num_outputs = p["pi_w"].shape[1]

    w1b = _banded_conv_weight(p["conv1_w"], W).astype(jnp.bfloat16)
    w2b = _banded_conv_weight(p["conv2_w"], W).astype(jnp.bfloat16)
    b1t = jnp.tile(p["conv1_b"], W).reshape(1, W * C1).astype(jnp.float32)
    b2t = jnp.tile(p["conv2_b"], W).reshape(1, W * C2).astype(jnp.float32)

    wfc = _prep_fc_weight(p["fc_w"], H2, W2, C2, W).astype(jnp.bfloat16)
    bfc = p["fc_b"].reshape(1, hidden).astype(jnp.float32)

    NP = 128   # lane-dense head output (policy || value || zero pad)
    wh = jnp.zeros((hidden, NP), jnp.float32)
    wh = wh.at[:, :num_outputs].set(p["pi_w"].astype(jnp.float32))
    wh = wh.at[:, num_outputs:num_outputs + 1].set(p["v_w"].astype(jnp.float32))
    bh = jnp.zeros((1, NP), jnp.float32)
    bh = bh.at[0, :num_outputs].set(p["pi_b"].astype(jnp.float32))
    bh = bh.at[0, num_outputs].set(p["v_b"][0].astype(jnp.float32))

    return {"w1b": w1b, "b1t": b1t, "w2b": w2b, "b2t": b2t,
            "wfc": wfc, "bfc": bfc, "wh": wh, "bh": bh}


# ---------------------------------------------------------------------------
# Forward pass (semantics of CustomTorchModelV2.forward / value_function)
# ---------------------------------------------------------------------------
def custom_model_forward(params, obs, state, num_outputs):
    """obs: [B, C, H, W].  Returns (logits, state, value); value is what the
    RLlib wrapper stashes for value_function()."""
    x = obs.astype(jnp.float32)                          # input_dict['obs'].float()
    x = jnp.transpose(x, (0, 2, 3, 1))                   # NCHW -> NHWC (tiny input)
    x = jnp.pad(x, ((0, 0), (1, 1), (1, 1), (0, 0)))     # conv1 pad=1 (input only)
    B, Hp, Wp, C = x.shape
    xp2 = x.reshape(B, Hp, Wp * C).astype(jnp.bfloat16)  # lane-dense [row, Wp*C]

    out = actor_critic_forward_pallas(params, xp2)       # single fused kernel
    logits = out[:, :num_outputs]
    value = out[:, num_outputs:num_outputs + 1]          # [B, 1]
    return logits, state, value


def value_function(value_out):
    # mirrors self._value_out.squeeze(1)
    return jnp.squeeze(value_out, axis=1)


# ---------------------------------------------------------------------------
# Pure-JAX (f32) reference for a loose numerical check (kernel uses bf16 acts)
# ---------------------------------------------------------------------------
def _reference_forward(p, obs):
    x = obs.astype(jnp.float32)

    def conv(x, w, b, stride):
        y = lax.conv_general_dilated(
            x, w, window_strides=(stride, stride), padding=[(1, 1), (1, 1)],
            dimension_numbers=("NCHW", "OIHW", "NCHW"))
        return jax.nn.relu(y + b.reshape(1, -1, 1, 1))

    y = conv(x, p["conv1_w"], p["conv1_b"], 1)
    y = conv(y, p["conv2_w"], p["conv2_b"], 2)
    f = y.reshape(y.shape[0], -1)                        # NCHW flatten
    h = jax.nn.relu(f @ p["fc_w"] + p["fc_b"])
    logits = h @ p["pi_w"] + p["pi_b"]
    value = h @ p["v_w"] + p["v_b"]
    return logits, value


# ---------------------------------------------------------------------------
if __name__ == "__main__":
    B, C, H, W = 2, 4, 16, 16
    num_outputs = 6

    key = jax.random.PRNGKey(0)
    obs = jax.random.uniform(key, (B, C, H, W), jnp.float32)

    torch_params = init_params(C, H, W, num_outputs)
    params = prepare_params(torch_params, H, W)
    state = []   # RLlib passes the recurrent state through untouched

    fwd = jax.jit(custom_model_forward, static_argnums=(3,))
    logits, state_out, value = fwd(params, obs, state, num_outputs)
    logits = jax.block_until_ready(logits)
    value = jax.block_until_ready(value)
    vf = jax.block_until_ready(value_function(value))

    assert logits.shape == (B, num_outputs), logits.shape
    assert value.shape == (B, 1), value.shape
    assert vf.shape == (B,), vf.shape
    assert state_out == state

    # loose tolerance: kernel path stores activations / conv+fc weights in bf16
    ref_logits, ref_value = _reference_forward(torch_params, obs)
    lerr = float(jnp.max(jnp.abs(logits - ref_logits)))
    verr = float(jnp.max(jnp.abs(value - ref_value)))
    assert lerr < 5e-2, lerr
    assert verr < 5e-2, verr

    print("KERNEL_OK")
</pallas_src>

<mosaic_0001>
module attributes {stable_mosaic.version = 11 : i64} {
  func.func @_fused_forward_kernel(%arg0: i32, %arg1: memref<1x18x72xbf16, #tpu.memory_space<vmem>>, %arg2: memref<3x72x256xbf16, #tpu.memory_space<vmem>>, %arg3: memref<1x256xf32, #tpu.memory_space<vmem>>, %arg4: memref<3x288x512xbf16, #tpu.memory_space<vmem>>, %arg5: memref<1x512xf32, #tpu.memory_space<vmem>>, %arg6: memref<4096x64xbf16, #tpu.memory_space<vmem>>, %arg7: memref<1x64xf32, #tpu.memory_space<vmem>>, %arg8: memref<64x128xf32, #tpu.memory_space<vmem>>, %arg9: memref<1x128xf32, #tpu.memory_space<vmem>>, %arg10: memref<1x1x128xf32, #tpu.memory_space<vmem>>) attributes {dimension_semantics = [#tpu.dimension_semantics<parallel>], iteration_bounds = array<i64: 2>, scalar_prefetch = 0 : i64, scratch_operands = 0 : i64, tpu.core_type = #tpu.core_type<tc>, window_params = [{transform_indices = @transform_0, window_bounds = array<i64: 1, 18, 72>}, {pipeline_mode = #tpu.pipeline_mode<synchronous>, transform_indices = @transform_1, window_bounds = array<i64: 3, 72, 256>}, {pipeline_mode = #tpu.pipeline_mode<synchronous>, transform_indices = @transform_2, window_bounds = array<i64: 1, 256>}, {pipeline_mode = #tpu.pipeline_mode<synchronous>, transform_indices = @transform_3, window_bounds = array<i64: 3, 288, 512>}, {pipeline_mode = #tpu.pipeline_mode<synchronous>, transform_indices = @transform_4, window_bounds = array<i64: 1, 512>}, {pipeline_mode = #tpu.pipeline_mode<synchronous>, transform_indices = @transform_5, window_bounds = array<i64: 4096, 64>}, {pipeline_mode = #tpu.pipeline_mode<synchronous>, transform_indices = @transform_6, window_bounds = array<i64: 1, 64>}, {pipeline_mode = #tpu.pipeline_mode<synchronous>, transform_indices = @transform_7, window_bounds = array<i64: 64, 128>}, {pipeline_mode = #tpu.pipeline_mode<synchronous>, transform_indices = @transform_8, window_bounds = array<i64: 1, 128>}, {transform_indices = @transform_9, window_bounds = array<i64: 1, 1, 128>}]} {
    %c0 = arith.constant 0 : index
    %c0_0 = arith.constant 0 : index
    %c0_1 = arith.constant 0 : index
    %0 = vector.load %arg1[%c0, %c0_0, %c0_1] : memref<1x18x72xbf16, #tpu.memory_space<vmem>>, vector<1x18x72xbf16>
    %cst = arith.constant 0.000000e+00 : f32
    %1 = vector.broadcast %cst : f32 to vector<16x256xf32>
    %2 = vector.extract_strided_slice %0 {offsets = [0, 0, 0], sizes = [1, 16, 72], strides = [1, 1, 1]} : vector<1x18x72xbf16> to vector<1x16x72xbf16>
    %3 = vector.shape_cast %2 : vector<1x16x72xbf16> to vector<16x72xbf16>
    %c0_2 = arith.constant 0 : index
    %c0_3 = arith.constant 0 : index
    %c0_4 = arith.constant 0 : index
    %4 = vector.load %arg2[%c0_2, %c0_3, %c0_4] : memref<3x72x256xbf16, #tpu.memory_space<vmem>>, vector<1x72x256xbf16>
    %5 = vector.shape_cast %4 : vector<1x72x256xbf16> to vector<72x256xbf16>
    %cst_5 = arith.constant dense<0.000000e+00> : vector<16x256xf32>
    %6 = tpu.matmul %3, %5, %cst_5 {dimension_numbers = #tpu.dot_dimension_numbers<[1], [0], [0], [1], [0, 0, 1, 1], [], []>} : vector<16x72xbf16>, vector<72x256xbf16>, vector<16x256xf32> -> vector<16x256xf32>
    %7 = arith.addf %1, %6 : vector<16x256xf32>
    %8 = vector.extract_strided_slice %0 {offsets = [0, 1, 0], sizes = [1, 16, 72], strides = [1, 1, 1]} : vector<1x18x72xbf16> to vector<1x16x72xbf16>
    %9 = vector.shape_cast %8 : vector<1x16x72xbf16> to vector<16x72xbf16>
    %c1 = arith.constant 1 : index
    %c0_6 = arith.constant 0 : index
    %c0_7 = arith.constant 0 : index
    %10 = vector.load %arg2[%c1, %c0_6, %c0_7] : memref<3x72x256xbf16, #tpu.memory_space<vmem>>, vector<1x72x256xbf16>
    %11 = vector.shape_cast %10 : vector<1x72x256xbf16> to vector<72x256xbf16>
    %cst_8 = arith.constant dense<0.000000e+00> : vector<16x256xf32>
    %12 = tpu.matmul %9, %11, %cst_8 {dimension_numbers = #tpu.dot_dimension_numbers<[1], [0], [0], [1], [0, 0, 1, 1], [], []>} : vector<16x72xbf16>, vector<72x256xbf16>, vector<16x256xf32> -> vector<16x256xf32>
    %13 = arith.addf %7, %12 : vector<16x256xf32>
    %14 = vector.extract_strided_slice %0 {offsets = [0, 2, 0], sizes = [1, 16, 72], strides = [1, 1, 1]} : vector<1x18x72xbf16> to vector<1x16x72xbf16>
    %15 = vector.shape_cast %14 : vector<1x16x72xbf16> to vector<16x72xbf16>
    %c2 = arith.constant 2 : index
    %c0_9 = arith.constant 0 : index
    %c0_10 = arith.constant 0 : index
    %16 = vector.load %arg2[%c2, %c0_9, %c0_10] : memref<3x72x256xbf16, #tpu.memory_space<vmem>>, vector<1x72x256xbf16>
    %17 = vector.shape_cast %16 : vector<1x72x256xbf16> to vector<72x256xbf16>
    %cst_11 = arith.constant dense<0.000000e+00> : vector<16x256xf32>
    %18 = tpu.matmul %15, %17, %cst_11 {dimension_numbers = #tpu.dot_dimension_numbers<[1], [0], [0], [1], [0, 0, 1, 1], [], []>} : vector<16x72xbf16>, vector<72x256xbf16>, vector<16x256xf32> -> vector<16x256xf32>
    %19 = arith.addf %13, %18 : vector<16x256xf32>
    %c0_12 = arith.constant 0 : index
    %c0_13 = arith.constant 0 : index
    %20 = vector.load %arg3[%c0_12, %c0_13] : memref<1x256xf32, #tpu.memory_space<vmem>>, vector<1x256xf32>
    %21 = vector.broadcast %20 : vector<1x256xf32> to vector<16x256xf32>
    %22 = arith.addf %19, %21 : vector<16x256xf32>
    %cst_14 = arith.constant 0.000000e+00 : f32
    %23 = vector.broadcast %cst_14 : f32 to vector<16x256xf32>
    %24 = arith.maximumf %22, %23 : vector<16x256xf32>
    %25 = arith.truncf %24 : vector<16x256xf32> to vector<16x256xbf16>
    %26 = vector.shape_cast %25 : vector<16x256xbf16> to vector<1x16x256xbf16>
    %cst_15 = arith.constant 0.000000e+00 : bf16
    %27 = vector.broadcast %cst_15 : bf16 to vector<1x16x16xbf16>
    %28 = tpu.concatenate %27, %26, %27 in 2 : vector<1x16x16xbf16>, vector<1x16x256xbf16>, vector<1x16x16xbf16> -> vector<1x16x288xbf16>
    %cst_16 = arith.constant 0.000000e+00 : bf16
    %29 = vector.broadcast %cst_16 : bf16 to vector<1x1x288xbf16>
    %30 = tpu.concatenate %29, %28, %29 in 1 : vector<1x1x288xbf16>, vector<1x16x288xbf16>, vector<1x1x288xbf16> -> vector<1x18x288xbf16>
    %cst_17 = arith.constant 0.000000e+00 : f32
    %31 = vector.broadcast %cst_17 : f32 to vector<16x512xf32>
    %32 = vector.extract_strided_slice %30 {offsets = [0, 0, 0], sizes = [1, 16, 288], strides = [1, 1, 1]} : vector<1x18x288xbf16> to vector<1x16x288xbf16>
    %33 = vector.shape_cast %32 : vector<1x16x288xbf16> to vector<16x288xbf16>
    %c0_18 = arith.constant 0 : index
    %c0_19 = arith.constant 0 : index
    %c0_20 = arith.constant 0 : index
    %34 = vector.load %arg4[%c0_18, %c0_19, %c0_20] : memref<3x288x512xbf16, #tpu.memory_space<vmem>>, vector<1x288x512xbf16>
    %35 = vector.shape_cast %34 : vector<1x288x512xbf16> to vector<288x512xbf16>
    %cst_21 = arith.constant dense<0.000000e+00> : vector<16x512xf32>
    %36 = tpu.matmul %33, %35, %cst_21 {dimension_numbers = #tpu.dot_dimension_numbers<[1], [0], [0], [1], [0, 0, 1, 1], [], []>} : vector<16x288xbf16>, vector<288x512xbf16>, vector<16x512xf32> -> vector<16x512xf32>
    %37 = arith.addf %31, %36 : vector<16x512xf32>
    %38 = vector.extract_strided_slice %30 {offsets = [0, 1, 0], sizes = [1, 16, 288], strides = [1, 1, 1]} : vector<1x18x288xbf16> to vector<1x16x288xbf16>
    %39 = vector.shape_cast %38 : vector<1x16x288xbf16> to vector<16x288xbf16>
    %c1_22 = arith.constant 1 : index
    %c0_23 = arith.constant 0 : index
    %c0_24 = arith.constant 0 : index
    %40 = vector.load %arg4[%c1_22, %c0_23, %c0_24] : memref<3x288x512xbf16, #tpu.memory_space<vmem>>, vector<1x288x512xbf16>
    %41 = vector.shape_cast %40 : vector<1x288x512xbf16> to vector<288x512xbf16>
    %cst_25 = arith.constant dense<0.000000e+00> : vector<16x512xf32>
    %42 = tpu.matmul %39, %41, %cst_25 {dimension_numbers = #tpu.dot_dimension_numbers<[1], [0], [0], [1], [0, 0, 1, 1], [], []>} : vector<16x288xbf16>, vector<288x512xbf16>, vector<16x512xf32> -> vector<16x512xf32>
    %43 = arith.addf %37, %42 : vector<16x512xf32>
    %44 = vector.extract_strided_slice %30 {offsets = [0, 2, 0], sizes = [1, 16, 288], strides = [1, 1, 1]} : vector<1x18x288xbf16> to vector<1x16x288xbf16>
    %45 = vector.shape_cast %44 : vector<1x16x288xbf16> to vector<16x288xbf16>
    %c2_26 = arith.constant 2 : index
    %c0_27 = arith.constant 0 : index
    %c0_28 = arith.constant 0 : index
    %46 = vector.load %arg4[%c2_26, %c0_27, %c0_28] : memref<3x288x512xbf16, #tpu.memory_space<vmem>>, vector<1x288x512xbf16>
    %47 = vector.shape_cast %46 : vector<1x288x512xbf16> to vector<288x512xbf16>
    %cst_29 = arith.constant dense<0.000000e+00> : vector<16x512xf32>
    %48 = tpu.matmul %45, %47, %cst_29 {dimension_numbers = #tpu.dot_dimension_numbers<[1], [0], [0], [1], [0, 0, 1, 1], [], []>} : vector<16x288xbf16>, vector<288x512xbf16>, vector<16x512xf32> -> vector<16x512xf32>
    %49 = arith.addf %43, %48 : vector<16x512xf32>
    %c0_30 = arith.constant 0 : index
    %c0_31 = arith.constant 0 : index
    %50 = vector.load %arg5[%c0_30, %c0_31] : memref<1x512xf32, #tpu.memory_space<vmem>>, vector<1x512xf32>
    %51 = vector.broadcast %50 : vector<1x512xf32> to vector<16x512xf32>
    %52 = arith.addf %49, %51 : vector<16x512xf32>
    %cst_32 = arith.constant 0.000000e+00 : f32
    %53 = vector.broadcast %cst_32 : f32 to vector<16x512xf32>
    %54 = arith.maximumf %52, %53 : vector<16x512xf32>
    %55 = arith.truncf %54 : vector<16x512xf32> to vector<16x512xbf16>
    %56 = vector.shape_cast %55 : vector<16x512xbf16> to vector<1x16x512xbf16>
    %57 = vector.extract_strided_slice %56 {offsets = [0, 0, 0], sizes = [1, 1, 512], strides = [1, 1, 1]} : vector<1x16x512xbf16> to vector<1x1x512xbf16>
    %58 = vector.shape_cast %57 : vector<1x1x512xbf16> to vector<1x512xbf16>
    %59 = vector.extract_strided_slice %56 {offsets = [0, 2, 0], sizes = [1, 1, 512], strides = [1, 1, 1]} : vector<1x16x512xbf16> to vector<1x1x512xbf16>
    %60 = vector.shape_cast %59 : vector<1x1x512xbf16> to vector<1x512xbf16>
    %61 = vector.extract_strided_slice %56 {offsets = [0, 4, 0], sizes = [1, 1, 512], strides = [1, 1, 1]} : vector<1x16x512xbf16> to vector<1x1x512xbf16>
    %62 = vector.shape_cast %61 : vector<1x1x512xbf16> to vector<1x512xbf16>
    %63 = vector.extract_strided_slice %56 {offsets = [0, 6, 0], sizes = [1, 1, 512], strides = [1, 1, 1]} : vector<1x16x512xbf16> to vector<1x1x512xbf16>
    %64 = vector.shape_cast %63 : vector<1x1x512xbf16> to vector<1x512xbf16>
    %65 = vector.extract_strided_slice %56 {offsets = [0, 8, 0], sizes = [1, 1, 512], strides = [1, 1, 1]} : vector<1x16x512xbf16> to vector<1x1x512xbf16>
    %66 = vector.shape_cast %65 : vector<1x1x512xbf16> to vector<1x512xbf16>
    %67 = vector.extract_strided_slice %56 {offsets = [0, 10, 0], sizes = [1, 1, 512], strides = [1, 1, 1]} : vector<1x16x512xbf16> to vector<1x1x512xbf16>
    %68 = vector.shape_cast %67 : vector<1x1x512xbf16> to vector<1x512xbf16>
    %69 = vector.extract_strided_slice %56 {offsets = [0, 12, 0], sizes = [1, 1, 512], strides = [1, 1, 1]} : vector<1x16x512xbf16> to vector<1x1x512xbf16>
    %70 = vector.shape_cast %69 : vector<1x1x512xbf16> to vector<1x512xbf16>
    %71 = vector.extract_strided_slice %56 {offsets = [0, 14, 0], sizes = [1, 1, 512], strides = [1, 1, 1]} : vector<1x16x512xbf16> to vector<1x1x512xbf16>
    %72 = vector.shape_cast %71 : vector<1x1x512xbf16> to vector<1x512xbf16>
    %73 = tpu.concatenate %58, %60, %62, %64, %66, %68, %70, %72 in 1 : vector<1x512xbf16>, vector<1x512xbf16>, vector<1x512xbf16>, vector<1x512xbf16>, vector<1x512xbf16>, vector<1x512xbf16>, vector<1x512xbf16>, vector<1x512xbf16> -> vector<1x4096xbf16>
    %c0_33 = arith.constant 0 : index
    %c0_34 = arith.constant 0 : index
    %74 = vector.load %arg6[%c0_33, %c0_34] : memref<4096x64xbf16, #tpu.memory_space<vmem>>, vector<4096x64xbf16>
    %cst_35 = arith.constant dense<0.000000e+00> : vector<1x64xf32>
    %75 = tpu.matmul %73, %74, %cst_35 {dimension_numbers = #tpu.dot_dimension_numbers<[1], [0], [0], [1], [0, 0, 1, 1], [], []>} : vector<1x4096xbf16>, vector<4096x64xbf16>, vector<1x64xf32> -> vector<1x64xf32>
    %c0_36 = arith.constant 0 : index
    %c0_37 = arith.constant 0 : index
    %76 = vector.load %arg7[%c0_36, %c0_37] : memref<1x64xf32, #tpu.memory_space<vmem>>, vector<1x64xf32>
    %77 = arith.addf %75, %76 : vector<1x64xf32>
    %cst_38 = arith.constant 0.000000e+00 : f32
    %78 = vector.broadcast %cst_38 : f32 to vector<1x64xf32>
    %79 = arith.maximumf %77, %78 : vector<1x64xf32>
    %c0_39 = arith.constant 0 : index
    %c0_40 = arith.constant 0 : index
    %80 = vector.load %arg8[%c0_39, %c0_40] : memref<64x128xf32, #tpu.memory_space<vmem>>, vector<64x128xf32>
    %cst_41 = arith.constant dense<0.000000e+00> : vector<1x128xf32>
    %81 = tpu.matmul %79, %80, %cst_41 {dimension_numbers = #tpu.dot_dimension_numbers<[1], [0], [0], [1], [0, 0, 1, 1], [], []>} : vector<1x64xf32>, vector<64x128xf32>, vector<1x128xf32> -> vector<1x128xf32>
    %c0_42 = arith.constant 0 : index
    %c0_43 = arith.constant 0 : index
    %82 = vector.load %arg9[%c0_42, %c0_43] : memref<1x128xf32, #tpu.memory_space<vmem>>, vector<1x128xf32>
    %83 = arith.addf %81, %82 : vector<1x128xf32>
    %84 = vector.shape_cast %83 : vector<1x128xf32> to vector<1x1x128xf32>
    %c0_44 = arith.constant 0 : index
    %c0_45 = arith.constant 0 : index
    %c0_46 = arith.constant 0 : index
    %85 = vector.load %arg10[%c0_44, %c0_45, %c0_46] : memref<1x1x128xf32, #tpu.memory_space<vmem>>, vector<1x1x128xf32>
    tpu.vector_store %arg10[%c0_44, %c0_45, %c0_46], %84 {strides = array<i32>} : memref<1x1x128xf32, #tpu.memory_space<vmem>>, vector<1x1x128xf32>,
    return
  }
  func.func @transform_0(%arg0: i32) -> (i32, i32, i32) {
    %c0_i32 = arith.constant 0 : i32
    %c0_i32_0 = arith.constant 0 : i32
    %c0_i32_1 = arith.constant 0 : i32
    return %arg0, %c0_i32, %c0_i32_0 : i32, i32, i32
  }
  func.func @transform_1(%arg0: i32) -> (i32, i32, i32) {
    %c0_i32 = arith.constant 0 : i32
    %c0_i32_0 = arith.constant 0 : i32
    %c0_i32_1 = arith.constant 0 : i32
    %c0_i32_2 = arith.constant 0 : i32
    return %c0_i32, %c0_i32_0, %c0_i32_1 : i32, i32, i32
  }
  func.func @transform_2(%arg0: i32) -> (i32, i32) {
    %c0_i32 = arith.constant 0 : i32
    %c0_i32_0 = arith.constant 0 : i32
    %c0_i32_1 = arith.constant 0 : i32
    return %c0_i32, %c0_i32_0 : i32, i32
  }
  func.func @transform_3(%arg0: i32) -> (i32, i32, i32) {
    %c0_i32 = arith.constant 0 : i32
    %c0_i32_0 = arith.constant 0 : i32
    %c0_i32_1 = arith.constant 0 : i32
    %c0_i32_2 = arith.constant 0 : i32
    return %c0_i32, %c0_i32_0, %c0_i32_1 : i32, i32, i32
  }
  func.func @transform_4(%arg0: i32) -> (i32, i32) {
    %c0_i32 = arith.constant 0 : i32
    %c0_i32_0 = arith.constant 0 : i32
    %c0_i32_1 = arith.constant 0 : i32
    return %c0_i32, %c0_i32_0 : i32, i32
  }
  func.func @transform_5(%arg0: i32) -> (i32, i32) {
    %c0_i32 = arith.constant 0 : i32
    %c0_i32_0 = arith.constant 0 : i32
    %c0_i32_1 = arith.constant 0 : i32
    return %c0_i32, %c0_i32_0 : i32, i32
  }
  func.func @transform_6(%arg0: i32) -> (i32, i32) {
    %c0_i32 = arith.constant 0 : i32
    %c0_i32_0 = arith.constant 0 : i32
    %c0_i32_1 = arith.constant 0 : i32
    return %c0_i32, %c0_i32_0 : i32, i32
  }
  func.func @transform_7(%arg0: i32) -> (i32, i32) {
    %c0_i32 = arith.constant 0 : i32
    %c0_i32_0 = arith.constant 0 : i32
    %c0_i32_1 = arith.constant 0 : i32
    return %c0_i32, %c0_i32_0 : i32, i32
  }
  func.func @transform_8(%arg0: i32) -> (i32, i32) {
    %c0_i32 = arith.constant 0 : i32
    %c0_i32_0 = arith.constant 0 : i32
    %c0_i32_1 = arith.constant 0 : i32
    return %c0_i32, %c0_i32_0 : i32, i32
  }
  func.func @transform_9(%arg0: i32) -> (i32, i32, i32) {
    %c0_i32 = arith.constant 0 : i32
    %c0_i32_0 = arith.constant 0 : i32
    %c0_i32_1 = arith.constant 0 : i32
    return %arg0, %c0_i32, %c0_i32_0 : i32, i32, i32
  }
}

</mosaic_0001>

<llo_original>
// kernel: custom_model_forward.1
$region0: #{custom_model_forward.1}
  #allocation0 [shape = 'u32[]', space=smem, size = 0x4, offset = 0x4, fixed_abs, tag = 'smem constant byte address 0x4 - core index']
  #allocation1 [shape = 'u32[72,128]{1,0:T(1,128)}', space=vmem, size = 0x9000, scoped, tag = 'internal scratch']
  %s0 = inlined_call_operand.vmem [shape: bf16[2,18,72], index: 0, kind: input, shape index: {}]
  %s1 = inlined_call_operand.vmem [shape: bf16[3,72,256], index: 1, kind: input, shape index: {}]
  %s2 = inlined_call_operand.vmem [shape: f32[1,256], index: 2, kind: input, shape index: {}]
  %s3 = inlined_call_operand.vmem [shape: bf16[3,288,512], index: 3, kind: input, shape index: {}]
  %s4 = inlined_call_operand.vmem [shape: f32[1,512], index: 4, kind: input, shape index: {}]
  %s5 = inlined_call_operand.vmem [shape: bf16[4096,64], index: 5, kind: input, shape index: {}]
  %s6 = inlined_call_operand.vmem [shape: f32[1,64], index: 6, kind: input, shape index: {}]
  %s7 = inlined_call_operand.vmem [shape: f32[64,128], index: 7, kind: input, shape index: {}]
  %s8 = inlined_call_operand.vmem [shape: f32[1,128], index: 8, kind: input, shape index: {}]
  %s9 = inlined_call_operand.vmem [shape: f32[2,1,128], index: 9, kind: output, shape index: {}]
  %s10 = sld [smem:[#allocation0]]
  $region69: #{custom_model_forward.1} parent=0
    _
  %s12 = ssub.s32 1, %s10
  %s13 = scalar_select 0, %s12, %s10
  loop: start=0, step=1, limit=4
  $region2: #{custom_model_forward.1} parent=0 // loop_pre_header
    _
  $region3: #{custom_model_forward.1} parent=0 // loop_header
    %s15 = sphi 0, %s19
    %p16 = scmp.ge.s32.totalorder %s15, 4
    %s25 = sphi 0, %s27
    %s28 = sphi 0, %s25
    %s29 = sphi 0, %s28
    %s45 = sphi 0, %s29
    %s49 = sphi 0, %s49
    %s51 = sphi 0, %s49
    %s52 = sphi 0, %s51
    %s66 = sphi 0, %s52
    %s70 = sphi 0, %s70
    %s72 = sphi 0, %s70
    %s73 = sphi 0, %s72
    %s87 = sphi 0, %s73
    %s91 = sphi 0, %s91
    %s93 = sphi 0, %s91
    %s94 = sphi 0, %s93
    %s108 = sphi 0, %s94
    %s112 = sphi 0, %s112
    %s114 = sphi 0, %s112
    %s115 = sphi 0, %s114
    %s129 = sphi 0, %s115
    %s133 = sphi 0, %s133
    %s135 = sphi 0, %s133
    %s136 = sphi 0, %s135
    %s150 = sphi 0, %s136
    %s154 = sphi 0, %s154
    %s156 = sphi 0, %s154
    %s157 = sphi 0, %s156
    %s171 = sphi 0, %s157
    %s175 = sphi 0, %s175
    %s177 = sphi 0, %s175
    %s178 = sphi 0, %s177
    %s192 = sphi 0, %s178
    %s196 = sphi 0, %s196
    %s198 = sphi 0, %s196
    %s199 = sphi 0, %s198
    %s213 = sphi 0, %s199
    %s219 = sphi 0, %s221
    %s222 = sphi 0, %s219
    %s223 = sphi 0, %s222
    %s239 = sphi 0, %s223
  $region4: #{custom_model_forward.1} parent=0 // loop_header_branch
    %18 = sbr.rel (%p16) target = $region8
  $region5: #{custom_model_forward.1} parent=0 // loop_body
    %s20 = ssub.s32 %s15, 1
    %s21 = ssub.s32 %s15, 2
    %s22 = sadd.s32 %s15, 1
    %s23 = ssub.s32 %s15, %s22
    %p24 = scmp.eq.s32.totalorder %s23, 0
    %s26 = sadd.s32 %s25, 1
    %s27 = scalar_select %p24, %s25, %s26
    %p30 = pneg %p24
    %p31 = scmp.eq.s32.totalorder %s15, 1
    %p32 = por %p30, %p31
    %p33 = scmp.ne.s32.totalorder %s25, %s28
    %p34 = scmp.eq.s32.totalorder %s15, 0
    %p35 = por %p33, %p34
    %p36 = scmp.ne.s32.totalorder %s25, %s28
    %p37 = scmp.eq.s32.totalorder %s20, 1
    %p38 = por %p36, %p37
    %p39 = scmp.ne.s32.totalorder %s28, %s29
    %p40 = scmp.eq.s32.totalorder %s20, 0
    %p41 = por %p39, %p40
    %p42 = scmp.ne.s32.totalorder %s28, %s29
    %p43 = scmp.eq.s32.totalorder %s21, 1
    %p44 = por %p42, %p43
    %p46 = scmp.ne.s32.totalorder %s29, %s45
    %p47 = scmp.eq.s32.totalorder %s21, 0
    %p48 = por %p46, %p47
    %s50 = sadd.s32 %s49, 1
    %p53 = scmp.eq.s32.totalorder %s15, 1
    %p54 = scmp.ne.s32.totalorder %s49, %s51
    %p55 = scmp.eq.s32.totalorder %s15, 0
    %p56 = por %p54, %p55
    %p57 = scmp.ne.s32.totalorder %s49, %s51
    %p58 = scmp.eq.s32.totalorder %s20, 1
    %p59 = por %p57, %p58
    %p60 = scmp.ne.s32.totalorder %s51, %s52
    %p61 = scmp.eq.s32.totalorder %s20, 0
    %p62 = por %p60, %p61
    %p63 = scmp.ne.s32.totalorder %s51, %s52
    %p64 = scmp.eq.s32.totalorder %s21, 1
    %p65 = por %p63, %p64
    %p67 = scmp.ne.s32.totalorder %s52, %s66
    %p68 = scmp.eq.s32.totalorder %s21, 0
    %p69 = por %p67, %p68
    %s71 = sadd.s32 %s70, 1
    %p74 = scmp.eq.s32.totalorder %s15, 1
    %p75 = scmp.ne.s32.totalorder %s70, %s72
    %p76 = scmp.eq.s32.totalorder %s15, 0
    %p77 = por %p75, %p76
    %p78 = scmp.ne.s32.totalorder %s70, %s72
    %p79 = scmp.eq.s32.totalorder %s20, 1
    %p80 = por %p78, %p79
    %p81 = scmp.ne.s32.totalorder %s72, %s73
    %p82 = scmp.eq.s32.totalorder %s20, 0
    %p83 = por %p81, %p82
    %p84 = scmp.ne.s32.totalorder %s72, %s73
    %p85 = scmp.eq.s32.totalorder %s21, 1
    %p86 = por %p84, %p85
    %p88 = scmp.ne.s32.totalorder %s73, %s87
    %p89 = scmp.eq.s32.totalorder %s21, 0
    %p90 = por %p88, %p89
    %s92 = sadd.s32 %s91, 1
    %p95 = scmp.eq.s32.totalorder %s15, 1
    %p96 = scmp.ne.s32.totalorder %s91, %s93
    %p97 = scmp.eq.s32.totalorder %s15, 0
    %p98 = por %p96, %p97
    %p99 = scmp.ne.s32.totalorder %s91, %s93
    %p100 = scmp.eq.s32.totalorder %s20, 1
    %p101 = por %p99, %p100
    %p102 = scmp.ne.s32.totalorder %s93, %s94
    %p103 = scmp.eq.s32.totalorder %s20, 0
    %p104 = por %p102, %p103
    %p105 = scmp.ne.s32.totalorder %s93, %s94
    %p106 = scmp.eq.s32.totalorder %s21, 1
    %p107 = por %p105, %p106
    %p109 = scmp.ne.s32.totalorder %s94, %s108
    %p110 = scmp.eq.s32.totalorder %s21, 0
    %p111 = por %p109, %p110
    %s113 = sadd.s32 %s112, 1
    %p116 = scmp.eq.s32.totalorder %s15, 1
    %p117 = scmp.ne.s32.totalorder %s112, %s114
    %p118 = scmp.eq.s32.totalorder %s15, 0
    %p119 = por %p117, %p118
    %p120 = scmp.ne.s32.totalorder %s112, %s114
    %p121 = scmp.eq.s32.totalorder %s20, 1
    %p122 = por %p120, %p121
    %p123 = scmp.ne.s32.totalorder %s114, %s115
    %p124 = scmp.eq.s32.totalorder %s20, 0
    %p125 = por %p123, %p124
    %p126 = scmp.ne.s32.totalorder %s114, %s115
    %p127 = scmp.eq.s32.totalorder %s21, 1
    %p128 = por %p126, %p127
    %p130 = scmp.ne.s32.totalorder %s115, %s129
    %p131 = scmp.eq.s32.totalorder %s21, 0
    %p132 = por %p130, %p131
    %s134 = sadd.s32 %s133, 1
    %p137 = scmp.eq.s32.totalorder %s15, 1
    %p138 = scmp.ne.s32.totalorder %s133, %s135
    %p139 = scmp.eq.s32.totalorder %s15, 0
    %p140 = por %p138, %p139
    %p141 = scmp.ne.s32.totalorder %s133, %s135
    %p142 = scmp.eq.s32.totalorder %s20, 1
    %p143 = por %p141, %p142
    %p144 = scmp.ne.s32.totalorder %s135, %s136
    %p145 = scmp.eq.s32.totalorder %s20, 0
    %p146 = por %p144, %p145
    %p147 = scmp.ne.s32.totalorder %s135, %s136
    %p148 = scmp.eq.s32.totalorder %s21, 1
    %p149 = por %p147, %p148
    %p151 = scmp.ne.s32.totalorder %s136, %s150
    %p152 = scmp.eq.s32.totalorder %s21, 0
    %p153 = por %p151, %p152
    %s155 = sadd.s32 %s154, 1
    %p158 = scmp.eq.s32.totalorder %s15, 1
    %p159 = scmp.ne.s32.totalorder %s154, %s156
    %p160 = scmp.eq.s32.totalorder %s15, 0
    %p161 = por %p159, %p160
    %p162 = scmp.ne.s32.totalorder %s154, %s156
    %p163 = scmp.eq.s32.totalorder %s20, 1
    %p164 = por %p162, %p163
    %p165 = scmp.ne.s32.totalorder %s156, %s157
    %p166 = scmp.eq.s32.totalorder %s20, 0
    %p167 = por %p165, %p166
    %p168 = scmp.ne.s32.totalorder %s156, %s157
    %p169 = scmp.eq.s32.totalorder %s21, 1
    %p170 = por %p168, %p169
    %p172 = scmp.ne.s32.totalorder %s157, %s171
    %p173 = scmp.eq.s32.totalorder %s21, 0
    %p174 = por %p172, %p173
    %s176 = sadd.s32 %s175, 1
    %p179 = scmp.eq.s32.totalorder %s15, 1
    %p180 = scmp.ne.s32.totalorder %s175, %s177
    %p181 = scmp.eq.s32.totalorder %s15, 0
    %p182 = por %p180, %p181
    %p183 = scmp.ne.s32.totalorder %s175, %s177
    %p184 = scmp.eq.s32.totalorder %s20, 1
    %p185 = por %p183, %p184
    %p186 = scmp.ne.s32.totalorder %s177, %s178
    %p187 = scmp.eq.s32.totalorder %s20, 0
    %p188 = por %p186, %p187
    %p189 = scmp.ne.s32.totalorder %s177, %s178
    %p190 = scmp.eq.s32.totalorder %s21, 1
    %p191 = por %p189, %p190
    %p193 = scmp.ne.s32.totalorder %s178, %s192
    %p194 = scmp.eq.s32.totalorder %s21, 0
    %p195 = por %p193, %p194
    %s197 = sadd.s32 %s196, 1
    %p200 = scmp.eq.s32.totalorder %s15, 1
    %p201 = scmp.ne.s32.totalorder %s196, %s198
    %p202 = scmp.eq.s32.totalorder %s15, 0
    %p203 = por %p201, %p202
    %p204 = scmp.ne.s32.totalorder %s196, %s198
    %p205 = scmp.eq.s32.totalorder %s20, 1
    %p206 = por %p204, %p205
    %p207 = scmp.ne.s32.totalorder %s198, %s199
    %p208 = scmp.eq.s32.totalorder %s20, 0
    %p209 = por %p207, %p208
    %p210 = scmp.ne.s32.totalorder %s198, %s199
    %p211 = scmp.eq.s32.totalorder %s21, 1
    %p212 = por %p210, %p211
    %p214 = scmp.ne.s32.totalorder %s199, %s213
    %p215 = scmp.eq.s32.totalorder %s21, 0
    %p216 = por %p214, %p215
    %s217 = ssub.s32 %s15, %s22
    %p218 = scmp.eq.s32.totalorder %s217, 0
    %s220 = sadd.s32 %s219, 1
    %s221 = scalar_select %p218, %s219, %s220
    %p224 = pneg %p218
    %p225 = scmp.eq.s32.totalorder %s15, 1
    %p226 = por %p224, %p225
    %p227 = scmp.ne.s32.totalorder %s219, %s222
    %p228 = scmp.eq.s32.totalorder %s15, 0
    %p229 = por %p227, %p228
    %p230 = scmp.ne.s32.totalorder %s219, %s222
    %p231 = scmp.eq.s32.totalorder %s20, 1
    %p232 = por %p230, %p231
    %p233 = scmp.ne.s32.totalorder %s222, %s223
    %p234 = scmp.eq.s32.totalorder %s20, 0
    %p235 = por %p233, %p234
    %p236 = scmp.ne.s32.totalorder %s222, %s223
    %p237 = scmp.eq.s32.totalorder %s21, 1
    %p238 = por %p236, %p237
    %p240 = scmp.ne.s32.totalorder %s223, %s239
    %p241 = scmp.eq.s32.totalorder %s21, 0
    %p242 = por %p240, %p241
    %p243 = scmp.le.s32.totalorder 1, %s15
    %p244 = scmp.lt.s32.totalorder %s15, 3
    %p245 = pnand %p243, %p244
    %p246 = pneg %p245
    // Predicated region
    $region9: #{custom_model_forward.1} parent=5 // pred_check
      _
    $region10: #{custom_model_forward.1} parent=5 // pred_check_branch
      %248 = sbr.rel (%p245) target = $region12
    $region11: #{custom_model_forward.1} parent=5 // pred_region
      %s249 = ssub.s32 %s15, 1
      // Predicated region
      $region13: #{custom_model_forward.1} parent=11 // pred_check
        %p250 = pneg %p62
      $region14: #{custom_model_forward.1} parent=11 // pred_check_branch
        %252 = sbr.rel (%p250) target = $region16
      $region15: #{custom_model_forward.1} parent=11 // pred_region
        _
      $region16: #{custom_model_forward.1} parent=11 // pred_fallthru
        _
      // Predicated region
      $region17: #{custom_model_forward.1} parent=11 // pred_check
        %p253 = pneg %p83
      $region18: #{custom_model_forward.1} parent=11 // pred_check_branch
        %255 = sbr.rel (%p253) target = $region20
      $region19: #{custom_model_forward.1} parent=11 // pred_region
        _
      $region20: #{custom_model_forward.1} parent=11 // pred_fallthru
        _
      // Predicated region
      $region21: #{custom_model_forward.1} parent=11 // pred_check
        %p256 = pneg %p104
      $region22: #{custom_model_forward.1} parent=11 // pred_check_branch
        %258 = sbr.rel (%p256) target = $region24
      $region23: #{custom_model_forward.1} parent=11 // pred_region
        _
      $region24: #{custom_model_forward.1} parent=11 // pred_fallthru
        _
      // Predicated region
      $region25: #{custom_model_forward.1} parent=11 // pred_check
        %p259 = pneg %p125
      $region26: #{custom_model_forward.1} parent=11 // pred_check_branch
        %261 = sbr.rel (%p259) target = $region28
      $region27: #{custom_model_forward.1} parent=11 // pred_region
        _
      $region28: #{custom_model_forward.1} parent=11 // pred_fallthru
        _
      // Predicated region
      $region29: #{custom_model_forward.1} parent=11 // pred_check
        %p262 = pneg %p146
      $region30: #{custom_model_forward.1} parent=11 // pred_check_branch
        %264 = sbr.rel (%p262) target = $region32
      $region31: #{custom_model_forward.1} parent=11 // pred_region
        _
      $region32: #{custom_model_forward.1} parent=11 // pred_fallthru
        _
      // Predicated region
      $region33: #{custom_model_forward.1} parent=11 // pred_check
        %p265 = pneg %p167
      $region34: #{custom_model_forward.1} parent=11 // pred_check_branch
        %267 = sbr.rel (%p265) target = $region36
      $region35: #{custom_model_forward.1} parent=11 // pred_region
        _
      $region36: #{custom_model_forward.1} parent=11 // pred_fallthru
        _
      // Predicated region
      $region37: #{custom_model_forward.1} parent=11 // pred_check
        %p268 = pneg %p188
      $region38: #{custom_model_forward.1} parent=11 // pred_check_branch
        %270 = sbr.rel (%p268) target = $region40
      $region39: #{custom_model_forward.1} parent=11 // pred_region
        _
      $region40: #{custom_model_forward.1} parent=11 // pred_fallthru
        _
      // Predicated region
      $region41: #{custom_model_forward.1} parent=11 // pred_check
        %p271 = pneg %p209
      $region42: #{custom_model_forward.1} parent=11 // pred_check_branch
        %273 = sbr.rel (%p271) target = $region44
      $region43: #{custom_model_forward.1} parent=11 // pred_region
        _
      $region44: #{custom_model_forward.1} parent=11 // pred_fallthru
        _
    $region12: #{custom_model_forward.1} parent=5 // pred_fallthru
      _
    %p274 = scmp.lt.s32.totalorder %s15, 2
    // Predicated region
    $region45: #{custom_model_forward.1} parent=5 // pred_check
      %p275 = pneg %p274
    $region46: #{custom_model_forward.1} parent=5 // pred_check_branch
      %277 = sbr.rel (%p275) target = $region48
    $region47: #{custom_model_forward.1} parent=5 // pred_region
      // Predicated region
      $region49: #{custom_model_forward.1} parent=47 // pred_check
        %p278 = pneg %p35
      $region50: #{custom_model_forward.1} parent=47 // pred_check_branch
        %280 = sbr.rel (%p278) target = $region52
      $region51: #{custom_model_forward.1} parent=47 // pred_region
        %p281 = scmp.lt.s32.totalorder %s15, 1
        %s282 = scalar_select %p281, %s15, 1
        %s283 = smul.addr %s282, 3
        %s284 = smul.addr %s283, 4
        %s285 = scalar_lea.vmem %s0, %s284
      $region52: #{custom_model_forward.1} parent=47 // pred_fallthru
        _
    $region48: #{custom_model_forward.1} parent=5 // pred_fallthru
      _
    %p286 = scmp.le.s32.totalorder 1, %s15
    %p287 = scmp.lt.s32.totalorder %s15, 3
    %p288 = pnand %p286, %p287
    %p289 = pneg %p288
    // Predicated region
    $region53: #{custom_model_forward.1} parent=5 // pred_check
      _
    $region54: #{custom_model_forward.1} parent=5 // pred_check_branch
      %291 = sbr.rel (%p288) target = $region56
    $region55: #{custom_model_forward.1} parent=5 // pred_region
      %s292 = ssub.s32 %s15, 1
      %p293 = scmp.lt.s32.totalorder %s20, 1
      %s294 = scalar_select %p293, %s20, 1
      %s295 = smul.addr %s294, 3
      %s296 = smul.addr %s295, 4
      %s297 = scalar_lea.vmem %s0, %s296
      %p298 = pneg %p41
      %p299 = pneg %p38
      %p300 = pneg %p62
      %p301 = pneg %p59
      %p302 = pneg %p83
      %p303 = pneg %p80
      %p304 = pneg %p104
      %p305 = pneg %p101
      %p306 = pneg %p125
      %p307 = pneg %p122
      %p308 = pneg %p146
      %p309 = pneg %p143
      %p310 = pneg %p167
      %p311 = pneg %p164
      %p312 = pneg %p188
      %p313 = pneg %p185
      %p314 = pneg %p209
      %p315 = pneg %p206
      %p316 = pneg %p235
      %p317 = pneg %p232
      %p318 = scmp.lt.s32.totalorder %s20, 1
      %s319 = scalar_select %p318, %s20, 1
      %s320 = scalar_lea.vmem %s9, %s319
      %p321 = scmp.lt.s32.totalorder %s20, 1
      %s322 = scalar_select %p321, %s20, 1
      %s323 = smul.addr %s322, 3
      %s324 = smul.addr %s323, 4
      %s325 = scalar_lea.vmem %s0, %s324
      %p326 = scmp.lt.s32.totalorder %s20, 1
      %s327 = scalar_select %p326, %s20, 1
      %s328 = scalar_lea.vmem %s9, %s327
      %v330 = vld [vmem:[%s325] sm:$0xf]
      %v331 = vld [vmem:[%s325 + $0x4] sm:$0xf]
      %v332 = vld [vmem:[%s325 + $0x8] sm:$0x1]
      %v333 = vld [vmem:[%s1] sm:$0xff]
      %v334 = vld [vmem:[%s1 + $0x8] sm:$0xff]
      %v335 = vld [vmem:[%s1 + $0x10] sm:$0xff]
      %v336 = vld [vmem:[%s1 + $0x18] sm:$0xff]
      %v337 = vld [vmem:[%s1 + $0x20] sm:$0xff]
      %v338 = vld [vmem:[%s1 + $0x28] sm:$0xff]
      %v339 = vld [vmem:[%s1 + $0x30] sm:$0xff]
      %v340 = vld [vmem:[%s1 + $0x38] sm:$0xff]
      %v341 = vld [vmem:[%s1 + $0x40] sm:$0xff]
      %s342 = scalar_lea.vmem %s1, 72
      %v343 = vld [vmem:[%s342] sm:$0xff]
      %v344 = vld [vmem:[%s342 + $0x8] sm:$0xff]
      %v345 = vld [vmem:[%s342 + $0x10] sm:$0xff]
      %v346 = vld [vmem:[%s342 + $0x18] sm:$0xff]
      %v347 = vld [vmem:[%s342 + $0x20] sm:$0xff]
      %v348 = vld [vmem:[%s342 + $0x28] sm:$0xff]
      %v349 = vld [vmem:[%s342 + $0x30] sm:$0xff]
      %v350 = vld [vmem:[%s342 + $0x38] sm:$0xff]
      %v351 = vld [vmem:[%s342 + $0x40] sm:$0xff]
      %v355 = vunpack.c.l.b16 %v330
      %v356 = vunpack.c.l.b16 %v331
      %v357 = vunpack.c.l.b16 %v332
      %v358 = vpack.c.b16 %v356, %v355
      %v359 = vpack.c.b16 %v357, %v357
      %vm360 = vsmask.f32 7424
      %v362 = vshrl.u32 %v358, 16
      %v364 = vshll.u32 %v358, 16
      %v366 = vrot.slane %v364, 1
      %v367 = vor.u32 %v362, %v366
      %v369 = vshll.u32 %v359, 16
      %v371 = vrot.slane %v369, 1
      %v372 = vsel %vm360, %v367, %v371
      %v382 = vunpack.c.l.b16 %v343
      %v383 = vunpack.c.h.b16 %v343
      %v384 = vunpack.c.l.b16 %v344
      %v385 = vunpack.c.h.b16 %v344
      %v386 = vunpack.c.l.b16 %v345
      %v387 = vunpack.c.h.b16 %v345
      %v388 = vunpack.c.l.b16 %v346
      %v389 = vunpack.c.h.b16 %v346
      %v390 = vunpack.c.l.b16 %v347
      %v391 = vunpack.c.h.b16 %v347
      %v392 = vunpack.c.l.b16 %v348
      %v393 = vunpack.c.h.b16 %v348
      %v394 = vunpack.c.l.b16 %v349
      %v395 = vunpack.c.h.b16 %v349
      %v396 = vunpack.c.l.b16 %v350
      %v397 = vunpack.c.h.b16 %v350
      %v398 = vunpack.c.l.b16 %v351
      %v399 = vunpack.c.h.b16 %v351
      %v400 = vpack.c.b16 %v384, %v382
      %v401 = vpack.c.b16 %v385, %v383
      %v402 = vpack.c.b16 %v388, %v386
      %v403 = vpack.c.b16 %v389, %v387
      %v404 = vpack.c.b16 %v392, %v390
      %v405 = vpack.c.b16 %v393, %v391
      %v406 = vpack.c.b16 %v396, %v394
      %v407 = vpack.c.b16 %v397, %v395
      %v408 = vpack.c.b16 %v398, %v398
      %v409 = vpack.c.b16 %v399, %v399
      %vm418 = vcmask 588800
      %v420 = vsel %vm418, %v372, 0
      %vm422 = vcmask 1043456
      %v424 = vsel %vm422, %v408, 0
      %v427 = vsel %vm422, %v409, 0
      %429 = vmatpush.bf16.msra.mxu0 0
      %430 = vmatpush.bf16.msra.mxu0 0
      %431 = vmatpush.bf16.msra.mxu0 0
      %432 = vmatpush.bf16.msra.mxu0 %v424
      %433 = vmatpush.bf16.msra.mxu0 %v406
      %434 = vmatpush.bf16.msra.mxu0 %v404
      %435 = vmatpush.bf16.msra.mxu0 %v402
      %436 = vmatpush.bf16.msra.mxu0 %v400
      %437 = vmatmul.bf16.gmra.mxu0 %v420
      %v438 = vpop.f32.mrf.mxu0
      %v439 = vadd.f32 0.0, %v438
      %v440 = vpop.f32.mrf.mxu0
      %v441 = vadd.f32 0.0, %v440
      %442 = vdwg.mxu0
      %443 = vmatpush.bf16.msra.mxu0 0
      %444 = vmatpush.bf16.msra.mxu0 0
      %445 = vmatpush.bf16.msra.mxu0 0
      %446 = vmatpush.bf16.msra.mxu0 %v427
      %447 = vmatpush.bf16.msra.mxu0 %v407
      %448 = vmatpush.bf16.msra.mxu0 %v405
      %449 = vmatpush.bf16.msra.mxu0 %v403
      %450 = vmatpush.bf16.msra.mxu0 %v401
      %451 = vmatmul.bf16.gmra.mxu0 %v420
      %v452 = vpop.f32.mrf.mxu0
      %v453 = vadd.f32 0.0, %v452
      %v454 = vpop.f32.mrf.mxu0
      %v455 = vadd.f32 0.0, %v454
      %456 = vdwg.mxu0
      %v466 = vunpack.c.l.b16 %v333
      %v467 = vunpack.c.h.b16 %v333
      %v468 = vunpack.c.l.b16 %v334
      %v469 = vunpack.c.h.b16 %v334
      %v470 = vunpack.c.l.b16 %v335
      %v471 = vunpack.c.h.b16 %v335
      %v472 = vunpack.c.l.b16 %v336
      %v473 = vunpack.c.h.b16 %v336
      %v474 = vunpack.c.l.b16 %v337
      %v475 = vunpack.c.h.b16 %v337
      %v476 = vunpack.c.l.b16 %v338
      %v477 = vunpack.c.h.b16 %v338
      %v478 = vunpack.c.l.b16 %v339
      %v479 = vunpack.c.h.b16 %v339
      %v480 = vunpack.c.l.b16 %v340
      %v481 = vunpack.c.h.b16 %v340
      %v482 = vunpack.c.l.b16 %v341
      %v483 = vunpack.c.h.b16 %v341
      %v484 = vpack.c.b16 %v468, %v466
      %v485 = vpack.c.b16 %v469, %v467
      %v486 = vpack.c.b16 %v472, %v470
      %v487 = vpack.c.b16 %v473, %v471
      %v488 = vpack.c.b16 %v476, %v474
      %v489 = vpack.c.b16 %v477, %v475
      %v490 = vpack.c.b16 %v480, %v478
      %v491 = vpack.c.b16 %v481, %v479
      %v492 = vpack.c.b16 %v482, %v482
      %v493 = vpack.c.b16 %v483, %v483
      %v502 = vsel %vm418, %v358, 0
      %v505 = vsel %vm422, %v492, 0
      %v508 = vsel %vm422, %v493, 0
      %510 = vmatpush.bf16.msra.mxu0 0
      %511 = vmatpush.bf16.msra.mxu0 0
      %512 = vmatpush.bf16.msra.mxu0 0
      %513 = vmatpush.bf16.msra.mxu0 %v505
      %514 = vmatpush.bf16.msra.mxu0 %v490
      %515 = vmatpush.bf16.msra.mxu0 %v488
      %516 = vmatpush.bf16.msra.mxu0 %v486
      %517 = vmatpush.bf16.msra.mxu0 %v484
      %518 = vmatmul.bf16.gmra.mxu0 %v502
      %v519 = vpop.f32.mrf.mxu0
      %v520 = vadd.f32 %v439, %v519
      %v521 = vpop.f32.mrf.mxu0
      %v522 = vadd.f32 %v441, %v521
      %523 = vdwg.mxu0
      %524 = vmatpush.bf16.msra.mxu0 0
      %525 = vmatpush.bf16.msra.mxu0 0
      %526 = vmatpush.bf16.msra.mxu0 0
      %527 = vmatpush.bf16.msra.mxu0 %v508
      %528 = vmatpush.bf16.msra.mxu0 %v491
      %529 = vmatpush.bf16.msra.mxu0 %v489
      %530 = vmatpush.bf16.msra.mxu0 %v487
      %531 = vmatpush.bf16.msra.mxu0 %v485
      %532 = vmatmul.bf16.gmra.mxu0 %v502
      %v533 = vpop.f32.mrf.mxu0
      %v534 = vadd.f32 %v453, %v533
      %v535 = vpop.f32.mrf.mxu0
      %v536 = vadd.f32 %v455, %v535
      %537 = vdwg.mxu0
      %s538 = scalar_lea.vmem %s1, 144
      %v539 = vld [vmem:[%s538] sm:$0xff]
      %v540 = vld [vmem:[%s538 + $0x8] sm:$0xff]
      %v541 = vld [vmem:[%s538 + $0x10] sm:$0xff]
      %v542 = vld [vmem:[%s538 + $0x18] sm:$0xff]
      %v543 = vld [vmem:[%s538 + $0x20] sm:$0xff]
      %v544 = vld [vmem:[%s538 + $0x28] sm:$0xff]
      %v545 = vld [vmem:[%s538 + $0x30] sm:$0xff]
      %v546 = vld [vmem:[%s538 + $0x38] sm:$0xff]
      %v547 = vld [vmem:[%s538 + $0x40] sm:$0xff]
      %vm548 = vcmask 1046528
      %v549 = vrot.slane %v358, 1
      %v550 = vrot.slane %v359, 1
      %v551 = vsel %vm548, %v549, %v550
      %v561 = vunpack.c.l.b16 %v539
      %v562 = vunpack.c.h.b16 %v539
      %v563 = vunpack.c.l.b16 %v540
      %v564 = vunpack.c.h.b16 %v540
      %v565 = vunpack.c.l.b16 %v541
      %v566 = vunpack.c.h.b16 %v541
      %v567 = vunpack.c.l.b16 %v542
      %v568 = vunpack.c.h.b16 %v542
      %v569 = vunpack.c.l.b16 %v543
      %v570 = vunpack.c.h.b16 %v543
      %v571 = vunpack.c.l.b16 %v544
      %v572 = vunpack.c.h.b16 %v544
      %v573 = vunpack.c.l.b16 %v545
      %v574 = vunpack.c.h.b16 %v545
      %v575 = vunpack.c.l.b16 %v546
      %v576 = vunpack.c.h.b16 %v546
      %v577 = vunpack.c.l.b16 %v547
      %v578 = vunpack.c.h.b16 %v547
      %v579 = vpack.c.b16 %v563, %v561
      %v580 = vpack.c.b16 %v564, %v562
      %v581 = vpack.c.b16 %v567, %v565
      %v582 = vpack.c.b16 %v568, %v566
      %v583 = vpack.c.b16 %v571, %v569
      %v584 = vpack.c.b16 %v572, %v570
      %v585 = vpack.c.b16 %v575, %v573
      %v586 = vpack.c.b16 %v576, %v574
      %v587 = vpack.c.b16 %v577, %v577
      %v588 = vpack.c.b16 %v578, %v578
      %v598 = vsel %vm418, %v551, 0
      %v601 = vsel %vm422, %v587, 0
      %v604 = vsel %vm422, %v588, 0
      %606 = vmatpush.bf16.msra.mxu0 0
      %607 = vmatpush.bf16.msra.mxu0 0
      %608 = vmatpush.bf16.msra.mxu0 0
      %609 = vmatpush.bf16.msra.mxu0 %v601
      %610 = vmatpush.bf16.msra.mxu0 %v585
      %611 = vmatpush.bf16.msra.mxu0 %v583
      %612 = vmatpush.bf16.msra.mxu0 %v581
      %613 = vmatpush.bf16.msra.mxu0 %v579
      %614 = vmatmul.bf16.gmra.mxu0 %v598
      %v615 = vpop.f32.mrf.mxu0
      %v616 = vadd.f32 0.0, %v615
      %v617 = vpop.f32.mrf.mxu0
      %v618 = vadd.f32 0.0, %v617
      %619 = vdwg.mxu0
      %620 = vmatpush.bf16.msra.mxu0 0
      %621 = vmatpush.bf16.msra.mxu0 0
      %622 = vmatpush.bf16.msra.mxu0 0
      %623 = vmatpush.bf16.msra.mxu0 %v604
      %624 = vmatpush.bf16.msra.mxu0 %v586
      %625 = vmatpush.bf16.msra.mxu0 %v584
      %626 = vmatpush.bf16.msra.mxu0 %v582
      %627 = vmatpush.bf16.msra.mxu0 %v580
      %628 = vmatmul.bf16.gmra.mxu0 %v598
      %v629 = vpop.f32.mrf.mxu0
      %v630 = vadd.f32 0.0, %v629
      %v631 = vpop.f32.mrf.mxu0
      %v632 = vadd.f32 0.0, %v631
      %633 = vdwg.mxu0
      %v634 = vadd.f32 %v520, %v616
      %v635 = vadd.f32 %v534, %v630
      %v636 = vadd.f32 %v522, %v618
      %v637 = vadd.f32 %v536, %v632
      %v638 = vld [vmem:[%s2] sm:$0x3]
      %v640 = vperm.slane %v638, 0
      %v641 = vperm.slane %v638, 1
      %v644 = vadd.f32 %v634, %v640
      %v645 = vadd.f32 %v635, %v641
      %v646 = vadd.f32 %v636, %v640
      %v647 = vadd.f32 %v637, %v641
      %v648 = vmax.f32 %v644, 0.0
      %v649 = vmax.f32 %v645, 0.0
      %v650 = vmax.f32 %v646, 0.0
      %v651 = vmax.f32 %v647, 0.0
      %v652 = vpack.c.bf16 %v649, %v648
      %v653 = vpack.c.bf16 %v651, %v650
      %v656 = vunpack.c.l.b16 %v652
      %v657 = vunpack.c.h.b16 %v652
      %v658 = vunpack.c.l.b16 %v653
      %v659 = vunpack.c.h.b16 %v653
      %v660 = vpack.c.b16 %v658, %v656
      %v661 = vpack.c.b16 %v659, %v657
      %662 = vrot.lane.b32.xlu0 %v660, 16
      %v663 = vpop.permute.xlu0 %662
      %664 = vrot.lane.b32.xlu0 %v661, 16
      %v665 = vpop.permute.xlu0 %664
      %vm666 = vcmask 130048
      %v667 = vsel %vm666, %v663, %v665
      %vm668 = vcmask 130048
      %v671 = vsel %vm668, 0, %v663
      %v673 = vsel %vm668, %v665, 0
      %v674 = vshrl.u32 %v671, 16
      %v676 = vrot.slane %v674, 7
      %v677 = vshll.u32 %v671, 16
      %v679 = vor.u32 %v676, %v677
      %v681 = vshrl.u32 %v667, 16
      %v683 = vrot.slane %v681, 7
      %v684 = vshll.u32 %v667, 16
      %v686 = vor.u32 %v683, %v684
      %v687 = vshrl.u32 %v673, 16
      %v689 = vrot.slane %v687, 7
      %v690 = vshll.u32 %v673, 16
      %v692 = vor.u32 %v689, %v690
      %vm699 = vcmask 1040384
      %vm700 = vsmask.f32 256
      %vm701 = vmand %vm699, %vm700
      %v702 = vsel %vm701, 0, %v679
      %v703 = vsel %vm701, 0, %v686
      %v704 = vsel %vm701, 0, %v692
      %v705 = vsel %vm701, %v676, 0
      %v706 = vsel %vm701, %v683, 0
      %v707 = vsel %vm701, %v689, 0
      %v708 = vld [vmem:[%s3] sm:$0xff]
      %v709 = vld [vmem:[%s3 + $0x8] sm:$0xff]
      %v710 = vld [vmem:[%s3 + $0x10] sm:$0xff]
      %v711 = vld [vmem:[%s3 + $0x18] sm:$0xff]
      %v712 = vld [vmem:[%s3 + $0x20] sm:$0xff]
      %v713 = vld [vmem:[%s3 + $0x28] sm:$0xff]
      %v714 = vld [vmem:[%s3 + $0x30] sm:$0xff]
      %v715 = vld [vmem:[%s3 + $0x38] sm:$0xff]
      %v716 = vld [vmem:[%s3 + $0x40] sm:$0xff]
      %v717 = vld [vmem:[%s3 + $0x48] sm:$0xff]
      %v718 = vld [vmem:[%s3 + $0x50] sm:$0xff]
      %v719 = vld [vmem:[%s3 + $0x58] sm:$0xff]
      %v720 = vld [vmem:[%s3 + $0x60] sm:$0xff]
      %v721 = vld [vmem:[%s3 + $0x68] sm:$0xff]
      %v722 = vld [vmem:[%s3 + $0x70] sm:$0xff]
      %v723 = vld [vmem:[%s3 + $0x78] sm:$0xff]
      %v724 = vld [vmem:[%s3 + $0x80] sm:$0xff]
      %v725 = vld [vmem:[%s3 + $0x88] sm:$0xff]
      %v726 = vld [vmem:[%s3 + $0x90] sm:$0xff]
      %v727 = vld [vmem:[%s3 + $0x98] sm:$0xff]
      %v728 = vld [vmem:[%s3 + $0xa0] sm:$0xff]
      %v729 = vld [vmem:[%s3 + $0xa8] sm:$0xff]
      %v730 = vld [vmem:[%s3 + $0xb0] sm:$0xff]
      %v731 = vld [vmem:[%s3 + $0xb8] sm:$0xff]
      %v732 = vld [vmem:[%s3 + $0xc0] sm:$0xff]
      %v733 = vld [vmem:[%s3 + $0xc8] sm:$0xff]
      %v734 = vld [vmem:[%s3 + $0xd0] sm:$0xff]
      %v735 = vld [vmem:[%s3 + $0xd8] sm:$0xff]
      %v736 = vld [vmem:[%s3 + $0xe0] sm:$0xff]
      %v737 = vld [vmem:[%s3 + $0xe8] sm:$0xff]
      %v738 = vld [vmem:[%s3 + $0xf0] sm:$0xff]
      %v739 = vld [vmem:[%s3 + $0xf8] sm:$0xff]
      %v740 = vld [vmem:[%s3 + $0x100] sm:$0xff]
      %v741 = vld [vmem:[%s3 + $0x108] sm:$0xff]
      %v742 = vld [vmem:[%s3 + $0x110] sm:$0xff]
      %v743 = vld [vmem:[%s3 + $0x118] sm:$0xff]
      %v744 = vld [vmem:[%s3 + $0x120] sm:$0xff]
      %v745 = vld [vmem:[%s3 + $0x128] sm:$0xff]
      %v746 = vld [vmem:[%s3 + $0x130] sm:$0xff]
      %v747 = vld [vmem:[%s3 + $0x138] sm:$0xff]
      %v748 = vld [vmem:[%s3 + $0x140] sm:$0xff]
      %v749 = vld [vmem:[%s3 + $0x148] sm:$0xff]
      %v750 = vld [vmem:[%s3 + $0x150] sm:$0xff]
      %v751 = vld [vmem:[%s3 + $0x158] sm:$0xff]
      %v752 = vld [vmem:[%s3 + $0x160] sm:$0xff]
      %v753 = vld [vmem:[%s3 + $0x168] sm:$0xff]
      %v754 = vld [vmem:[%s3 + $0x170] sm:$0xff]
      %v755 = vld [vmem:[%s3 + $0x178] sm:$0xff]
      %v756 = vld [vmem:[%s3 + $0x180] sm:$0xff]
      %v757 = vld [vmem:[%s3 + $0x188] sm:$0xff]
      %v758 = vld [vmem:[%s3 + $0x190] sm:$0xff]
      %v759 = vld [vmem:[%s3 + $0x198] sm:$0xff]
      %v760 = vld [vmem:[%s3 + $0x1a0] sm:$0xff]
      %v761 = vld [vmem:[%s3 + $0x1a8] sm:$0xff]
      %v762 = vld [vmem:[%s3 + $0x1b0] sm:$0xff]
      %v763 = vld [vmem:[%s3 + $0x1b8] sm:$0xff]
      %v764 = vld [vmem:[%s3 + $0x1c0] sm:$0xff]
      %v765 = vld [vmem:[%s3 + $0x1c8] sm:$0xff]
      %v766 = vld [vmem:[%s3 + $0x1d0] sm:$0xff]
      %v767 = vld [vmem:[%s3 + $0x1d8] sm:$0xff]
      %v768 = vld [vmem:[%s3 + $0x1e0] sm:$0xff]
      %v769 = vld [vmem:[%s3 + $0x1e8] sm:$0xff]
      %v770 = vld [vmem:[%s3 + $0x1f0] sm:$0xff]
      %v771 = vld [vmem:[%s3 + $0x1f8] sm:$0xff]
      %v772 = vld [vmem:[%s3 + $0x200] sm:$0xff]
      %v773 = vld [vmem:[%s3 + $0x208] sm:$0xff]
      %v774 = vld [vmem:[%s3 + $0x210] sm:$0xff]
      %v775 = vld [vmem:[%s3 + $0x218] sm:$0xff]
      %v776 = vld [vmem:[%s3 + $0x220] sm:$0xff]
      %v777 = vld [vmem:[%s3 + $0x228] sm:$0xff]
      %v778 = vld [vmem:[%s3 + $0x230] sm:$0xff]
      %v779 = vld [vmem:[%s3 + $0x238] sm:$0xff]
      %s780 = scalar_lea.vmem %s3, 576
      %v781 = vld [vmem:[%s780] sm:$0xff]
      %v782 = vld [vmem:[%s780 + $0x8] sm:$0xff]
      %v783 = vld [vmem:[%s780 + $0x10] sm:$0xff]
      %v784 = vld [vmem:[%s780 + $0x18] sm:$0xff]
      %v785 = vld [vmem:[%s780 + $0x20] sm:$0xff]
      %v786 = vld [vmem:[%s780 + $0x28] sm:$0xff]
      %v787 = vld [vmem:[%s780 + $0x30] sm:$0xff]
      %v788 = vld [vmem:[%s780 + $0x38] sm:$0xff]
      %v789 = vld [vmem:[%s780 + $0x40] sm:$0xff]
      %v790 = vld [vmem:[%s780 + $0x48] sm:$0xff]
      %v791 = vld [vmem:[%s780 + $0x50] sm:$0xff]
      %v792 = vld [vmem:[%s780 + $0x58] sm:$0xff]
      %v793 = vld [vmem:[%s780 + $0x60] sm:$0xff]
      %v794 = vld [vmem:[%s780 + $0x68] sm:$0xff]
      %v795 = vld [vmem:[%s780 + $0x70] sm:$0xff]
      %v796 = vld [vmem:[%s780 + $0x78] sm:$0xff]
      %v797 = vld [vmem:[%s780 + $0x80] sm:$0xff]
      %v798 = vld [vmem:[%s780 + $0x88] sm:$0xff]
      %v799 = vld [vmem:[%s780 + $0x90] sm:$0xff]
      %v800 = vld [vmem:[%s780 + $0x98] sm:$0xff]
      %v801 = vld [vmem:[%s780 + $0xa0] sm:$0xff]
      %v802 = vld [vmem:[%s780 + $0xa8] sm:$0xff]
      %v803 = vld [vmem:[%s780 + $0xb0] sm:$0xff]
      %v804 = vld [vmem:[%s780 + $0xb8] sm:$0xff]
      %v805 = vld [vmem:[%s780 + $0xc0] sm:$0xff]
      %v806 = vld [vmem:[%s780 + $0xc8] sm:$0xff]
      %v807 = vld [vmem:[%s780 + $0xd0] sm:$0xff]
      %v808 = vld [vmem:[%s780 + $0xd8] sm:$0xff]
      %v809 = vld [vmem:[%s780 + $0xe0] sm:$0xff]
      %v810 = vld [vmem:[%s780 + $0xe8] sm:$0xff]
      %v811 = vld [vmem:[%s780 + $0xf0] sm:$0xff]
      %v812 = vld [vmem:[%s780 + $0xf8] sm:$0xff]
      %v813 = vld [vmem:[%s780 + $0x100] sm:$0xff]
      %v814 = vld [vmem:[%s780 + $0x108] sm:$0xff]
      %v815 = vld [vmem:[%s780 + $0x110] sm:$0xff]
      %v816 = vld [vmem:[%s780 + $0x118] sm:$0xff]
      %v817 = vld [vmem:[%s780 + $0x120] sm:$0xff]
      %v818 = vld [vmem:[%s780 + $0x128] sm:$0xff]
      %v819 = vld [vmem:[%s780 + $0x130] sm:$0xff]
      %v820 = vld [vmem:[%s780 + $0x138] sm:$0xff]
      %v821 = vld [vmem:[%s780 + $0x140] sm:$0xff]
      %v822 = vld [vmem:[%s780 + $0x148] sm:$0xff]
      %v823 = vld [vmem:[%s780 + $0x150] sm:$0xff]
      %v824 = vld [vmem:[%s780 + $0x158] sm:$0xff]
      %v825 = vld [vmem:[%s780 + $0x160] sm:$0xff]
      %v826 = vld [vmem:[%s780 + $0x168] sm:$0xff]
      %v827 = vld [vmem:[%s780 + $0x170] sm:$0xff]
      %v828 = vld [vmem:[%s780 + $0x178] sm:$0xff]
      %v829 = vld [vmem:[%s780 + $0x180] sm:$0xff]
      %v830 = vld [vmem:[%s780 + $0x188] sm:$0xff]
      %v831 = vld [vmem:[%s780 + $0x190] sm:$0xff]
      %v832 = vld [vmem:[%s780 + $0x198] sm:$0xff]
      %v833 = vld [vmem:[%s780 + $0x1a0] sm:$0xff]
      %v834 = vld [vmem:[%s780 + $0x1a8] sm:$0xff]
      %v835 = vld [vmem:[%s780 + $0x1b0] sm:$0xff]
      %v836 = vld [vmem:[%s780 + $0x1b8] sm:$0xff]
      %v837 = vld [vmem:[%s780 + $0x1c0] sm:$0xff]
      %v838 = vld [vmem:[%s780 + $0x1c8] sm:$0xff]
      %v839 = vld [vmem:[%s780 + $0x1d0] sm:$0xff]
      %v840 = vld [vmem:[%s780 + $0x1d8] sm:$0xff]
      %v841 = vld [vmem:[%s780 + $0x1e0] sm:$0xff]
      %v842 = vld [vmem:[%s780 + $0x1e8] sm:$0xff]
      %v843 = vld [vmem:[%s780 + $0x1f0] sm:$0xff]
      %v844 = vld [vmem:[%s780 + $0x1f8] sm:$0xff]
      %v845 = vld [vmem:[%s780 + $0x200] sm:$0xff]
      %v846 = vld [vmem:[%s780 + $0x208] sm:$0xff]
      %v847 = vld [vmem:[%s780 + $0x210] sm:$0xff]
      %v848 = vld [vmem:[%s780 + $0x218] sm:$0xff]
      %v849 = vld [vmem:[%s780 + $0x220] sm:$0xff]
      %v850 = vld [vmem:[%s780 + $0x228] sm:$0xff]
      %v851 = vld [vmem:[%s780 + $0x230] sm:$0xff]
      %v852 = vld [vmem:[%s780 + $0x238] sm:$0xff]
      %v854 = vshrl.u32 %v702, 16
      %v856 = vshll.u32 %v702, 16
      %v858 = vrot.slane %v856, 1
      %v859 = vor.u32 %v854, %v858
      %v861 = vshll.u32 %v705, 16
      %v863 = vrot.slane %v861, 1
      %v864 = vsel %vm360, %v859, %v863
      %v866 = vshrl.u32 %v703, 16
      %v868 = vshll.u32 %v703, 16
      %v870 = vrot.slane %v868, 1
      %v871 = vor.u32 %v866, %v870
      %v873 = vshll.u32 %v706, 16
      %v875 = vrot.slane %v873, 1
      %v876 = vsel %vm360, %v871, %v875
      %v878 = vshrl.u32 %v704, 16
      %v880 = vshll.u32 %v704, 16
      %v882 = vrot.slane %v880, 1
      %v883 = vor.u32 %v878, %v882
      %v885 = vshll.u32 %v707, 16
      %v887 = vrot.slane %v885, 1
      %v888 = vsel %vm360, %v883, %v887
      %v963 = vunpack.c.l.b16 %v781
      %v964 = vunpack.c.h.b16 %v781
      %v965 = vunpack.c.l.b16 %v782
      %v966 = vunpack.c.h.b16 %v782
      %v967 = vunpack.c.l.b16 %v783
      %v968 = vunpack.c.h.b16 %v783
      %v969 = vunpack.c.l.b16 %v784
      %v970 = vunpack.c.h.b16 %v784
      %v971 = vunpack.c.l.b16 %v785
      %v972 = vunpack.c.h.b16 %v785
      %v973 = vunpack.c.l.b16 %v786
      %v974 = vunpack.c.h.b16 %v786
      %v975 = vunpack.c.l.b16 %v787
      %v976 = vunpack.c.h.b16 %v787
      %v977 = vunpack.c.l.b16 %v788
      %v978 = vunpack.c.h.b16 %v788
      %v979 = vunpack.c.l.b16 %v789
      %v980 = vunpack.c.h.b16 %v789
      %v981 = vunpack.c.l.b16 %v790
      %v982 = vunpack.c.h.b16 %v790
      %v983 = vunpack.c.l.b16 %v791
      %v984 = vunpack.c.h.b16 %v791
      %v985 = vunpack.c.l.b16 %v792
      %v986 = vunpack.c.h.b16 %v792
      %v987 = vunpack.c.l.b16 %v793
      %v988 = vunpack.c.h.b16 %v793
      %v989 = vunpack.c.l.b16 %v794
      %v990 = vunpack.c.h.b16 %v794
      %v991 = vunpack.c.l.b16 %v795
      %v992 = vunpack.c.h.b16 %v795
      %v993 = vunpack.c.l.b16 %v796
      %v994 = vunpack.c.h.b16 %v796
      %v995 = vunpack.c.l.b16 %v797
      %v996 = vunpack.c.h.b16 %v797
      %v997 = vunpack.c.l.b16 %v798
      %v998 = vunpack.c.h.b16 %v798
      %v999 = vunpack.c.l.b16 %v799
      %v1000 = vunpack.c.h.b16 %v799
      %v1001 = vunpack.c.l.b16 %v800
      %v1002 = vunpack.c.h.b16 %v800
      %v1003 = vunpack.c.l.b16 %v801
      %v1004 = vunpack.c.h.b16 %v801
      %v1005 = vunpack.c.l.b16 %v802
      %v1006 = vunpack.c.h.b16 %v802
      %v1007 = vunpack.c.l.b16 %v803
      %v1008 = vunpack.c.h.b16 %v803
      %v1009 = vunpack.c.l.b16 %v804
      %v1010 = vunpack.c.h.b16 %v804
      %v1011 = vunpack.c.l.b16 %v805
      %v1012 = vunpack.c.h.b16 %v805
      %v1013 = vunpack.c.l.b16 %v806
      %v1014 = vunpack.c.h.b16 %v806
      %v1015 = vunpack.c.l.b16 %v807
      %v1016 = vunpack.c.h.b16 %v807
      %v1017 = vunpack.c.l.b16 %v808
      %v1018 = vunpack.c.h.b16 %v808
      %v1019 = vunpack.c.l.b16 %v809
      %v1020 = vunpack.c.h.b16 %v809
      %v1021 = vunpack.c.l.b16 %v810
      %v1022 = vunpack.c.h.b16 %v810
      %v1023 = vunpack.c.l.b16 %v811
      %v1024 = vunpack.c.h.b16 %v811
      %v1025 = vunpack.c.l.b16 %v812
      %v1026 = vunpack.c.h.b16 %v812
      %v1027 = vunpack.c.l.b16 %v813
      %v1028 = vunpack.c.h.b16 %v813
      %v1029 = vunpack.c.l.b16 %v814
      %v1030 = vunpack.c.h.b16 %v814
      %v1031 = vunpack.c.l.b16 %v815
      %v1032 = vunpack.c.h.b16 %v815
      %v1033 = vunpack.c.l.b16 %v816
      %v1034 = vunpack.c.h.b16 %v816
      %v1035 = vunpack.c.l.b16 %v817
      %v1036 = vunpack.c.h.b16 %v817
      %v1037 = vunpack.c.l.b16 %v818
      %v1038 = vunpack.c.h.b16 %v818
      %v1039 = vunpack.c.l.b16 %v819
      %v1040 = vunpack.c.h.b16 %v819
      %v1041 = vunpack.c.l.b16 %v820
      %v1042 = vunpack.c.h.b16 %v820
      %v1043 = vunpack.c.l.b16 %v821
      %v1044 = vunpack.c.h.b16 %v821
      %v1045 = vunpack.c.l.b16 %v822
      %v1046 = vunpack.c.h.b16 %v822
      %v1047 = vunpack.c.l.b16 %v823
      %v1048 = vunpack.c.h.b16 %v823
      %v1049 = vunpack.c.l.b16 %v824
      %v1050 = vunpack.c.h.b16 %v824
      %v1051 = vunpack.c.l.b16 %v825
      %v1052 = vunpack.c.h.b16 %v825
      %v1053 = vunpack.c.l.b16 %v826
      %v1054 = vunpack.c.h.b16 %v826
      %v1055 = vunpack.c.l.b16 %v827
      %v1056 = vunpack.c.h.b16 %v827
      %v1057 = vunpack.c.l.b16 %v828
      %v1058 = vunpack.c.h.b16 %v828
      %v1059 = vunpack.c.l.b16 %v829
      %v1060 = vunpack.c.h.b16 %v829
      %v1061 = vunpack.c.l.b16 %v830
      %v1062 = vunpack.c.h.b16 %v830
      %v1063 = vunpack.c.l.b16 %v831
      %v1064 = vunpack.c.h.b16 %v831
      %v1065 = vunpack.c.l.b16 %v832
      %v1066 = vunpack.c.h.b16 %v832
      %v1067 = vunpack.c.l.b16 %v833
      %v1068 = vunpack.c.h.b16 %v833
      %v1069 = vunpack.c.l.b16 %v834
      %v1070 = vunpack.c.h.b16 %v834
      %v1071 = vunpack.c.l.b16 %v835
      %v1072 = vunpack.c.h.b16 %v835
      %v1073 = vunpack.c.l.b16 %v836
      %v1074 = vunpack.c.h.b16 %v836
      %v1075 = vunpack.c.l.b16 %v837
      %v1076 = vunpack.c.h.b16 %v837
      %v1077 = vunpack.c.l.b16 %v838
      %v1078 = vunpack.c.h.b16 %v838
      %v1079 = vunpack.c.l.b16 %v839
      %v1080 = vunpack.c.h.b16 %v839
      %v1081 = vunpack.c.l.b16 %v840
      %v1082 = vunpack.c.h.b16 %v840
      %v1083 = vunpack.c.l.b16 %v841
      %v1084 = vunpack.c.h.b16 %v841
      %v1085 = vunpack.c.l.b16 %v842
      %v1086 = vunpack.c.h.b16 %v842
      %v1087 = vunpack.c.l.b16 %v843
      %v1088 = vunpack.c.h.b16 %v843
      %v1089 = vunpack.c.l.b16 %v844
      %v1090 = vunpack.c.h.b16 %v844
      %v1091 = vunpack.c.l.b16 %v845
      %v1092 = vunpack.c.h.b16 %v845
      %v1093 = vunpack.c.l.b16 %v846
      %v1094 = vunpack.c.h.b16 %v846
      %v1095 = vunpack.c.l.b16 %v847
      %v1096 = vunpack.c.h.b16 %v847
      %v1097 = vunpack.c.l.b16 %v848
      %v1098 = vunpack.c.h.b16 %v848
      %v1099 = vunpack.c.l.b16 %v849
      %v1100 = vunpack.c.h.b16 %v849
      %v1101 = vunpack.c.l.b16 %v850
      %v1102 = vunpack.c.h.b16 %v850
      %v1103 = vunpack.c.l.b16 %v851
      %v1104 = vunpack.c.h.b16 %v851
      %v1105 = vunpack.c.l.b16 %v852
      %v1106 = vunpack.c.h.b16 %v852
      %v1107 = vpack.c.b16 %v967, %v963
      %v1108 = vpack.c.b16 %v968, %v964
      %v1109 = vpack.c.b16 %v969, %v965
      %v1110 = vpack.c.b16 %v970, %v966
      %v1111 = vpack.c.b16 %v975, %v971
      %v1112 = vpack.c.b16 %v976, %v972
      %v1113 = vpack.c.b16 %v977, %v973
      %v1114 = vpack.c.b16 %v978, %v974
      %v1115 = vpack.c.b16 %v983, %v979
      %v1116 = vpack.c.b16 %v984, %v980
      %v1117 = vpack.c.b16 %v985, %v981
      %v1118 = vpack.c.b16 %v986, %v982
      %v1119 = vpack.c.b16 %v991, %v987
      %v1120 = vpack.c.b16 %v992, %v988
      %v1121 = vpack.c.b16 %v993, %v989
      %v1122 = vpack.c.b16 %v994, %v990
      %v1123 = vpack.c.b16 %v999, %v995
      %v1124 = vpack.c.b16 %v1000, %v996
      %v1125 = vpack.c.b16 %v1001, %v997
      %v1126 = vpack.c.b16 %v1002, %v998
      %v1127 = vpack.c.b16 %v1007, %v1003
      %v1128 = vpack.c.b16 %v1008, %v1004
      %v1129 = vpack.c.b16 %v1009, %v1005
      %v1130 = vpack.c.b16 %v1010, %v1006
      %v1131 = vpack.c.b16 %v1015, %v1011
      %v1132 = vpack.c.b16 %v1016, %v1012
      %v1133 = vpack.c.b16 %v1017, %v1013
      %v1134 = vpack.c.b16 %v1018, %v1014
      %v1135 = vpack.c.b16 %v1023, %v1019
      %v1136 = vpack.c.b16 %v1024, %v1020
      %v1137 = vpack.c.b16 %v1025, %v1021
      %v1138 = vpack.c.b16 %v1026, %v1022
      %v1139 = vpack.c.b16 %v1031, %v1027
      %v1140 = vpack.c.b16 %v1032, %v1028
      %v1141 = vpack.c.b16 %v1033, %v1029
      %v1142 = vpack.c.b16 %v1034, %v1030
      %v1143 = vpack.c.b16 %v1039, %v1035
      %v1144 = vpack.c.b16 %v1040, %v1036
      %v1145 = vpack.c.b16 %v1041, %v1037
      %v1146 = vpack.c.b16 %v1042, %v1038
      %v1147 = vpack.c.b16 %v1047, %v1043
      %v1148 = vpack.c.b16 %v1048, %v1044
      %v1149 = vpack.c.b16 %v1049, %v1045
      %v1150 = vpack.c.b16 %v1050, %v1046
      %v1151 = vpack.c.b16 %v1055, %v1051
      %v1152 = vpack.c.b16 %v1056, %v1052
      %v1153 = vpack.c.b16 %v1057, %v1053
      %v1154 = vpack.c.b16 %v1058, %v1054
      %v1155 = vpack.c.b16 %v1063, %v1059
      %v1156 = vpack.c.b16 %v1064, %v1060
      %v1157 = vpack.c.b16 %v1065, %v1061
      %v1158 = vpack.c.b16 %v1066, %v1062
      %v1159 = vpack.c.b16 %v1071, %v1067
      %v1160 = vpack.c.b16 %v1072, %v1068
      %v1161 = vpack.c.b16 %v1073, %v1069
      %v1162 = vpack.c.b16 %v1074, %v1070
      %v1163 = vpack.c.b16 %v1079, %v1075
      %v1164 = vpack.c.b16 %v1080, %v1076
      %v1165 = vpack.c.b16 %v1081, %v1077
      %v1166 = vpack.c.b16 %v1082, %v1078
      %v1167 = vpack.c.b16 %v1087, %v1083
      %v1168 = vpack.c.b16 %v1088, %v1084
      %v1169 = vpack.c.b16 %v1089, %v1085
      %v1170 = vpack.c.b16 %v1090, %v1086
      %v1171 = vpack.c.b16 %v1095, %v1091
      %v1172 = vpack.c.b16 %v1096, %v1092
      %v1173 = vpack.c.b16 %v1097, %v1093
      %v1174 = vpack.c.b16 %v1098, %v1094
      %v1175 = vpack.c.b16 %v1103, %v1099
      %v1176 = vpack.c.b16 %v1104, %v1100
      %v1177 = vpack.c.b16 %v1105, %v1101
      %v1178 = vpack.c.b16 %v1106, %v1102
      %vm1251 = vcmask 261120
      %v1253 = vsel %vm1251, %v888, 0
      %1255 = vmatpush.bf16.msra.mxu0 %v1135
      %1256 = vmatpush.bf16.msra.mxu0 %v1131
      %1257 = vmatpush.bf16.msra.mxu0 %v1127
      %1258 = vmatpush.bf16.msra.mxu0 %v1123
      %1259 = vmatpush.bf16.msra.mxu0 %v1119
      %1260 = vmatpush.bf16.msra.mxu0 %v1115
      %1261 = vmatpush.bf16.msra.mxu0 %v1111
      %1262 = vmatpush.bf16.msra.mxu0 %v1107
      %1263 = vmatmul.bf16.gmra.mxu0 %v864
      %v1264 = vpop.f32.mrf.mxu0
      %v1265 = vadd.f32 0.0, %v1264
      %v1266 = vpop.f32.mrf.mxu0
      %v1267 = vadd.f32 0.0, %v1266
      %1268 = vdwg.mxu0
      %1269 = vmatpush.bf16.msra.mxu0 %v1167
      %1270 = vmatpush.bf16.msra.mxu0 %v1163
      %1271 = vmatpush.bf16.msra.mxu0 %v1159
      %1272 = vmatpush.bf16.msra.mxu0 %v1155
      %1273 = vmatpush.bf16.msra.mxu0 %v1151
      %1274 = vmatpush.bf16.msra.mxu0 %v1147
      %1275 = vmatpush.bf16.msra.mxu0 %v1143
      %1276 = vmatpush.bf16.msra.mxu0 %v1139
      %1277 = vmatmul.bf16.gmra.mxu0 %v876
      %v1278 = vpop.f32.mrf.mxu0
      %v1279 = vadd.f32 %v1265, %v1278
      %v1280 = vpop.f32.mrf.mxu0
      %v1281 = vadd.f32 %v1267, %v1280
      %1282 = vdwg.mxu0
      %1283 = vmatpush.bf16.msra.mxu0 0
      %1284 = vmatpush.bf16.msra.mxu0 0
      %1285 = vmatpush.bf16.msra.mxu0 0
      %1286 = vmatpush.bf16.msra.mxu0 0
      %1287 = vmatpush.bf16.msra.mxu0 0
      %1288 = vmatpush.bf16.msra.mxu0 0
      %1289 = vmatpush.bf16.msra.mxu0 %v1175
      %1290 = vmatpush.bf16.msra.mxu0 %v1171
      %1291 = vmatmul.bf16.gmra.mxu0 %v1253
      %v1292 = vpop.f32.mrf.mxu0
      %v1293 = vadd.f32 %v1279, %v1292
      %v1294 = vpop.f32.mrf.mxu0
      %v1295 = vadd.f32 %v1281, %v1294
      %1296 = vdwg.mxu0
      %1297 = vmatpush.bf16.msra.mxu0 %v1136
      %1298 = vmatpush.bf16.msra.mxu0 %v1132
      %1299 = vmatpush.bf16.msra.mxu0 %v1128
      %1300 = vmatpush.bf16.msra.mxu0 %v1124
      %1301 = vmatpush.bf16.msra.mxu0 %v1120
      %1302 = vmatpush.bf16.msra.mxu0 %v1116
      %1303 = vmatpush.bf16.msra.mxu0 %v1112
      %1304 = vmatpush.bf16.msra.mxu0 %v1108
      %1305 = vmatmul.bf16.gmra.mxu0 %v864
      %v1306 = vpop.f32.mrf.mxu0
      %v1307 = vadd.f32 0.0, %v1306
      %v1308 = vpop.f32.mrf.mxu0
      %v1309 = vadd.f32 0.0, %v1308
      %1310 = vdwg.mxu0
      %1311 = vmatpush.bf16.msra.mxu0 %v1168
      %1312 = vmatpush.bf16.msra.mxu0 %v1164
      %1313 = vmatpush.bf16.msra.mxu0 %v1160
      %1314 = vmatpush.bf16.msra.mxu0 %v1156
      %1315 = vmatpush.bf16.msra.mxu0 %v1152
      %1316 = vmatpush.bf16.msra.mxu0 %v1148
      %1317 = vmatpush.bf16.msra.mxu0 %v1144
      %1318 = vmatpush.bf16.msra.mxu0 %v1140
      %1319 = vmatmul.bf16.gmra.mxu0 %v876
      %v1320 = vpop.f32.mrf.mxu0
      %v1321 = vadd.f32 %v1307, %v1320
      %v1322 = vpop.f32.mrf.mxu0
      %v1323 = vadd.f32 %v1309, %v1322
      %1324 = vdwg.mxu0
      %1325 = vmatpush.bf16.msra.mxu0 0
      %1326 = vmatpush.bf16.msra.mxu0 0
      %1327 = vmatpush.bf16.msra.mxu0 0
      %1328 = vmatpush.bf16.msra.mxu0 0
      %1329 = vmatpush.bf16.msra.mxu0 0
      %1330 = vmatpush.bf16.msra.mxu0 0
      %1331 = vmatpush.bf16.msra.mxu0 %v1176
      %1332 = vmatpush.bf16.msra.mxu0 %v1172
      %1333 = vmatmul.bf16.gmra.mxu0 %v1253
      %v1334 = vpop.f32.mrf.mxu0
      %v1335 = vadd.f32 %v1321, %v1334
      %v1336 = vpop.f32.mrf.mxu0
      %v1337 = vadd.f32 %v1323, %v1336
      %1338 = vdwg.mxu0
      %1339 = vmatpush.bf16.msra.mxu0 %v1137
      %1340 = vmatpush.bf16.msra.mxu0 %v1133
      %1341 = vmatpush.bf16.msra.mxu0 %v1129
      %1342 = vmatpush.bf16.msra.mxu0 %v1125
      %1343 = vmatpush.bf16.msra.mxu0 %v1121
      %1344 = vmatpush.bf16.msra.mxu0 %v1117
      %1345 = vmatpush.bf16.msra.mxu0 %v1113
      %1346 = vmatpush.bf16.msra.mxu0 %v1109
      %1347 = vmatmul.bf16.gmra.mxu0 %v864
      %v1348 = vpop.f32.mrf.mxu0
      %v1349 = vadd.f32 0.0, %v1348
      %v1350 = vpop.f32.mrf.mxu0
      %v1351 = vadd.f32 0.0, %v1350
      %1352 = vdwg.mxu0
      %1353 = vmatpush.bf16.msra.mxu0 %v1169
      %1354 = vmatpush.bf16.msra.mxu0 %v1165
      %1355 = vmatpush.bf16.msra.mxu0 %v1161
      %1356 = vmatpush.bf16.msra.mxu0 %v1157
      %1357 = vmatpush.bf16.msra.mxu0 %v1153
      %1358 = vmatpush.bf16.msra.mxu0 %v1149
      %1359 = vmatpush.bf16.msra.mxu0 %v1145
      %1360 = vmatpush.bf16.msra.mxu0 %v1141
      %1361 = vmatmul.bf16.gmra.mxu0 %v876
      %v1362 = vpop.f32.mrf.mxu0
      %v1363 = vadd.f32 %v1349, %v1362
      %v1364 = vpop.f32.mrf.mxu0
      %v1365 = vadd.f32 %v1351, %v1364
      %1366 = vdwg.mxu0
      %1367 = vmatpush.bf16.msra.mxu0 0
      %1368 = vmatpush.bf16.msra.mxu0 0
      %1369 = vmatpush.bf16.msra.mxu0 0
      %1370 = vmatpush.bf16.msra.mxu0 0
      %1371 = vmatpush.bf16.msra.mxu0 0
      %1372 = vmatpush.bf16.msra.mxu0 0
      %1373 = vmatpush.bf16.msra.mxu0 %v1177
      %1374 = vmatpush.bf16.msra.mxu0 %v1173
      %1375 = vmatmul.bf16.gmra.mxu0 %v1253
      %v1376 = vpop.f32.mrf.mxu0
      %v1377 = vadd.f32 %v1363, %v1376
      %v1378 = vpop.f32.mrf.mxu0
      %v1379 = vadd.f32 %v1365, %v1378
      %1380 = vdwg.mxu0
      %1381 = vmatpush.bf16.msra.mxu0 %v1138
      %1382 = vmatpush.bf16.msra.mxu0 %v1134
      %1383 = vmatpush.bf16.msra.mxu0 %v1130
      %1384 = vmatpush.bf16.msra.mxu0 %v1126
      %1385 = vmatpush.bf16.msra.mxu0 %v1122
      %1386 = vmatpush.bf16.msra.mxu0 %v1118
      %1387 = vmatpush.bf16.msra.mxu0 %v1114
      %1388 = vmatpush.bf16.msra.mxu0 %v1110
      %1389 = vmatmul.bf16.gmra.mxu0 %v864
      %v1390 = vpop.f32.mrf.mxu0
      %v1391 = vadd.f32 0.0, %v1390
      %v1392 = vpop.f32.mrf.mxu0
      %v1393 = vadd.f32 0.0, %v1392
      %1394 = vdwg.mxu0
      %1395 = vmatpush.bf16.msra.mxu0 %v1170
      %1396 = vmatpush.bf16.msra.mxu0 %v1166
      %1397 = vmatpush.bf16.msra.mxu0 %v1162
      %1398 = vmatpush.bf16.msra.mxu0 %v1158
      %1399 = vmatpush.bf16.msra.mxu0 %v1154
      %1400 = vmatpush.bf16.msra.mxu0 %v1150
      %1401 = vmatpush.bf16.msra.mxu0 %v1146
      %1402 = vmatpush.bf16.msra.mxu0 %v1142
      %1403 = vmatmul.bf16.gmra.mxu0 %v876
      %v1404 = vpop.f32.mrf.mxu0
      %v1405 = vadd.f32 %v1391, %v1404
      %v1406 = vpop.f32.mrf.mxu0
      %v1407 = vadd.f32 %v1393, %v1406
      %1408 = vdwg.mxu0
      %1409 = vmatpush.bf16.msra.mxu0 0
      %1410 = vmatpush.bf16.msra.mxu0 0
      %1411 = vmatpush.bf16.msra.mxu0 0
      %1412 = vmatpush.bf16.msra.mxu0 0
      %1413 = vmatpush.bf16.msra.mxu0 0
      %1414 = vmatpush.bf16.msra.mxu0 0
      %1415 = vmatpush.bf16.msra.mxu0 %v1178
      %1416 = vmatpush.bf16.msra.mxu0 %v1174
      %1417 = vmatmul.bf16.gmra.mxu0 %v1253
      %v1418 = vpop.f32.mrf.mxu0
      %v1419 = vadd.f32 %v1405, %v1418
      %v1420 = vpop.f32.mrf.mxu0
      %v1421 = vadd.f32 %v1407, %v1420
      %1422 = vdwg.mxu0
      %v1495 = vunpack.c.l.b16 %v708
      %v1496 = vunpack.c.h.b16 %v708
      %v1497 = vunpack.c.l.b16 %v709
      %v1498 = vunpack.c.h.b16 %v709
      %v1499 = vunpack.c.l.b16 %v710
      %v1500 = vunpack.c.h.b16 %v710
      %v1501 = vunpack.c.l.b16 %v711
      %v1502 = vunpack.c.h.b16 %v711
      %v1503 = vunpack.c.l.b16 %v712
      %v1504 = vunpack.c.h.b16 %v712
      %v1505 = vunpack.c.l.b16 %v713
      %v1506 = vunpack.c.h.b16 %v713
      %v1507 = vunpack.c.l.b16 %v714
      %v1508 = vunpack.c.h.b16 %v714
      %v1509 = vunpack.c.l.b16 %v715
      %v1510 = vunpack.c.h.b16 %v715
      %v1511 = vunpack.c.l.b16 %v716
      %v1512 = vunpack.c.h.b16 %v716
      %v1513 = vunpack.c.l.b16 %v717
      %v1514 = vunpack.c.h.b16 %v717
      %v1515 = vunpack.c.l.b16 %v718
      %v1516 = vunpack.c.h.b16 %v718
      %v1517 = vunpack.c.l.b16 %v719
      %v1518 = vunpack.c.h.b16 %v719
      %v1519 = vunpack.c.l.b16 %v720
      %v1520 = vunpack.c.h.b16 %v720
      %v1521 = vunpack.c.l.b16 %v721
      %v1522 = vunpack.c.h.b16 %v721
      %v1523 = vunpack.c.l.b16 %v722
      %v1524 = vunpack.c.h.b16 %v722
      %v1525 = vunpack.c.l.b16 %v723
      %v1526 = vunpack.c.h.b16 %v723
      %v1527 = vunpack.c.l.b16 %v724
      %v1528 = vunpack.c.h.b16 %v724
      %v1529 = vunpack.c.l.b16 %v725
      %v1530 = vunpack.c.h.b16 %v725
      %v1531 = vunpack.c.l.b16 %v726
      %v1532 = vunpack.c.h.b16 %v726
      %v1533 = vunpack.c.l.b16 %v727
      %v1534 = vunpack.c.h.b16 %v727
      %v1535 = vunpack.c.l.b16 %v728
      %v1536 = vunpack.c.h.b16 %v728
      %v1537 = vunpack.c.l.b16 %v729
      %v1538 = vunpack.c.h.b16 %v729
      %v1539 = vunpack.c.l.b16 %v730
      %v1540 = vunpack.c.h.b16 %v730
      %v1541 = vunpack.c.l.b16 %v731
      %v1542 = vunpack.c.h.b16 %v731
      %v1543 = vunpack.c.l.b16 %v732
      %v1544 = vunpack.c.h.b16 %v732
      %v1545 = vunpack.c.l.b16 %v733
      %v1546 = vunpack.c.h.b16 %v733
      %v1547 = vunpack.c.l.b16 %v734
      %v1548 = vunpack.c.h.b16 %v734
      %v1549 = vunpack.c.l.b16 %v735
      %v1550 = vunpack.c.h.b16 %v735
      %v1551 = vunpack.c.l.b16 %v736
      %v1552 = vunpack.c.h.b16 %v736
      %v1553 = vunpack.c.l.b16 %v737
      %v1554 = vunpack.c.h.b16 %v737
      %v1555 = vunpack.c.l.b16 %v738
      %v1556 = vunpack.c.h.b16 %v738
      %v1557 = vunpack.c.l.b16 %v739
      %v1558 = vunpack.c.h.b16 %v739
      %v1559 = vunpack.c.l.b16 %v740
      %v1560 = vunpack.c.h.b16 %v740
      %v1561 = vunpack.c.l.b16 %v741
      %v1562 = vunpack.c.h.b16 %v741
      %v1563 = vunpack.c.l.b16 %v742
      %v1564 = vunpack.c.h.b16 %v742
      %v1565 = vunpack.c.l.b16 %v743
      %v1566 = vunpack.c.h.b16 %v743
      %v1567 = vunpack.c.l.b16 %v744
      %v1568 = vunpack.c.h.b16 %v744
      %v1569 = vunpack.c.l.b16 %v745
      %v1570 = vunpack.c.h.b16 %v745
      %v1571 = vunpack.c.l.b16 %v746
      %v1572 = vunpack.c.h.b16 %v746
      %v1573 = vunpack.c.l.b16 %v747
      %v1574 = vunpack.c.h.b16 %v747
      %v1575 = vunpack.c.l.b16 %v748
      %v1576 = vunpack.c.h.b16 %v748
      %v1577 = vunpack.c.l.b16 %v749
      %v1578 = vunpack.c.h.b16 %v749
      %v1579 = vunpack.c.l.b16 %v750
      %v1580 = vunpack.c.h.b16 %v750
      %v1581 = vunpack.c.l.b16 %v751
      %v1582 = vunpack.c.h.b16 %v751
      %v1583 = vunpack.c.l.b16 %v752
      %v1584 = vunpack.c.h.b16 %v752
      %v1585 = vunpack.c.l.b16 %v753
      %v1586 = vunpack.c.h.b16 %v753
      %v1587 = vunpack.c.l.b16 %v754
      %v1588 = vunpack.c.h.b16 %v754
      %v1589 = vunpack.c.l.b16 %v755
      %v1590 = vunpack.c.h.b16 %v755
      %v1591 = vunpack.c.l.b16 %v756
      %v1592 = vunpack.c.h.b16 %v756
      %v1593 = vunpack.c.l.b16 %v757
      %v1594 = vunpack.c.h.b16 %v757
      %v1595 = vunpack.c.l.b16 %v758
      %v1596 = vunpack.c.h.b16 %v758
      %v1597 = vunpack.c.l.b16 %v759
      %v1598 = vunpack.c.h.b16 %v759
      %v1599 = vunpack.c.l.b16 %v760
      %v1600 = vunpack.c.h.b16 %v760
      %v1601 = vunpack.c.l.b16 %v761
      %v1602 = vunpack.c.h.b16 %v761
      %v1603 = vunpack.c.l.b16 %v762
      %v1604 = vunpack.c.h.b16 %v762
      %v1605 = vunpack.c.l.b16 %v763
      %v1606 = vunpack.c.h.b16 %v763
      %v1607 = vunpack.c.l.b16 %v764
      %v1608 = vunpack.c.h.b16 %v764
      %v1609 = vunpack.c.l.b16 %v765
      %v1610 = vunpack.c.h.b16 %v765
      %v1611 = vunpack.c.l.b16 %v766
      %v1612 = vunpack.c.h.b16 %v766
      %v1613 = vunpack.c.l.b16 %v767
      %v1614 = vunpack.c.h.b16 %v767
      %v1615 = vunpack.c.l.b16 %v768
      %v1616 = vunpack.c.h.b16 %v768
      %v1617 = vunpack.c.l.b16 %v769
      %v1618 = vunpack.c.h.b16 %v769
      %v1619 = vunpack.c.l.b16 %v770
      %v1620 = vunpack.c.h.b16 %v770
      %v1621 = vunpack.c.l.b16 %v771
      %v1622 = vunpack.c.h.b16 %v771
      %v1623 = vunpack.c.l.b16 %v772
      %v1624 = vunpack.c.h.b16 %v772
      %v1625 = vunpack.c.l.b16 %v773
      %v1626 = vunpack.c.h.b16 %v773
      %v1627 = vunpack.c.l.b16 %v774
      %v1628 = vunpack.c.h.b16 %v774
      %v1629 = vunpack.c.l.b16 %v775
      %v1630 = vunpack.c.h.b16 %v775
      %v1631 = vunpack.c.l.b16 %v776
      %v1632 = vunpack.c.h.b16 %v776
      %v1633 = vunpack.c.l.b16 %v777
      %v1634 = vunpack.c.h.b16 %v777
      %v1635 = vunpack.c.l.b16 %v778
      %v1636 = vunpack.c.h.b16 %v778
      %v1637 = vunpack.c.l.b16 %v779
      %v1638 = vunpack.c.h.b16 %v779
      %v1639 = vpack.c.b16 %v1499, %v1495
      %v1640 = vpack.c.b16 %v1500, %v1496
      %v1641 = vpack.c.b16 %v1501, %v1497
      %v1642 = vpack.c.b16 %v1502, %v1498
      %v1643 = vpack.c.b16 %v1507, %v1503
      %v1644 = vpack.c.b16 %v1508, %v1504
      %v1645 = vpack.c.b16 %v1509, %v1505
      %v1646 = vpack.c.b16 %v1510, %v1506
      %v1647 = vpack.c.b16 %v1515, %v1511
      %v1648 = vpack.c.b16 %v1516, %v1512
      %v1649 = vpack.c.b16 %v1517, %v1513
      %v1650 = vpack.c.b16 %v1518, %v1514
      %v1651 = vpack.c.b16 %v1523, %v1519
      %v1652 = vpack.c.b16 %v1524, %v1520
      %v1653 = vpack.c.b16 %v1525, %v1521
      %v1654 = vpack.c.b16 %v1526, %v1522
      %v1655 = vpack.c.b16 %v1531, %v1527
      %v1656 = vpack.c.b16 %v1532, %v1528
      %v1657 = vpack.c.b16 %v1533, %v1529
      %v1658 = vpack.c.b16 %v1534, %v1530
      %v1659 = vpack.c.b16 %v1539, %v1535
      %v1660 = vpack.c.b16 %v1540, %v1536
      %v1661 = vpack.c.b16 %v1541, %v1537
      %v1662 = vpack.c.b16 %v1542, %v1538
      %v1663 = vpack.c.b16 %v1547, %v1543
      %v1664 = vpack.c.b16 %v1548, %v1544
      %v1665 = vpack.c.b16 %v1549, %v1545
      %v1666 = vpack.c.b16 %v1550, %v1546
      %v1667 = vpack.c.b16 %v1555, %v1551
      %v1668 = vpack.c.b16 %v1556, %v1552
      %v1669 = vpack.c.b16 %v1557, %v1553
      %v1670 = vpack.c.b16 %v1558, %v1554
      %v1671 = vpack.c.b16 %v1563, %v1559
      %v1672 = vpack.c.b16 %v1564, %v1560
      %v1673 = vpack.c.b16 %v1565, %v1561
      %v1674 = vpack.c.b16 %v1566, %v1562
      %v1675 = vpack.c.b16 %v1571, %v1567
      %v1676 = vpack.c.b16 %v1572, %v1568
      %v1677 = vpack.c.b16 %v1573, %v1569
      %v1678 = vpack.c.b16 %v1574, %v1570
      %v1679 = vpack.c.b16 %v1579, %v1575
      %v1680 = vpack.c.b16 %v1580, %v1576
      %v1681 = vpack.c.b16 %v1581, %v1577
      %v1682 = vpack.c.b16 %v1582, %v1578
      %v1683 = vpack.c.b16 %v1587, %v1583
      %v1684 = vpack.c.b16 %v1588, %v1584
      %v1685 = vpack.c.b16 %v1589, %v1585
      %v1686 = vpack.c.b16 %v1590, %v1586
      %v1687 = vpack.c.b16 %v1595, %v1591
      %v1688 = vpack.c.b16 %v1596, %v1592
      %v1689 = vpack.c.b16 %v1597, %v1593
      %v1690 = vpack.c.b16 %v1598, %v1594
      %v1691 = vpack.c.b16 %v1603, %v1599
      %v1692 = vpack.c.b16 %v1604, %v1600
      %v1693 = vpack.c.b16 %v1605, %v1601
      %v1694 = vpack.c.b16 %v1606, %v1602
      %v1695 = vpack.c.b16 %v1611, %v1607
      %v1696 = vpack.c.b16 %v1612, %v1608
      %v1697 = vpack.c.b16 %v1613, %v1609
      %v1698 = vpack.c.b16 %v1614, %v1610
      %v1699 = vpack.c.b16 %v1619, %v1615
      %v1700 = vpack.c.b16 %v1620, %v1616
      %v1701 = vpack.c.b16 %v1621, %v1617
      %v1702 = vpack.c.b16 %v1622, %v1618
      %v1703 = vpack.c.b16 %v1627, %v1623
      %v1704 = vpack.c.b16 %v1628, %v1624
      %v1705 = vpack.c.b16 %v1629, %v1625
      %v1706 = vpack.c.b16 %v1630, %v1626
      %v1707 = vpack.c.b16 %v1635, %v1631
      %v1708 = vpack.c.b16 %v1636, %v1632
      %v1709 = vpack.c.b16 %v1637, %v1633
      %v1710 = vpack.c.b16 %v1638, %v1634
      %v1783 = vsel %vm1251, %v704, 0
      %1785 = vmatpush.bf16.msra.mxu0 %v1667
      %1786 = vmatpush.bf16.msra.mxu0 %v1663
      %1787 = vmatpush.bf16.msra.mxu0 %v1659
      %1788 = vmatpush.bf16.msra.mxu0 %v1655
      %1789 = vmatpush.bf16.msra.mxu0 %v1651
      %1790 = vmatpush.bf16.msra.mxu0 %v1647
      %1791 = vmatpush.bf16.msra.mxu0 %v1643
      %1792 = vmatpush.bf16.msra.mxu0 %v1639
      %1793 = vmatmul.bf16.gmra.mxu0 %v702
      %v1794 = vpop.f32.mrf.mxu0
      %v1795 = vadd.f32 %v1293, %v1794
      %v1796 = vpop.f32.mrf.mxu0
      %v1797 = vadd.f32 %v1295, %v1796
      %1798 = vdwg.mxu0
      %1799 = vmatpush.bf16.msra.mxu0 %v1699
      %1800 = vmatpush.bf16.msra.mxu0 %v1695
      %1801 = vmatpush.bf16.msra.mxu0 %v1691
      %1802 = vmatpush.bf16.msra.mxu0 %v1687
      %1803 = vmatpush.bf16.msra.mxu0 %v1683
      %1804 = vmatpush.bf16.msra.mxu0 %v1679
      %1805 = vmatpush.bf16.msra.mxu0 %v1675
      %1806 = vmatpush.bf16.msra.mxu0 %v1671
      %1807 = vmatmul.bf16.gmra.mxu0 %v703
      %v1808 = vpop.f32.mrf.mxu0
      %v1809 = vadd.f32 %v1795, %v1808
      %v1810 = vpop.f32.mrf.mxu0
      %v1811 = vadd.f32 %v1797, %v1810
      %1812 = vdwg.mxu0
      %1813 = vmatpush.bf16.msra.mxu0 0
      %1814 = vmatpush.bf16.msra.mxu0 0
      %1815 = vmatpush.bf16.msra.mxu0 0
      %1816 = vmatpush.bf16.msra.mxu0 0
      %1817 = vmatpush.bf16.msra.mxu0 0
      %1818 = vmatpush.bf16.msra.mxu0 0
      %1819 = vmatpush.bf16.msra.mxu0 %v1707
      %1820 = vmatpush.bf16.msra.mxu0 %v1703
      %1821 = vmatmul.bf16.gmra.mxu0 %v1783
      %v1822 = vpop.f32.mrf.mxu0
      %v1823 = vadd.f32 %v1809, %v1822
      %v1824 = vpop.f32.mrf.mxu0
      %v1825 = vadd.f32 %v1811, %v1824
      %1826 = vdwg.mxu0
      %1827 = vmatpush.bf16.msra.mxu0 %v1668
      %1828 = vmatpush.bf16.msra.mxu0 %v1664
      %1829 = vmatpush.bf16.msra.mxu0 %v1660
      %1830 = vmatpush.bf16.msra.mxu0 %v1656
      %1831 = vmatpush.bf16.msra.mxu0 %v1652
      %1832 = vmatpush.bf16.msra.mxu0 %v1648
      %1833 = vmatpush.bf16.msra.mxu0 %v1644
      %1834 = vmatpush.bf16.msra.mxu0 %v1640
      %1835 = vmatmul.bf16.gmra.mxu0 %v702
      %v1836 = vpop.f32.mrf.mxu0
      %v1837 = vadd.f32 %v1335, %v1836
      %v1838 = vpop.f32.mrf.mxu0
      %v1839 = vadd.f32 %v1337, %v1838
      %1840 = vdwg.mxu0
      %1841 = vmatpush.bf16.msra.mxu0 %v1700
      %1842 = vmatpush.bf16.msra.mxu0 %v1696
      %1843 = vmatpush.bf16.msra.mxu0 %v1692
      %1844 = vmatpush.bf16.msra.mxu0 %v1688
      %1845 = vmatpush.bf16.msra.mxu0 %v1684
      %1846 = vmatpush.bf16.msra.mxu0 %v1680
      %1847 = vmatpush.bf16.msra.mxu0 %v1676
      %1848 = vmatpush.bf16.msra.mxu0 %v1672
      %1849 = vmatmul.bf16.gmra.mxu0 %v703
      %v1850 = vpop.f32.mrf.mxu0
      %v1851 = vadd.f32 %v1837, %v1850
      %v1852 = vpop.f32.mrf.mxu0
      %v1853 = vadd.f32 %v1839, %v1852
      %1854 = vdwg.mxu0
      %1855 = vmatpush.bf16.msra.mxu0 0
      %1856 = vmatpush.bf16.msra.mxu0 0
      %1857 = vmatpush.bf16.msra.mxu0 0
      %1858 = vmatpush.bf16.msra.mxu0 0
      %1859 = vmatpush.bf16.msra.mxu0 0
      %1860 = vmatpush.bf16.msra.mxu0 0
      %1861 = vmatpush.bf16.msra.mxu0 %v1708
      %1862 = vmatpush.bf16.msra.mxu0 %v1704
      %1863 = vmatmul.bf16.gmra.mxu0 %v1783
      %v1864 = vpop.f32.mrf.mxu0
      %v1865 = vadd.f32 %v1851, %v1864
      %v1866 = vpop.f32.mrf.mxu0
      %v1867 = vadd.f32 %v1853, %v1866
      %1868 = vdwg.mxu0
      %1869 = vmatpush.bf16.msra.mxu0 %v1669
      %1870 = vmatpush.bf16.msra.mxu0 %v1665
      %1871 = vmatpush.bf16.msra.mxu0 %v1661
      %1872 = vmatpush.bf16.msra.mxu0 %v1657
      %1873 = vmatpush.bf16.msra.mxu0 %v1653
      %1874 = vmatpush.bf16.msra.mxu0 %v1649
      %1875 = vmatpush.bf16.msra.mxu0 %v1645
      %1876 = vmatpush.bf16.msra.mxu0 %v1641
      %1877 = vmatmul.bf16.gmra.mxu0 %v702
      %v1878 = vpop.f32.mrf.mxu0
      %v1879 = vadd.f32 %v1377, %v1878
      %v1880 = vpop.f32.mrf.mxu0
      %v1881 = vadd.f32 %v1379, %v1880
      %1882 = vdwg.mxu0
      %1883 = vmatpush.bf16.msra.mxu0 %v1701
      %1884 = vmatpush.bf16.msra.mxu0 %v1697
      %1885 = vmatpush.bf16.msra.mxu0 %v1693
      %1886 = vmatpush.bf16.msra.mxu0 %v1689
      %1887 = vmatpush.bf16.msra.mxu0 %v1685
      %1888 = vmatpush.bf16.msra.mxu0 %v1681
      %1889 = vmatpush.bf16.msra.mxu0 %v1677
      %1890 = vmatpush.bf16.msra.mxu0 %v1673
      %1891 = vmatmul.bf16.gmra.mxu0 %v703
      %v1892 = vpop.f32.mrf.mxu0
      %v1893 = vadd.f32 %v1879, %v1892
      %v1894 = vpop.f32.mrf.mxu0
      %v1895 = vadd.f32 %v1881, %v1894
      %1896 = vdwg.mxu0
      %1897 = vmatpush.bf16.msra.mxu0 0
      %1898 = vmatpush.bf16.msra.mxu0 0
      %1899 = vmatpush.bf16.msra.mxu0 0
      %1900 = vmatpush.bf16.msra.mxu0 0
      %1901 = vmatpush.bf16.msra.mxu0 0
      %1902 = vmatpush.bf16.msra.mxu0 0
      %1903 = vmatpush.bf16.msra.mxu0 %v1709
      %1904 = vmatpush.bf16.msra.mxu0 %v1705
      %1905 = vmatmul.bf16.gmra.mxu0 %v1783
      %v1906 = vpop.f32.mrf.mxu0
      %v1907 = vadd.f32 %v1893, %v1906
      %v1908 = vpop.f32.mrf.mxu0
      %v1909 = vadd.f32 %v1895, %v1908
      %1910 = vdwg.mxu0
      %1911 = vmatpush.bf16.msra.mxu0 %v1670
      %1912 = vmatpush.bf16.msra.mxu0 %v1666
      %1913 = vmatpush.bf16.msra.mxu0 %v1662
      %1914 = vmatpush.bf16.msra.mxu0 %v1658
      %1915 = vmatpush.bf16.msra.mxu0 %v1654
      %1916 = vmatpush.bf16.msra.mxu0 %v1650
      %1917 = vmatpush.bf16.msra.mxu0 %v1646
      %1918 = vmatpush.bf16.msra.mxu0 %v1642
      %1919 = vmatmul.bf16.gmra.mxu0 %v702
      %v1920 = vpop.f32.mrf.mxu0
      %v1921 = vadd.f32 %v1419, %v1920
      %v1922 = vpop.f32.mrf.mxu0
      %v1923 = vadd.f32 %v1421, %v1922
      %1924 = vdwg.mxu0
      %1925 = vmatpush.bf16.msra.mxu0 %v1702
      %1926 = vmatpush.bf16.msra.mxu0 %v1698
      %1927 = vmatpush.bf16.msra.mxu0 %v1694
      %1928 = vmatpush.bf16.msra.mxu0 %v1690
      %1929 = vmatpush.bf16.msra.mxu0 %v1686
      %1930 = vmatpush.bf16.msra.mxu0 %v1682
      %1931 = vmatpush.bf16.msra.mxu0 %v1678
      %1932 = vmatpush.bf16.msra.mxu0 %v1674
      %1933 = vmatmul.bf16.gmra.mxu0 %v703
      %v1934 = vpop.f32.mrf.mxu0
      %v1935 = vadd.f32 %v1921, %v1934
      %v1936 = vpop.f32.mrf.mxu0
      %v1937 = vadd.f32 %v1923, %v1936
      %1938 = vdwg.mxu0
      %1939 = vmatpush.bf16.msra.mxu0 0
      %1940 = vmatpush.bf16.msra.mxu0 0
      %1941 = vmatpush.bf16.msra.mxu0 0
      %1942 = vmatpush.bf16.msra.mxu0 0
      %1943 = vmatpush.bf16.msra.mxu0 0
      %1944 = vmatpush.bf16.msra.mxu0 0
      %1945 = vmatpush.bf16.msra.mxu0 %v1710
      %1946 = vmatpush.bf16.msra.mxu0 %v1706
      %1947 = vmatmul.bf16.gmra.mxu0 %v1783
      %v1948 = vpop.f32.mrf.mxu0
      %v1949 = vadd.f32 %v1935, %v1948
      %v1950 = vpop.f32.mrf.mxu0
      %v1951 = vadd.f32 %v1937, %v1950
      %1952 = vdwg.mxu0
      %s1953 = scalar_lea.vmem %s3, 1152
      %v1954 = vld [vmem:[%s1953] sm:$0xff]
      %v1955 = vld [vmem:[%s1953 + $0x8] sm:$0xff]
      %v1956 = vld [vmem:[%s1953 + $0x10] sm:$0xff]
      %v1957 = vld [vmem:[%s1953 + $0x18] sm:$0xff]
      %v1958 = vld [vmem:[%s1953 + $0x20] sm:$0xff]
      %v1959 = vld [vmem:[%s1953 + $0x28] sm:$0xff]
      %v1960 = vld [vmem:[%s1953 + $0x30] sm:$0xff]
      %v1961 = vld [vmem:[%s1953 + $0x38] sm:$0xff]
      %v1962 = vld [vmem:[%s1953 + $0x40] sm:$0xff]
      %v1963 = vld [vmem:[%s1953 + $0x48] sm:$0xff]
      %v1964 = vld [vmem:[%s1953 + $0x50] sm:$0xff]
      %v1965 = vld [vmem:[%s1953 + $0x58] sm:$0xff]
      %v1966 = vld [vmem:[%s1953 + $0x60] sm:$0xff]
      %v1967 = vld [vmem:[%s1953 + $0x68] sm:$0xff]
      %v1968 = vld [vmem:[%s1953 + $0x70] sm:$0xff]
      %v1969 = vld [vmem:[%s1953 + $0x78] sm:$0xff]
      %v1970 = vld [vmem:[%s1953 + $0x80] sm:$0xff]
      %v1971 = vld [vmem:[%s1953 + $0x88] sm:$0xff]
      %v1972 = vld [vmem:[%s1953 + $0x90] sm:$0xff]
      %v1973 = vld [vmem:[%s1953 + $0x98] sm:$0xff]
      %v1974 = vld [vmem:[%s1953 + $0xa0] sm:$0xff]
      %v1975 = vld [vmem:[%s1953 + $0xa8] sm:$0xff]
      %v1976 = vld [vmem:[%s1953 + $0xb0] sm:$0xff]
      %v1977 = vld [vmem:[%s1953 + $0xb8] sm:$0xff]
      %v1978 = vld [vmem:[%s1953 + $0xc0] sm:$0xff]
      %v1979 = vld [vmem:[%s1953 + $0xc8] sm:$0xff]
      %v1980 = vld [vmem:[%s1953 + $0xd0] sm:$0xff]
      %v1981 = vld [vmem:[%s1953 + $0xd8] sm:$0xff]
      %v1982 = vld [vmem:[%s1953 + $0xe0] sm:$0xff]
      %v1983 = vld [vmem:[%s1953 + $0xe8] sm:$0xff]
      %v1984 = vld [vmem:[%s1953 + $0xf0] sm:$0xff]
      %v1985 = vld [vmem:[%s1953 + $0xf8] sm:$0xff]
      %v1986 = vld [vmem:[%s1953 + $0x100] sm:$0xff]
      %v1987 = vld [vmem:[%s1953 + $0x108] sm:$0xff]
      %v1988 = vld [vmem:[%s1953 + $0x110] sm:$0xff]
      %v1989 = vld [vmem:[%s1953 + $0x118] sm:$0xff]
      %v1990 = vld [vmem:[%s1953 + $0x120] sm:$0xff]
      %v1991 = vld [vmem:[%s1953 + $0x128] sm:$0xff]
      %v1992 = vld [vmem:[%s1953 + $0x130] sm:$0xff]
      %v1993 = vld [vmem:[%s1953 + $0x138] sm:$0xff]
      %v1994 = vld [vmem:[%s1953 + $0x140] sm:$0xff]
      %v1995 = vld [vmem:[%s1953 + $0x148] sm:$0xff]
      %v1996 = vld [vmem:[%s1953 + $0x150] sm:$0xff]
      %v1997 = vld [vmem:[%s1953 + $0x158] sm:$0xff]
      %v1998 = vld [vmem:[%s1953 + $0x160] sm:$0xff]
      %v1999 = vld [vmem:[%s1953 + $0x168] sm:$0xff]
      %v2000 = vld [vmem:[%s1953 + $0x170] sm:$0xff]
      %v2001 = vld [vmem:[%s1953 + $0x178] sm:$0xff]
      %v2002 = vld [vmem:[%s1953 + $0x180] sm:$0xff]
      %v2003 = vld [vmem:[%s1953 + $0x188] sm:$0xff]
      %v2004 = vld [vmem:[%s1953 + $0x190] sm:$0xff]
      %v2005 = vld [vmem:[%s1953 + $0x198] sm:$0xff]
      %v2006 = vld [vmem:[%s1953 + $0x1a0] sm:$0xff]
      %v2007 = vld [vmem:[%s1953 + $0x1a8] sm:$0xff]
      %v2008 = vld [vmem:[%s1953 + $0x1b0] sm:$0xff]
      %v2009 = vld [vmem:[%s1953 + $0x1b8] sm:$0xff]
      %v2010 = vld [vmem:[%s1953 + $0x1c0] sm:$0xff]
      %v2011 = vld [vmem:[%s1953 + $0x1c8] sm:$0xff]
      %v2012 = vld [vmem:[%s1953 + $0x1d0] sm:$0xff]
      %v2013 = vld [vmem:[%s1953 + $0x1d8] sm:$0xff]
      %v2014 = vld [vmem:[%s1953 + $0x1e0] sm:$0xff]
      %v2015 = vld [vmem:[%s1953 + $0x1e8] sm:$0xff]
      %v2016 = vld [vmem:[%s1953 + $0x1f0] sm:$0xff]
      %v2017 = vld [vmem:[%s1953 + $0x1f8] sm:$0xff]
      %v2018 = vld [vmem:[%s1953 + $0x200] sm:$0xff]
      %v2019 = vld [vmem:[%s1953 + $0x208] sm:$0xff]
      %v2020 = vld [vmem:[%s1953 + $0x210] sm:$0xff]
      %v2021 = vld [vmem:[%s1953 + $0x218] sm:$0xff]
      %v2022 = vld [vmem:[%s1953 + $0x220] sm:$0xff]
      %v2023 = vld [vmem:[%s1953 + $0x228] sm:$0xff]
      %v2024 = vld [vmem:[%s1953 + $0x230] sm:$0xff]
      %v2025 = vld [vmem:[%s1953 + $0x238] sm:$0xff]
      %v2032 = vrot.slane %v702, 1
      %v2033 = vrot.slane %v705, 1
      %v2034 = vsel %vm548, %v2032, %v2033
      %v2035 = vrot.slane %v703, 1
      %v2036 = vrot.slane %v706, 1
      %v2037 = vsel %vm548, %v2035, %v2036
      %v2038 = vrot.slane %v704, 1
      %v2039 = vrot.slane %v707, 1
      %v2040 = vsel %vm548, %v2038, %v2039
      %v2115 = vunpack.c.l.b16 %v1954
      %v2116 = vunpack.c.h.b16 %v1954
      %v2117 = vunpack.c.l.b16 %v1955
      %v2118 = vunpack.c.h.b16 %v1955
      %v2119 = vunpack.c.l.b16 %v1956
      %v2120 = vunpack.c.h.b16 %v1956
      %v2121 = vunpack.c.l.b16 %v1957
      %v2122 = vunpack.c.h.b16 %v1957
      %v2123 = vunpack.c.l.b16 %v1958
      %v2124 = vunpack.c.h.b16 %v1958
      %v2125 = vunpack.c.l.b16 %v1959
      %v2126 = vunpack.c.h.b16 %v1959
      %v2127 = vunpack.c.l.b16 %v1960
      %v2128 = vunpack.c.h.b16 %v1960
      %v2129 = vunpack.c.l.b16 %v1961
      %v2130 = vunpack.c.h.b16 %v1961
      %v2131 = vunpack.c.l.b16 %v1962
      %v2132 = vunpack.c.h.b16 %v1962
      %v2133 = vunpack.c.l.b16 %v1963
      %v2134 = vunpack.c.h.b16 %v1963
      %v2135 = vunpack.c.l.b16 %v1964
      %v2136 = vunpack.c.h.b16 %v1964
      %v2137 = vunpack.c.l.b16 %v1965
      %v2138 = vunpack.c.h.b16 %v1965
      %v2139 = vunpack.c.l.b16 %v1966
      %v2140 = vunpack.c.h.b16 %v1966
      %v2141 = vunpack.c.l.b16 %v1967
      %v2142 = vunpack.c.h.b16 %v1967
      %v2143 = vunpack.c.l.b16 %v1968
      %v2144 = vunpack.c.h.b16 %v1968
      %v2145 = vunpack.c.l.b16 %v1969
      %v2146 = vunpack.c.h.b16 %v1969
      %v2147 = vunpack.c.l.b16 %v1970
      %v2148 = vunpack.c.h.b16 %v1970
      %v2149 = vunpack.c.l.b16 %v1971
      %v2150 = vunpack.c.h.b16 %v1971
      %v2151 = vunpack.c.l.b16 %v1972
      %v2152 = vunpack.c.h.b16 %v1972
      %v2153 = vunpack.c.l.b16 %v1973
      %v2154 = vunpack.c.h.b16 %v1973
      %v2155 = vunpack.c.l.b16 %v1974
      %v2156 = vunpack.c.h.b16 %v1974
      %v2157 = vunpack.c.l.b16 %v1975
      %v2158 = vunpack.c.h.b16 %v1975
      %v2159 = vunpack.c.l.b16 %v1976
      %v2160 = vunpack.c.h.b16 %v1976
      %v2161 = vunpack.c.l.b16 %v1977
      %v2162 = vunpack.c.h.b16 %v1977
      %v2163 = vunpack.c.l.b16 %v1978
      %v2164 = vunpack.c.h.b16 %v1978
      %v2165 = vunpack.c.l.b16 %v1979
      %v2166 = vunpack.c.h.b16 %v1979
      %v2167 = vunpack.c.l.b16 %v1980
      %v2168 = vunpack.c.h.b16 %v1980
      %v2169 = vunpack.c.l.b16 %v1981
      %v2170 = vunpack.c.h.b16 %v1981
      %v2171 = vunpack.c.l.b16 %v1982
      %v2172 = vunpack.c.h.b16 %v1982
      %v2173 = vunpack.c.l.b16 %v1983
      %v2174 = vunpack.c.h.b16 %v1983
      %v2175 = vunpack.c.l.b16 %v1984
      %v2176 = vunpack.c.h.b16 %v1984
      %v2177 = vunpack.c.l.b16 %v1985
      %v2178 = vunpack.c.h.b16 %v1985
      %v2179 = vunpack.c.l.b16 %v1986
      %v2180 = vunpack.c.h.b16 %v1986
      %v2181 = vunpack.c.l.b16 %v1987
      %v2182 = vunpack.c.h.b16 %v1987
      %v2183 = vunpack.c.l.b16 %v1988
      %v2184 = vunpack.c.h.b16 %v1988
      %v2185 = vunpack.c.l.b16 %v1989
      %v2186 = vunpack.c.h.b16 %v1989
      %v2187 = vunpack.c.l.b16 %v1990
      %v2188 = vunpack.c.h.b16 %v1990
      %v2189 = vunpack.c.l.b16 %v1991
      %v2190 = vunpack.c.h.b16 %v1991
      %v2191 = vunpack.c.l.b16 %v1992
      %v2192 = vunpack.c.h.b16 %v1992
      %v2193 = vunpack.c.l.b16 %v1993
      %v2194 = vunpack.c.h.b16 %v1993
      %v2195 = vunpack.c.l.b16 %v1994
      %v2196 = vunpack.c.h.b16 %v1994
      %v2197 = vunpack.c.l.b16 %v1995
      %v2198 = vunpack.c.h.b16 %v1995
      %v2199 = vunpack.c.l.b16 %v1996
      %v2200 = vunpack.c.h.b16 %v1996
      %v2201 = vunpack.c.l.b16 %v1997
      %v2202 = vunpack.c.h.b16 %v1997
      %v2203 = vunpack.c.l.b16 %v1998
      %v2204 = vunpack.c.h.b16 %v1998
      %v2205 = vunpack.c.l.b16 %v1999
      %v2206 = vunpack.c.h.b16 %v1999
      %v2207 = vunpack.c.l.b16 %v2000
      %v2208 = vunpack.c.h.b16 %v2000
      %v2209 = vunpack.c.l.b16 %v2001
      %v2210 = vunpack.c.h.b16 %v2001
      %v2211 = vunpack.c.l.b16 %v2002
      %v2212 = vunpack.c.h.b16 %v2002
      %v2213 = vunpack.c.l.b16 %v2003
      %v2214 = vunpack.c.h.b16 %v2003
      %v2215 = vunpack.c.l.b16 %v2004
      %v2216 = vunpack.c.h.b16 %v2004
      %v2217 = vunpack.c.l.b16 %v2005
      %v2218 = vunpack.c.h.b16 %v2005
      %v2219 = vunpack.c.l.b16 %v2006
      %v2220 = vunpack.c.h.b16 %v2006
      %v2221 = vunpack.c.l.b16 %v2007
      %v2222 = vunpack.c.h.b16 %v2007
      %v2223 = vunpack.c.l.b16 %v2008
      %v2224 = vunpack.c.h.b16 %v2008
      %v2225 = vunpack.c.l.b16 %v2009
      %v2226 = vunpack.c.h.b16 %v2009
      %v2227 = vunpack.c.l.b16 %v2010
      %v2228 = vunpack.c.h.b16 %v2010
      %v2229 = vunpack.c.l.b16 %v2011
      %v2230 = vunpack.c.h.b16 %v2011
      %v2231 = vunpack.c.l.b16 %v2012
      %v2232 = vunpack.c.h.b16 %v2012
      %v2233 = vunpack.c.l.b16 %v2013
      %v2234 = vunpack.c.h.b16 %v2013
      %v2235 = vunpack.c.l.b16 %v2014
      %v2236 = vunpack.c.h.b16 %v2014
      %v2237 = vunpack.c.l.b16 %v2015
      %v2238 = vunpack.c.h.b16 %v2015
      %v2239 = vunpack.c.l.b16 %v2016
      %v2240 = vunpack.c.h.b16 %v2016
      %v2241 = vunpack.c.l.b16 %v2017
      %v2242 = vunpack.c.h.b16 %v2017
      %v2243 = vunpack.c.l.b16 %v2018
      %v2244 = vunpack.c.h.b16 %v2018
      %v2245 = vunpack.c.l.b16 %v2019
      %v2246 = vunpack.c.h.b16 %v2019
      %v2247 = vunpack.c.l.b16 %v2020
      %v2248 = vunpack.c.h.b16 %v2020
      %v2249 = vunpack.c.l.b16 %v2021
      %v2250 = vunpack.c.h.b16 %v2021
      %v2251 = vunpack.c.l.b16 %v2022
      %v2252 = vunpack.c.h.b16 %v2022
      %v2253 = vunpack.c.l.b16 %v2023
      %v2254 = vunpack.c.h.b16 %v2023
      %v2255 = vunpack.c.l.b16 %v2024
      %v2256 = vunpack.c.h.b16 %v2024
      %v2257 = vunpack.c.l.b16 %v2025
      %v2258 = vunpack.c.h.b16 %v2025
      %v2259 = vpack.c.b16 %v2119, %v2115
      %v2260 = vpack.c.b16 %v2120, %v2116
      %v2261 = vpack.c.b16 %v2121, %v2117
      %v2262 = vpack.c.b16 %v2122, %v2118
      %v2263 = vpack.c.b16 %v2127, %v2123
      %v2264 = vpack.c.b16 %v2128, %v2124
      %v2265 = vpack.c.b16 %v2129, %v2125
      %v2266 = vpack.c.b16 %v2130, %v2126
      %v2267 = vpack.c.b16 %v2135, %v2131
      %v2268 = vpack.c.b16 %v2136, %v2132
      %v2269 = vpack.c.b16 %v2137, %v2133
      %v2270 = vpack.c.b16 %v2138, %v2134
      %v2271 = vpack.c.b16 %v2143, %v2139
      %v2272 = vpack.c.b16 %v2144, %v2140
      %v2273 = vpack.c.b16 %v2145, %v2141
      %v2274 = vpack.c.b16 %v2146, %v2142
      %v2275 = vpack.c.b16 %v2151, %v2147
      %v2276 = vpack.c.b16 %v2152, %v2148
      %v2277 = vpack.c.b16 %v2153, %v2149
      %v2278 = vpack.c.b16 %v2154, %v2150
      %v2279 = vpack.c.b16 %v2159, %v2155
      %v2280 = vpack.c.b16 %v2160, %v2156
      %v2281 = vpack.c.b16 %v2161, %v2157
      %v2282 = vpack.c.b16 %v2162, %v2158
      %v2283 = vpack.c.b16 %v2167, %v2163
      %v2284 = vpack.c.b16 %v2168, %v2164
      %v2285 = vpack.c.b16 %v2169, %v2165
      %v2286 = vpack.c.b16 %v2170, %v2166
      %v2287 = vpack.c.b16 %v2175, %v2171
      %v2288 = vpack.c.b16 %v2176, %v2172
      %v2289 = vpack.c.b16 %v2177, %v2173
      %v2290 = vpack.c.b16 %v2178, %v2174
      %v2291 = vpack.c.b16 %v2183, %v2179
      %v2292 = vpack.c.b16 %v2184, %v2180
      %v2293 = vpack.c.b16 %v2185, %v2181
      %v2294 = vpack.c.b16 %v2186, %v2182
      %v2295 = vpack.c.b16 %v2191, %v2187
      %v2296 = vpack.c.b16 %v2192, %v2188
      %v2297 = vpack.c.b16 %v2193, %v2189
      %v2298 = vpack.c.b16 %v2194, %v2190
      %v2299 = vpack.c.b16 %v2199, %v2195
      %v2300 = vpack.c.b16 %v2200, %v2196
      %v2301 = vpack.c.b16 %v2201, %v2197
      %v2302 = vpack.c.b16 %v2202, %v2198
      %v2303 = vpack.c.b16 %v2207, %v2203
      %v2304 = vpack.c.b16 %v2208, %v2204
      %v2305 = vpack.c.b16 %v2209, %v2205
      %v2306 = vpack.c.b16 %v2210, %v2206
      %v2307 = vpack.c.b16 %v2215, %v2211
      %v2308 = vpack.c.b16 %v2216, %v2212
      %v2309 = vpack.c.b16 %v2217, %v2213
      %v2310 = vpack.c.b16 %v2218, %v2214
      %v2311 = vpack.c.b16 %v2223, %v2219
      %v2312 = vpack.c.b16 %v2224, %v2220
      %v2313 = vpack.c.b16 %v2225, %v2221
      %v2314 = vpack.c.b16 %v2226, %v2222
      %v2315 = vpack.c.b16 %v2231, %v2227
      %v2316 = vpack.c.b16 %v2232, %v2228
      %v2317 = vpack.c.b16 %v2233, %v2229
      %v2318 = vpack.c.b16 %v2234, %v2230
      %v2319 = vpack.c.b16 %v2239, %v2235
      %v2320 = vpack.c.b16 %v2240, %v2236
      %v2321 = vpack.c.b16 %v2241, %v2237
      %v2322 = vpack.c.b16 %v2242, %v2238
      %v2323 = vpack.c.b16 %v2247, %v2243
      %v2324 = vpack.c.b16 %v2248, %v2244
      %v2325 = vpack.c.b16 %v2249, %v2245
      %v2326 = vpack.c.b16 %v2250, %v2246
      %v2327 = vpack.c.b16 %v2255, %v2251
      %v2328 = vpack.c.b16 %v2256, %v2252
      %v2329 = vpack.c.b16 %v2257, %v2253
      %v2330 = vpack.c.b16 %v2258, %v2254
      %v2404 = vsel %vm1251, %v2040, 0
      %2406 = vmatpush.bf16.msra.mxu0 %v2287
      %2407 = vmatpush.bf16.msra.mxu0 %v2283
      %2408 = vmatpush.bf16.msra.mxu0 %v2279
      %2409 = vmatpush.bf16.msra.mxu0 %v2275
      %2410 = vmatpush.bf16.msra.mxu0 %v2271
      %2411 = vmatpush.bf16.msra.mxu0 %v2267
      %2412 = vmatpush.bf16.msra.mxu0 %v2263
      %2413 = vmatpush.bf16.msra.mxu0 %v2259
      %2414 = vmatmul.bf16.gmra.mxu0 %v2034
      %v2415 = vpop.f32.mrf.mxu0
      %v2416 = vadd.f32 0.0, %v2415
      %v2417 = vpop.f32.mrf.mxu0
      %v2418 = vadd.f32 0.0, %v2417
      %2419 = vdwg.mxu0
      %2420 = vmatpush.bf16.msra.mxu0 %v2319
      %2421 = vmatpush.bf16.msra.mxu0 %v2315
      %2422 = vmatpush.bf16.msra.mxu0 %v2311
      %2423 = vmatpush.bf16.msra.mxu0 %v2307
      %2424 = vmatpush.bf16.msra.mxu0 %v2303
      %2425 = vmatpush.bf16.msra.mxu0 %v2299
      %2426 = vmatpush.bf16.msra.mxu0 %v2295
      %2427 = vmatpush.bf16.msra.mxu0 %v2291
      %2428 = vmatmul.bf16.gmra.mxu0 %v2037
      %v2429 = vpop.f32.mrf.mxu0
      %v2430 = vadd.f32 %v2416, %v2429
      %v2431 = vpop.f32.mrf.mxu0
      %v2432 = vadd.f32 %v2418, %v2431
      %2433 = vdwg.mxu0
      %2434 = vmatpush.bf16.msra.mxu0 0
      %2435 = vmatpush.bf16.msra.mxu0 0
      %2436 = vmatpush.bf16.msra.mxu0 0
      %2437 = vmatpush.bf16.msra.mxu0 0
      %2438 = vmatpush.bf16.msra.mxu0 0
      %2439 = vmatpush.bf16.msra.mxu0 0
      %2440 = vmatpush.bf16.msra.mxu0 %v2327
      %2441 = vmatpush.bf16.msra.mxu0 %v2323
      %2442 = vmatmul.bf16.gmra.mxu0 %v2404
      %v2443 = vpop.f32.mrf.mxu0
      %v2444 = vadd.f32 %v2430, %v2443
      %v2445 = vpop.f32.mrf.mxu0
      %v2446 = vadd.f32 %v2432, %v2445
      %2447 = vdwg.mxu0
      %2448 = vmatpush.bf16.msra.mxu0 %v2288
      %2449 = vmatpush.bf16.msra.mxu0 %v2284
      %2450 = vmatpush.bf16.msra.mxu0 %v2280
      %2451 = vmatpush.bf16.msra.mxu0 %v2276
      %2452 = vmatpush.bf16.msra.mxu0 %v2272
      %2453 = vmatpush.bf16.msra.mxu0 %v2268
      %2454 = vmatpush.bf16.msra.mxu0 %v2264
      %2455 = vmatpush.bf16.msra.mxu0 %v2260
      %2456 = vmatmul.bf16.gmra.mxu0 %v2034
      %v2457 = vpop.f32.mrf.mxu0
      %v2458 = vadd.f32 0.0, %v2457
      %v2459 = vpop.f32.mrf.mxu0
      %v2460 = vadd.f32 0.0, %v2459
      %2461 = vdwg.mxu0
      %2462 = vmatpush.bf16.msra.mxu0 %v2320
      %2463 = vmatpush.bf16.msra.mxu0 %v2316
      %2464 = vmatpush.bf16.msra.mxu0 %v2312
      %2465 = vmatpush.bf16.msra.mxu0 %v2308
      %2466 = vmatpush.bf16.msra.mxu0 %v2304
      %2467 = vmatpush.bf16.msra.mxu0 %v2300
      %2468 = vmatpush.bf16.msra.mxu0 %v2296
      %2469 = vmatpush.bf16.msra.mxu0 %v2292
      %2470 = vmatmul.bf16.gmra.mxu0 %v2037
      %v2471 = vpop.f32.mrf.mxu0
      %v2472 = vadd.f32 %v2458, %v2471
      %v2473 = vpop.f32.mrf.mxu0
      %v2474 = vadd.f32 %v2460, %v2473
      %2475 = vdwg.mxu0
      %2476 = vmatpush.bf16.msra.mxu0 0
      %2477 = vmatpush.bf16.msra.mxu0 0
      %2478 = vmatpush.bf16.msra.mxu0 0
      %2479 = vmatpush.bf16.msra.mxu0 0
      %2480 = vmatpush.bf16.msra.mxu0 0
      %2481 = vmatpush.bf16.msra.mxu0 0
      %2482 = vmatpush.bf16.msra.mxu0 %v2328
      %2483 = vmatpush.bf16.msra.mxu0 %v2324
      %2484 = vmatmul.bf16.gmra.mxu0 %v2404
      %v2485 = vpop.f32.mrf.mxu0
      %v2486 = vadd.f32 %v2472, %v2485
      %v2487 = vpop.f32.mrf.mxu0
      %v2488 = vadd.f32 %v2474, %v2487
      %2489 = vdwg.mxu0
      %2490 = vmatpush.bf16.msra.mxu0 %v2289
      %2491 = vmatpush.bf16.msra.mxu0 %v2285
      %2492 = vmatpush.bf16.msra.mxu0 %v2281
      %2493 = vmatpush.bf16.msra.mxu0 %v2277
      %2494 = vmatpush.bf16.msra.mxu0 %v2273
      %2495 = vmatpush.bf16.msra.mxu0 %v2269
      %2496 = vmatpush.bf16.msra.mxu0 %v2265
      %2497 = vmatpush.bf16.msra.mxu0 %v2261
      %2498 = vmatmul.bf16.gmra.mxu0 %v2034
      %v2499 = vpop.f32.mrf.mxu0
      %v2500 = vadd.f32 0.0, %v2499
      %v2501 = vpop.f32.mrf.mxu0
      %v2502 = vadd.f32 0.0, %v2501
      %2503 = vdwg.mxu0
      %2504 = vmatpush.bf16.msra.mxu0 %v2321
      %2505 = vmatpush.bf16.msra.mxu0 %v2317
      %2506 = vmatpush.bf16.msra.mxu0 %v2313
      %2507 = vmatpush.bf16.msra.mxu0 %v2309
      %2508 = vmatpush.bf16.msra.mxu0 %v2305
      %2509 = vmatpush.bf16.msra.mxu0 %v2301
      %2510 = vmatpush.bf16.msra.mxu0 %v2297
      %2511 = vmatpush.bf16.msra.mxu0 %v2293
      %2512 = vmatmul.bf16.gmra.mxu0 %v2037
      %v2513 = vpop.f32.mrf.mxu0
      %v2514 = vadd.f32 %v2500, %v2513
      %v2515 = vpop.f32.mrf.mxu0
      %v2516 = vadd.f32 %v2502, %v2515
      %2517 = vdwg.mxu0
      %2518 = vmatpush.bf16.msra.mxu0 0
      %2519 = vmatpush.bf16.msra.mxu0 0
      %2520 = vmatpush.bf16.msra.mxu0 0
      %2521 = vmatpush.bf16.msra.mxu0 0
      %2522 = vmatpush.bf16.msra.mxu0 0
      %2523 = vmatpush.bf16.msra.mxu0 0
      %2524 = vmatpush.bf16.msra.mxu0 %v2329
      %2525 = vmatpush.bf16.msra.mxu0 %v2325
      %2526 = vmatmul.bf16.gmra.mxu0 %v2404
      %v2527 = vpop.f32.mrf.mxu0
      %v2528 = vadd.f32 %v2514, %v2527
      %v2529 = vpop.f32.mrf.mxu0
      %v2530 = vadd.f32 %v2516, %v2529
      %2531 = vdwg.mxu0
      %2532 = vmatpush.bf16.msra.mxu0 %v2290
      %2533 = vmatpush.bf16.msra.mxu0 %v2286
      %2534 = vmatpush.bf16.msra.mxu0 %v2282
      %2535 = vmatpush.bf16.msra.mxu0 %v2278
      %2536 = vmatpush.bf16.msra.mxu0 %v2274
      %2537 = vmatpush.bf16.msra.mxu0 %v2270
      %2538 = vmatpush.bf16.msra.mxu0 %v2266
      %2539 = vmatpush.bf16.msra.mxu0 %v2262
      %2540 = vmatmul.bf16.gmra.mxu0 %v2034
      %v2541 = vpop.f32.mrf.mxu0
      %v2542 = vadd.f32 0.0, %v2541
      %v2543 = vpop.f32.mrf.mxu0
      %v2544 = vadd.f32 0.0, %v2543
      %2545 = vdwg.mxu0
      %2546 = vmatpush.bf16.msra.mxu0 %v2322
      %2547 = vmatpush.bf16.msra.mxu0 %v2318
      %2548 = vmatpush.bf16.msra.mxu0 %v2314
      %2549 = vmatpush.bf16.msra.mxu0 %v2310
      %2550 = vmatpush.bf16.msra.mxu0 %v2306
      %2551 = vmatpush.bf16.msra.mxu0 %v2302
      %2552 = vmatpush.bf16.msra.mxu0 %v2298
      %2553 = vmatpush.bf16.msra.mxu0 %v2294
      %2554 = vmatmul.bf16.gmra.mxu0 %v2037
      %v2555 = vpop.f32.mrf.mxu0
      %v2556 = vadd.f32 %v2542, %v2555
      %v2557 = vpop.f32.mrf.mxu0
      %v2558 = vadd.f32 %v2544, %v2557
      %2559 = vdwg.mxu0
      %2560 = vmatpush.bf16.msra.mxu0 0
      %2561 = vmatpush.bf16.msra.mxu0 0
      %2562 = vmatpush.bf16.msra.mxu0 0
      %2563 = vmatpush.bf16.msra.mxu0 0
      %2564 = vmatpush.bf16.msra.mxu0 0
      %2565 = vmatpush.bf16.msra.mxu0 0
      %2566 = vmatpush.bf16.msra.mxu0 %v2330
      %2567 = vmatpush.bf16.msra.mxu0 %v2326
      %2568 = vmatmul.bf16.gmra.mxu0 %v2404
      %v2569 = vpop.f32.mrf.mxu0
      %v2570 = vadd.f32 %v2556, %v2569
      %v2571 = vpop.f32.mrf.mxu0
      %v2572 = vadd.f32 %v2558, %v2571
      %2573 = vdwg.mxu0
      %v2574 = vadd.f32 %v1823, %v2444
      %v2575 = vadd.f32 %v1865, %v2486
      %v2576 = vadd.f32 %v1907, %v2528
      %v2577 = vadd.f32 %v1949, %v2570
      %v2578 = vadd.f32 %v1825, %v2446
      %v2579 = vadd.f32 %v1867, %v2488
      %v2580 = vadd.f32 %v1909, %v2530
      %v2581 = vadd.f32 %v1951, %v2572
      %v2582 = vld [vmem:[%s4] sm:$0xf]
      %v2584 = vperm.slane %v2582, 0
      %v2585 = vperm.slane %v2582, 1
      %v2586 = vperm.slane %v2582, 2
      %v2587 = vperm.slane %v2582, 3
      %v2592 = vadd.f32 %v2574, %v2584
      %v2593 = vadd.f32 %v2575, %v2585
      %v2594 = vadd.f32 %v2576, %v2586
      %v2595 = vadd.f32 %v2577, %v2587
      %v2596 = vadd.f32 %v2578, %v2584
      %v2597 = vadd.f32 %v2579, %v2585
      %v2598 = vadd.f32 %v2580, %v2586
      %v2599 = vadd.f32 %v2581, %v2587
      %v2600 = vmax.f32 %v2592, 0.0
      %v2601 = vmax.f32 %v2593, 0.0
      %v2602 = vmax.f32 %v2594, 0.0
      %v2603 = vmax.f32 %v2595, 0.0
      %v2604 = vmax.f32 %v2596, 0.0
      %v2605 = vmax.f32 %v2597, 0.0
      %v2606 = vmax.f32 %v2598, 0.0
      %v2607 = vmax.f32 %v2599, 0.0
      %v2608 = vpack.c.bf16 %v2601, %v2600
      %v2609 = vpack.c.bf16 %v2603, %v2602
      %v2610 = vpack.c.bf16 %v2605, %v2604
      %v2611 = vpack.c.bf16 %v2607, %v2606
      %v2614 = vunpack.c.l.b16 %v2608
      %v2615 = vunpack.c.h.b16 %v2608
      %v2616 = vunpack.c.l.b16 %v2609
      %v2617 = vunpack.c.h.b16 %v2609
      %v2618 = vpack.c.b16 %v2614, %v2614
      %v2619 = vpack.c.b16 %v2615, %v2615
      %v2620 = vpack.c.b16 %v2616, %v2616
      %v2621 = vpack.c.b16 %v2617, %v2617
      %v2626 = vrot.slane %v2618, 1
      %v2627 = vrot.slane %v2619, 1
      %v2628 = vrot.slane %v2620, 1
      %v2629 = vrot.slane %v2621, 1
      %v2634 = vrot.slane %v2618, 2
      %v2635 = vrot.slane %v2619, 2
      %v2636 = vrot.slane %v2620, 2
      %v2637 = vrot.slane %v2621, 2
      %v2642 = vrot.slane %v2618, 3
      %v2643 = vrot.slane %v2619, 3
      %v2644 = vrot.slane %v2620, 3
      %v2645 = vrot.slane %v2621, 3
      %v2652 = vunpack.c.l.b16 %v2610
      %v2653 = vunpack.c.h.b16 %v2610
      %v2654 = vunpack.c.l.b16 %v2611
      %v2655 = vunpack.c.h.b16 %v2611
      %v2656 = vpack.c.b16 %v2652, %v2652
      %v2657 = vpack.c.b16 %v2653, %v2653
      %v2658 = vpack.c.b16 %v2654, %v2654
      %v2659 = vpack.c.b16 %v2655, %v2655
      %v2664 = vrot.slane %v2656, 1
      %v2665 = vrot.slane %v2657, 1
      %v2666 = vrot.slane %v2658, 1
      %v2667 = vrot.slane %v2659, 1
      %v2672 = vrot.slane %v2656, 2
      %v2673 = vrot.slane %v2657, 2
      %v2674 = vrot.slane %v2658, 2
      %v2675 = vrot.slane %v2659, 2
      %v2680 = vrot.slane %v2656, 3
      %v2681 = vrot.slane %v2657, 3
      %v2682 = vrot.slane %v2658, 3
      %v2683 = vrot.slane %v2659, 3
      %v2688 = vld [vmem:[%s5] sm:$0xf]
      %v2689 = vld [vmem:[%s5 + $0x4] sm:$0xf]
      %v2690 = vld [vmem:[%s5 + $0x8] sm:$0xf]
      %v2691 = vld [vmem:[%s5 + $0xc] sm:$0xf]
      %v2692 = vld [vmem:[%s5 + $0x10] sm:$0xf]
      %v2693 = vld [vmem:[%s5 + $0x14] sm:$0xf]
      %v2694 = vld [vmem:[%s5 + $0x18] sm:$0xf]
      %v2695 = vld [vmem:[%s5 + $0x1c] sm:$0xf]
      %v2696 = vld [vmem:[%s5 + $0x20] sm:$0xf]
      %v2697 = vld [vmem:[%s5 + $0x24] sm:$0xf]
      %v2698 = vld [vmem:[%s5 + $0x28] sm:$0xf]
      %v2699 = vld [vmem:[%s5 + $0x2c] sm:$0xf]
      %v2700 = vld [vmem:[%s5 + $0x30] sm:$0xf]
      %v2701 = vld [vmem:[%s5 + $0x34] sm:$0xf]
      %v2702 = vld [vmem:[%s5 + $0x38] sm:$0xf]
      %v2703 = vld [vmem:[%s5 + $0x3c] sm:$0xf]
      %v2704 = vld [vmem:[%s5 + $0x40] sm:$0xf]
      %v2705 = vld [vmem:[%s5 + $0x44] sm:$0xf]
      %v2706 = vld [vmem:[%s5 + $0x48] sm:$0xf]
      %v2707 = vld [vmem:[%s5 + $0x4c] sm:$0xf]
      %v2708 = vld [vmem:[%s5 + $0x50] sm:$0xf]
      %v2709 = vld [vmem:[%s5 + $0x54] sm:$0xf]
      %v2710 = vld [vmem:[%s5 + $0x58] sm:$0xf]
      %v2711 = vld [vmem:[%s5 + $0x5c] sm:$0xf]
      %v2712 = vld [vmem:[%s5 + $0x60] sm:$0xf]
      %v2713 = vld [vmem:[%s5 + $0x64] sm:$0xf]
      %v2714 = vld [vmem:[%s5 + $0x68] sm:$0xf]
      %v2715 = vld [vmem:[%s5 + $0x6c] sm:$0xf]
      %v2716 = vld [vmem:[%s5 + $0x70] sm:$0xf]
      %v2717 = vld [vmem:[%s5 + $0x74] sm:$0xf]
      %v2718 = vld [vmem:[%s5 + $0x78] sm:$0xf]
      %v2719 = vld [vmem:[%s5 + $0x7c] sm:$0xf]
      %v2720 = vld [vmem:[%s5 + $0x80] sm:$0xf]
      %v2721 = vld [vmem:[%s5 + $0x84] sm:$0xf]
      %v2722 = vld [vmem:[%s5 + $0x88] sm:$0xf]
      %v2723 = vld [vmem:[%s5 + $0x8c] sm:$0xf]
      %v2724 = vld [vmem:[%s5 + $0x90] sm:$0xf]
      %v2725 = vld [vmem:[%s5 + $0x94] sm:$0xf]
      %v2726 = vld [vmem:[%s5 + $0x98] sm:$0xf]
      %v2727 = vld [vmem:[%s5 + $0x9c] sm:$0xf]
      %v2728 = vld [vmem:[%s5 + $0xa0] sm:$0xf]
      %v2729 = vld [vmem:[%s5 + $0xa4] sm:$0xf]
      %v2730 = vld [vmem:[%s5 + $0xa8] sm:$0xf]
      %v2731 = vld [vmem:[%s5 + $0xac] sm:$0xf]
      %v2732 = vld [vmem:[%s5 + $0xb0] sm:$0xf]
      %v2733 = vld [vmem:[%s5 + $0xb4] sm:$0xf]
      %v2734 = vld [vmem:[%s5 + $0xb8] sm:$0xf]
      %v2735 = vld [vmem:[%s5 + $0xbc] sm:$0xf]
      %v2736 = vld [vmem:[%s5 + $0xc0] sm:$0xf]
      %v2737 = vld [vmem:[%s5 + $0xc4] sm:$0xf]
      %v2738 = vld [vmem:[%s5 + $0xc8] sm:$0xf]
      %v2739 = vld [vmem:[%s5 + $0xcc] sm:$0xf]
      %v2740 = vld [vmem:[%s5 + $0xd0] sm:$0xf]
      %v2741 = vld [vmem:[%s5 + $0xd4] sm:$0xf]
      %v2742 = vld [vmem:[%s5 + $0xd8] sm:$0xf]
      %v2743 = vld [vmem:[%s5 + $0xdc] sm:$0xf]
      %v2744 = vld [vmem:[%s5 + $0xe0] sm:$0xf]
      %v2745 = vld [vmem:[%s5 + $0xe4] sm:$0xf]
      %v2746 = vld [vmem:[%s5 + $0xe8] sm:$0xf]
      %v2747 = vld [vmem:[%s5 + $0xec] sm:$0xf]
      %v2748 = vld [vmem:[%s5 + $0xf0] sm:$0xf]
      %v2749 = vld [vmem:[%s5 + $0xf4] sm:$0xf]
      %v2750 = vld [vmem:[%s5 + $0xf8] sm:$0xf]
      %v2751 = vld [vmem:[%s5 + $0xfc] sm:$0xf]
      %v2752 = vld [vmem:[%s5 + $0x100] sm:$0xf]
      %v2753 = vld [vmem:[%s5 + $0x104] sm:$0xf]
      %v2754 = vld [vmem:[%s5 + $0x108] sm:$0xf]
      %v2755 = vld [vmem:[%s5 + $0x10c] sm:$0xf]
      %v2756 = vld [vmem:[%s5 + $0x110] sm:$0xf]
      %v2757 = vld [vmem:[%s5 + $0x114] sm:$0xf]
      %v2758 = vld [vmem:[%s5 + $0x118] sm:$0xf]
      %v2759 = vld [vmem:[%s5 + $0x11c] sm:$0xf]
      %v2760 = vld [vmem:[%s5 + $0x120] sm:$0xf]
      %v2761 = vld [vmem:[%s5 + $0x124] sm:$0xf]
      %v2762 = vld [vmem:[%s5 + $0x128] sm:$0xf]
      %v2763 = vld [vmem:[%s5 + $0x12c] sm:$0xf]
      %v2764 = vld [vmem:[%s5 + $0x130] sm:$0xf]
      %v2765 = vld [vmem:[%s5 + $0x134] sm:$0xf]
      %v2766 = vld [vmem:[%s5 + $0x138] sm:$0xf]
      %v2767 = vld [vmem:[%s5 + $0x13c] sm:$0xf]
      %v2768 = vld [vmem:[%s5 + $0x140] sm:$0xf]
      %v2769 = vld [vmem:[%s5 + $0x144] sm:$0xf]
      %v2770 = vld [vmem:[%s5 + $0x148] sm:$0xf]
      %v2771 = vld [vmem:[%s5 + $0x14c] sm:$0xf]
      %v2772 = vld [vmem:[%s5 + $0x150] sm:$0xf]
      %v2773 = vld [vmem:[%s5 + $0x154] sm:$0xf]
      %v2774 = vld [vmem:[%s5 + $0x158] sm:$0xf]
      %v2775 = vld [vmem:[%s5 + $0x15c] sm:$0xf]
      %v2776 = vld [vmem:[%s5 + $0x160] sm:$0xf]
      %v2777 = vld [vmem:[%s5 + $0x164] sm:$0xf]
      %v2778 = vld [vmem:[%s5 + $0x168] sm:$0xf]
      %v2779 = vld [vmem:[%s5 + $0x16c] sm:$0xf]
      %v2780 = vld [vmem:[%s5 + $0x170] sm:$0xf]
      %v2781 = vld [vmem:[%s5 + $0x174] sm:$0xf]
      %v2782 = vld [vmem:[%s5 + $0x178] sm:$0xf]
      %v2783 = vld [vmem:[%s5 + $0x17c] sm:$0xf]
      %v2784 = vld [vmem:[%s5 + $0x180] sm:$0xf]
      %v2785 = vld [vmem:[%s5 + $0x184] sm:$0xf]
      %v2786 = vld [vmem:[%s5 + $0x188] sm:$0xf]
      %v2787 = vld [vmem:[%s5 + $0x18c] sm:$0xf]
      %v2788 = vld [vmem:[%s5 + $0x190] sm:$0xf]
      %v2789 = vld [vmem:[%s5 + $0x194] sm:$0xf]
      %v2790 = vld [vmem:[%s5 + $0x198] sm:$0xf]
      %v2791 = vld [vmem:[%s5 + $0x19c] sm:$0xf]
      %v2792 = vld [vmem:[%s5 + $0x1a0] sm:$0xf]
      %v2793 = vld [vmem:[%s5 + $0x1a4] sm:$0xf]
      %v2794 = vld [vmem:[%s5 + $0x1a8] sm:$0xf]
      %v2795 = vld [vmem:[%s5 + $0x1ac] sm:$0xf]
      %v2796 = vld [vmem:[%s5 + $0x1b0] sm:$0xf]
      %v2797 = vld [vmem:[%s5 + $0x1b4] sm:$0xf]
      %v2798 = vld [vmem:[%s5 + $0x1b8] sm:$0xf]
      %v2799 = vld [vmem:[%s5 + $0x1bc] sm:$0xf]
      %v2800 = vld [vmem:[%s5 + $0x1c0] sm:$0xf]
      %v2801 = vld [vmem:[%s5 + $0x1c4] sm:$0xf]
      %v2802 = vld [vmem:[%s5 + $0x1c8] sm:$0xf]
      %v2803 = vld [vmem:[%s5 + $0x1cc] sm:$0xf]
      %v2804 = vld [vmem:[%s5 + $0x1d0] sm:$0xf]
      %v2805 = vld [vmem:[%s5 + $0x1d4] sm:$0xf]
      %v2806 = vld [vmem:[%s5 + $0x1d8] sm:$0xf]
      %v2807 = vld [vmem:[%s5 + $0x1dc] sm:$0xf]
      %v2808 = vld [vmem:[%s5 + $0x1e0] sm:$0xf]
      %v2809 = vld [vmem:[%s5 + $0x1e4] sm:$0xf]
      %v2810 = vld [vmem:[%s5 + $0x1e8] sm:$0xf]
      %v2811 = vld [vmem:[%s5 + $0x1ec] sm:$0xf]
      %v2812 = vld [vmem:[%s5 + $0x1f0] sm:$0xf]
      %v2813 = vld [vmem:[%s5 + $0x1f4] sm:$0xf]
      %v2814 = vld [vmem:[%s5 + $0x1f8] sm:$0xf]
      %v2815 = vld [vmem:[%s5 + $0x1fc] sm:$0xf]
      %v2816 = vld [vmem:[%s5 + $0x200] sm:$0xf]
      %v2817 = vld [vmem:[%s5 + $0x204] sm:$0xf]
      %v2818 = vld [vmem:[%s5 + $0x208] sm:$0xf]
      %v2819 = vld [vmem:[%s5 + $0x20c] sm:$0xf]
      %v2820 = vld [vmem:[%s5 + $0x210] sm:$0xf]
      %v2821 = vld [vmem:[%s5 + $0x214] sm:$0xf]
      %v2822 = vld [vmem:[%s5 + $0x218] sm:$0xf]
      %v2823 = vld [vmem:[%s5 + $0x21c] sm:$0xf]
      %v2824 = vld [vmem:[%s5 + $0x220] sm:$0xf]
      %v2825 = vld [vmem:[%s5 + $0x224] sm:$0xf]
      %v2826 = vld [vmem:[%s5 + $0x228] sm:$0xf]
      %v2827 = vld [vmem:[%s5 + $0x22c] sm:$0xf]
      %v2828 = vld [vmem:[%s5 + $0x230] sm:$0xf]
      %v2829 = vld [vmem:[%s5 + $0x234] sm:$0xf]
      %v2830 = vld [vmem:[%s5 + $0x238] sm:$0xf]
      %v2831 = vld [vmem:[%s5 + $0x23c] sm:$0xf]
      %v2832 = vld [vmem:[%s5 + $0x240] sm:$0xf]
      %v2833 = vld [vmem:[%s5 + $0x244] sm:$0xf]
      %v2834 = vld [vmem:[%s5 + $0x248] sm:$0xf]
      %v2835 = vld [vmem:[%s5 + $0x24c] sm:$0xf]
      %v2836 = vld [vmem:[%s5 + $0x250] sm:$0xf]
      %v2837 = vld [vmem:[%s5 + $0x254] sm:$0xf]
      %v2838 = vld [vmem:[%s5 + $0x258] sm:$0xf]
      %v2839 = vld [vmem:[%s5 + $0x25c] sm:$0xf]
      %v2840 = vld [vmem:[%s5 + $0x260] sm:$0xf]
      %v2841 = vld [vmem:[%s5 + $0x264] sm:$0xf]
      %v2842 = vld [vmem:[%s5 + $0x268] sm:$0xf]
      %v2843 = vld [vmem:[%s5 + $0x26c] sm:$0xf]
      %v2844 = vld [vmem:[%s5 + $0x270] sm:$0xf]
      %v2845 = vld [vmem:[%s5 + $0x274] sm:$0xf]
      %v2846 = vld [vmem:[%s5 + $0x278] sm:$0xf]
      %v2847 = vld [vmem:[%s5 + $0x27c] sm:$0xf]
      %v2848 = vld [vmem:[%s5 + $0x280] sm:$0xf]
      %v2849 = vld [vmem:[%s5 + $0x284] sm:$0xf]
      %v2850 = vld [vmem:[%s5 + $0x288] sm:$0xf]
      %v2851 = vld [vmem:[%s5 + $0x28c] sm:$0xf]
      %v2852 = vld [vmem:[%s5 + $0x290] sm:$0xf]
      %v2853 = vld [vmem:[%s5 + $0x294] sm:$0xf]
      %v2854 = vld [vmem:[%s5 + $0x298] sm:$0xf]
      %v2855 = vld [vmem:[%s5 + $0x29c] sm:$0xf]
      %v2856 = vld [vmem:[%s5 + $0x2a0] sm:$0xf]
      %v2857 = vld [vmem:[%s5 + $0x2a4] sm:$0xf]
      %v2858 = vld [vmem:[%s5 + $0x2a8] sm:$0xf]
      %v2859 = vld [vmem:[%s5 + $0x2ac] sm:$0xf]
      %v2860 = vld [vmem:[%s5 + $0x2b0] sm:$0xf]
      %v2861 = vld [vmem:[%s5 + $0x2b4] sm:$0xf]
      %v2862 = vld [vmem:[%s5 + $0x2b8] sm:$0xf]
      %v2863 = vld [vmem:[%s5 + $0x2bc] sm:$0xf]
      %v2864 = vld [vmem:[%s5 + $0x2c0] sm:$0xf]
      %v2865 = vld [vmem:[%s5 + $0x2c4] sm:$0xf]
      %v2866 = vld [vmem:[%s5 + $0x2c8] sm:$0xf]
      %v2867 = vld [vmem:[%s5 + $0x2cc] sm:$0xf]
      %v2868 = vld [vmem:[%s5 + $0x2d0] sm:$0xf]
      %v2869 = vld [vmem:[%s5 + $0x2d4] sm:$0xf]
      %v2870 = vld [vmem:[%s5 + $0x2d8] sm:$0xf]
      %v2871 = vld [vmem:[%s5 + $0x2dc] sm:$0xf]
      %v2872 = vld [vmem:[%s5 + $0x2e0] sm:$0xf]
      %v2873 = vld [vmem:[%s5 + $0x2e4] sm:$0xf]
      %v2874 = vld [vmem:[%s5 + $0x2e8] sm:$0xf]
      %v2875 = vld [vmem:[%s5 + $0x2ec] sm:$0xf]
      %v2876 = vld [vmem:[%s5 + $0x2f0] sm:$0xf]
      %v2877 = vld [vmem:[%s5 + $0x2f4] sm:$0xf]
      %v2878 = vld [vmem:[%s5 + $0x2f8] sm:$0xf]
      %v2879 = vld [vmem:[%s5 + $0x2fc] sm:$0xf]
      %v2880 = vld [vmem:[%s5 + $0x300] sm:$0xf]
      %v2881 = vld [vmem:[%s5 + $0x304] sm:$0xf]
      %v2882 = vld [vmem:[%s5 + $0x308] sm:$0xf]
      %v2883 = vld [vmem:[%s5 + $0x30c] sm:$0xf]
      %v2884 = vld [vmem:[%s5 + $0x310] sm:$0xf]
      %v2885 = vld [vmem:[%s5 + $0x314] sm:$0xf]
      %v2886 = vld [vmem:[%s5 + $0x318] sm:$0xf]
      %v2887 = vld [vmem:[%s5 + $0x31c] sm:$0xf]
      %v2888 = vld [vmem:[%s5 + $0x320] sm:$0xf]
      %v2889 = vld [vmem:[%s5 + $0x324] sm:$0xf]
      %v2890 = vld [vmem:[%s5 + $0x328] sm:$0xf]
      %v2891 = vld [vmem:[%s5 + $0x32c] sm:$0xf]
      %v2892 = vld [vmem:[%s5 + $0x330] sm:$0xf]
      %v2893 = vld [vmem:[%s5 + $0x334] sm:$0xf]
      %v2894 = vld [vmem:[%s5 + $0x338] sm:$0xf]
      %v2895 = vld [vmem:[%s5 + $0x33c] sm:$0xf]
      %v2896 = vld [vmem:[%s5 + $0x340] sm:$0xf]
      %v2897 = vld [vmem:[%s5 + $0x344] sm:$0xf]
      %v2898 = vld [vmem:[%s5 + $0x348] sm:$0xf]
      %v2899 = vld [vmem:[%s5 + $0x34c] sm:$0xf]
      %v2900 = vld [vmem:[%s5 + $0x350] sm:$0xf]
      %v2901 = vld [vmem:[%s5 + $0x354] sm:$0xf]
      %v2902 = vld [vmem:[%s5 + $0x358] sm:$0xf]
      %v2903 = vld [vmem:[%s5 + $0x35c] sm:$0xf]
      %v2904 = vld [vmem:[%s5 + $0x360] sm:$0xf]
      %v2905 = vld [vmem:[%s5 + $0x364] sm:$0xf]
      %v2906 = vld [vmem:[%s5 + $0x368] sm:$0xf]
      %v2907 = vld [vmem:[%s5 + $0x36c] sm:$0xf]
      %v2908 = vld [vmem:[%s5 + $0x370] sm:$0xf]
      %v2909 = vld [vmem:[%s5 + $0x374] sm:$0xf]
      %v2910 = vld [vmem:[%s5 + $0x378] sm:$0xf]
      %v2911 = vld [vmem:[%s5 + $0x37c] sm:$0xf]
      %v2912 = vld [vmem:[%s5 + $0x380] sm:$0xf]
      %v2913 = vld [vmem:[%s5 + $0x384] sm:$0xf]
      %v2914 = vld [vmem:[%s5 + $0x388] sm:$0xf]
      %v2915 = vld [vmem:[%s5 + $0x38c] sm:$0xf]
      %v2916 = vld [vmem:[%s5 + $0x390] sm:$0xf]
      %v2917 = vld [vmem:[%s5 + $0x394] sm:$0xf]
      %v2918 = vld [vmem:[%s5 + $0x398] sm:$0xf]
      %v2919 = vld [vmem:[%s5 + $0x39c] sm:$0xf]
      %v2920 = vld [vmem:[%s5 + $0x3a0] sm:$0xf]
      %v2921 = vld [vmem:[%s5 + $0x3a4] sm:$0xf]
      %v2922 = vld [vmem:[%s5 + $0x3a8] sm:$0xf]
      %v2923 = vld [vmem:[%s5 + $0x3ac] sm:$0xf]
      %v2924 = vld [vmem:[%s5 + $0x3b0] sm:$0xf]
      %v2925 = vld [vmem:[%s5 + $0x3b4] sm:$0xf]
      %v2926 = vld [vmem:[%s5 + $0x3b8] sm:$0xf]
      %v2927 = vld [vmem:[%s5 + $0x3bc] sm:$0xf]
      %v2928 = vld [vmem:[%s5 + $0x3c0] sm:$0xf]
      %v2929 = vld [vmem:[%s5 + $0x3c4] sm:$0xf]
      %v2930 = vld [vmem:[%s5 + $0x3c8] sm:$0xf]
      %v2931 = vld [vmem:[%s5 + $0x3cc] sm:$0xf]
      %v2932 = vld [vmem:[%s5 + $0x3d0] sm:$0xf]
      %v2933 = vld [vmem:[%s5 + $0x3d4] sm:$0xf]
      %v2934 = vld [vmem:[%s5 + $0x3d8] sm:$0xf]
      %v2935 = vld [vmem:[%s5 + $0x3dc] sm:$0xf]
      %v2936 = vld [vmem:[%s5 + $0x3e0] sm:$0xf]
      %v2937 = vld [vmem:[%s5 + $0x3e4] sm:$0xf]
      %v2938 = vld [vmem:[%s5 + $0x3e8] sm:$0xf]
      %v2939 = vld [vmem:[%s5 + $0x3ec] sm:$0xf]
      %v2940 = vld [vmem:[%s5 + $0x3f0] sm:$0xf]
      %v2941 = vld [vmem:[%s5 + $0x3f4] sm:$0xf]
      %v2942 = vld [vmem:[%s5 + $0x3f8] sm:$0xf]
      %v2943 = vld [vmem:[%s5 + $0x3fc] sm:$0xf]
      %v2944 = vld [vmem:[%s5 + $0x400] sm:$0xf]
      %v2945 = vld [vmem:[%s5 + $0x404] sm:$0xf]
      %v2946 = vld [vmem:[%s5 + $0x408] sm:$0xf]
      %v2947 = vld [vmem:[%s5 + $0x40c] sm:$0xf]
      %v2948 = vld [vmem:[%s5 + $0x410] sm:$0xf]
      %v2949 = vld [vmem:[%s5 + $0x414] sm:$0xf]
      %v2950 = vld [vmem:[%s5 + $0x418] sm:$0xf]
      %v2951 = vld [vmem:[%s5 + $0x41c] sm:$0xf]
      %v2952 = vld [vmem:[%s5 + $0x420] sm:$0xf]
      %v2953 = vld [vmem:[%s5 + $0x424] sm:$0xf]
      %v2954 = vld [vmem:[%s5 + $0x428] sm:$0xf]
      %v2955 = vld [vmem:[%s5 + $0x42c] sm:$0xf]
      %v2956 = vld [vmem:[%s5 + $0x430] sm:$0xf]
      %v2957 = vld [vmem:[%s5 + $0x434] sm:$0xf]
      %v2958 = vld [vmem:[%s5 + $0x438] sm:$0xf]
      %v2959 = vld [vmem:[%s5 + $0x43c] sm:$0xf]
      %v2960 = vld [vmem:[%s5 + $0x440] sm:$0xf]
      %v2961 = vld [vmem:[%s5 + $0x444] sm:$0xf]
      %v2962 = vld [vmem:[%s5 + $0x448] sm:$0xf]
      %v2963 = vld [vmem:[%s5 + $0x44c] sm:$0xf]
      %v2964 = vld [vmem:[%s5 + $0x450] sm:$0xf]
      %v2965 = vld [vmem:[%s5 + $0x454] sm:$0xf]
      %v2966 = vld [vmem:[%s5 + $0x458] sm:$0xf]
      %v2967 = vld [vmem:[%s5 + $0x45c] sm:$0xf]
      %v2968 = vld [vmem:[%s5 + $0x460] sm:$0xf]
      %v2969 = vld [vmem:[%s5 + $0x464] sm:$0xf]
      %v2970 = vld [vmem:[%s5 + $0x468] sm:$0xf]
      %v2971 = vld [vmem:[%s5 + $0x46c] sm:$0xf]
      %v2972 = vld [vmem:[%s5 + $0x470] sm:$0xf]
      %v2973 = vld [vmem:[%s5 + $0x474] sm:$0xf]
      %v2974 = vld [vmem:[%s5 + $0x478] sm:$0xf]
      %v2975 = vld [vmem:[%s5 + $0x47c] sm:$0xf]
      %v2976 = vld [vmem:[%s5 + $0x480] sm:$0xf]
      %v2977 = vld [vmem:[%s5 + $0x484] sm:$0xf]
      %v2978 = vld [vmem:[%s5 + $0x488] sm:$0xf]
      %v2979 = vld [vmem:[%s5 + $0x48c] sm:$0xf]
      %v2980 = vld [vmem:[%s5 + $0x490] sm:$0xf]
      %v2981 = vld [vmem:[%s5 + $0x494] sm:$0xf]
      %v2982 = vld [vmem:[%s5 + $0x498] sm:$0xf]
      %v2983 = vld [vmem:[%s5 + $0x49c] sm:$0xf]
      %v2984 = vld [vmem:[%s5 + $0x4a0] sm:$0xf]
      %v2985 = vld [vmem:[%s5 + $0x4a4] sm:$0xf]
      %v2986 = vld [vmem:[%s5 + $0x4a8] sm:$0xf]
      %v2987 = vld [vmem:[%s5 + $0x4ac] sm:$0xf]
      %v2988 = vld [vmem:[%s5 + $0x4b0] sm:$0xf]
      %v2989 = vld [vmem:[%s5 + $0x4b4] sm:$0xf]
      %v2990 = vld [vmem:[%s5 + $0x4b8] sm:$0xf]
      %v2991 = vld [vmem:[%s5 + $0x4bc] sm:$0xf]
      %v2992 = vld [vmem:[%s5 + $0x4c0] sm:$0xf]
      %v2993 = vld [vmem:[%s5 + $0x4c4] sm:$0xf]
      %v2994 = vld [vmem:[%s5 + $0x4c8] sm:$0xf]
      %v2995 = vld [vmem:[%s5 + $0x4cc] sm:$0xf]
      %v2996 = vld [vmem:[%s5 + $0x4d0] sm:$0xf]
      %v2997 = vld [vmem:[%s5 + $0x4d4] sm:$0xf]
      %v2998 = vld [vmem:[%s5 + $0x4d8] sm:$0xf]
      %v2999 = vld [vmem:[%s5 + $0x4dc] sm:$0xf]
      %v3000 = vld [vmem:[%s5 + $0x4e0] sm:$0xf]
      %v3001 = vld [vmem:[%s5 + $0x4e4] sm:$0xf]
      %v3002 = vld [vmem:[%s5 + $0x4e8] sm:$0xf]
      %v3003 = vld [vmem:[%s5 + $0x4ec] sm:$0xf]
      %v3004 = vld [vmem:[%s5 + $0x4f0] sm:$0xf]
      %v3005 = vld [vmem:[%s5 + $0x4f4] sm:$0xf]
      %v3006 = vld [vmem:[%s5 + $0x4f8] sm:$0xf]
      %v3007 = vld [vmem:[%s5 + $0x4fc] sm:$0xf]
      %v3008 = vld [vmem:[%s5 + $0x500] sm:$0xf]
      %v3009 = vld [vmem:[%s5 + $0x504] sm:$0xf]
      %v3010 = vld [vmem:[%s5 + $0x508] sm:$0xf]
      %v3011 = vld [vmem:[%s5 + $0x50c] sm:$0xf]
      %v3012 = vld [vmem:[%s5 + $0x510] sm:$0xf]
      %v3013 = vld [vmem:[%s5 + $0x514] sm:$0xf]
      %v3014 = vld [vmem:[%s5 + $0x518] sm:$0xf]
      %v3015 = vld [vmem:[%s5 + $0x51c] sm:$0xf]
      %v3016 = vld [vmem:[%s5 + $0x520] sm:$0xf]
      %v3017 = vld [vmem:[%s5 + $0x524] sm:$0xf]
      %v3018 = vld [vmem:[%s5 + $0x528] sm:$0xf]
      %v3019 = vld [vmem:[%s5 + $0x52c] sm:$0xf]
      %v3020 = vld [vmem:[%s5 + $0x530] sm:$0xf]
      %v3021 = vld [vmem:[%s5 + $0x534] sm:$0xf]
      %v3022 = vld [vmem:[%s5 + $0x538] sm:$0xf]
      %v3023 = vld [vmem:[%s5 + $0x53c] sm:$0xf]
      %v3024 = vld [vmem:[%s5 + $0x540] sm:$0xf]
      %v3025 = vld [vmem:[%s5 + $0x544] sm:$0xf]
      %v3026 = vld [vmem:[%s5 + $0x548] sm:$0xf]
      %v3027 = vld [vmem:[%s5 + $0x54c] sm:$0xf]
      %v3028 = vld [vmem:[%s5 + $0x550] sm:$0xf]
      %v3029 = vld [vmem:[%s5 + $0x554] sm:$0xf]
      %v3030 = vld [vmem:[%s5 + $0x558] sm:$0xf]
      %v3031 = vld [vmem:[%s5 + $0x55c] sm:$0xf]
      %v3032 = vld [vmem:[%s5 + $0x560] sm:$0xf]
      %v3033 = vld [vmem:[%s5 + $0x564] sm:$0xf]
      %v3034 = vld [vmem:[%s5 + $0x568] sm:$0xf]
      %v3035 = vld [vmem:[%s5 + $0x56c] sm:$0xf]
      %v3036 = vld [vmem:[%s5 + $0x570] sm:$0xf]
      %v3037 = vld [vmem:[%s5 + $0x574] sm:$0xf]
      %v3038 = vld [vmem:[%s5 + $0x578] sm:$0xf]
      %v3039 = vld [vmem:[%s5 + $0x57c] sm:$0xf]
      %v3040 = vld [vmem:[%s5 + $0x580] sm:$0xf]
      %v3041 = vld [vmem:[%s5 + $0x584] sm:$0xf]
      %v3042 = vld [vmem:[%s5 + $0x588] sm:$0xf]
      %v3043 = vld [vmem:[%s5 + $0x58c] sm:$0xf]
      %v3044 = vld [vmem:[%s5 + $0x590] sm:$0xf]
      %v3045 = vld [vmem:[%s5 + $0x594] sm:$0xf]
      %v3046 = vld [vmem:[%s5 + $0x598] sm:$0xf]
      %v3047 = vld [vmem:[%s5 + $0x59c] sm:$0xf]
      %v3048 = vld [vmem:[%s5 + $0x5a0] sm:$0xf]
      %v3049 = vld [vmem:[%s5 + $0x5a4] sm:$0xf]
      %v3050 = vld [vmem:[%s5 + $0x5a8] sm:$0xf]
      %v3051 = vld [vmem:[%s5 + $0x5ac] sm:$0xf]
      %v3052 = vld [vmem:[%s5 + $0x5b0] sm:$0xf]
      %v3053 = vld [vmem:[%s5 + $0x5b4] sm:$0xf]
      %v3054 = vld [vmem:[%s5 + $0x5b8] sm:$0xf]
      %v3055 = vld [vmem:[%s5 + $0x5bc] sm:$0xf]
      %v3056 = vld [vmem:[%s5 + $0x5c0] sm:$0xf]
      %v3057 = vld [vmem:[%s5 + $0x5c4] sm:$0xf]
      %v3058 = vld [vmem:[%s5 + $0x5c8] sm:$0xf]
      %v3059 = vld [vmem:[%s5 + $0x5cc] sm:$0xf]
      %v3060 = vld [vmem:[%s5 + $0x5d0] sm:$0xf]
      %v3061 = vld [vmem:[%s5 + $0x5d4] sm:$0xf]
      %v3062 = vld [vmem:[%s5 + $0x5d8] sm:$0xf]
      %v3063 = vld [vmem:[%s5 + $0x5dc] sm:$0xf]
      %v3064 = vld [vmem:[%s5 + $0x5e0] sm:$0xf]
      %v3065 = vld [vmem:[%s5 + $0x5e4] sm:$0xf]
      %v3066 = vld [vmem:[%s5 + $0x5e8] sm:$0xf]
      %v3067 = vld [vmem:[%s5 + $0x5ec] sm:$0xf]
      %v3068 = vld [vmem:[%s5 + $0x5f0] sm:$0xf]
      %v3069 = vld [vmem:[%s5 + $0x5f4] sm:$0xf]
      %v3070 = vld [vmem:[%s5 + $0x5f8] sm:$0xf]
      %v3071 = vld [vmem:[%s5 + $0x5fc] sm:$0xf]
      %v3072 = vld [vmem:[%s5 + $0x600] sm:$0xf]
      %v3073 = vld [vmem:[%s5 + $0x604] sm:$0xf]
      %v3074 = vld [vmem:[%s5 + $0x608] sm:$0xf]
      %v3075 = vld [vmem:[%s5 + $0x60c] sm:$0xf]
      %v3076 = vld [vmem:[%s5 + $0x610] sm:$0xf]
      %v3077 = vld [vmem:[%s5 + $0x614] sm:$0xf]
      %v3078 = vld [vmem:[%s5 + $0x618] sm:$0xf]
      %v3079 = vld [vmem:[%s5 + $0x61c] sm:$0xf]
      %v3080 = vld [vmem:[%s5 + $0x620] sm:$0xf]
      %v3081 = vld [vmem:[%s5 + $0x624] sm:$0xf]
      %v3082 = vld [vmem:[%s5 + $0x628] sm:$0xf]
      %v3083 = vld [vmem:[%s5 + $0x62c] sm:$0xf]
      %v3084 = vld [vmem:[%s5 + $0x630] sm:$0xf]
      %v3085 = vld [vmem:[%s5 + $0x634] sm:$0xf]
      %v3086 = vld [vmem:[%s5 + $0x638] sm:$0xf]
      %v3087 = vld [vmem:[%s5 + $0x63c] sm:$0xf]
      %v3088 = vld [vmem:[%s5 + $0x640] sm:$0xf]
      %v3089 = vld [vmem:[%s5 + $0x644] sm:$0xf]
      %v3090 = vld [vmem:[%s5 + $0x648] sm:$0xf]
      %v3091 = vld [vmem:[%s5 + $0x64c] sm:$0xf]
      %v3092 = vld [vmem:[%s5 + $0x650] sm:$0xf]
      %v3093 = vld [vmem:[%s5 + $0x654] sm:$0xf]
      %v3094 = vld [vmem:[%s5 + $0x658] sm:$0xf]
      %v3095 = vld [vmem:[%s5 + $0x65c] sm:$0xf]
      %v3096 = vld [vmem:[%s5 + $0x660] sm:$0xf]
      %v3097 = vld [vmem:[%s5 + $0x664] sm:$0xf]
      %v3098 = vld [vmem:[%s5 + $0x668] sm:$0xf]
      %v3099 = vld [vmem:[%s5 + $0x66c] sm:$0xf]
      %v3100 = vld [vmem:[%s5 + $0x670] sm:$0xf]
      %v3101 = vld [vmem:[%s5 + $0x674] sm:$0xf]
      %v3102 = vld [vmem:[%s5 + $0x678] sm:$0xf]
      %v3103 = vld [vmem:[%s5 + $0x67c] sm:$0xf]
      %v3104 = vld [vmem:[%s5 + $0x680] sm:$0xf]
      %v3105 = vld [vmem:[%s5 + $0x684] sm:$0xf]
      %v3106 = vld [vmem:[%s5 + $0x688] sm:$0xf]
      %v3107 = vld [vmem:[%s5 + $0x68c] sm:$0xf]
      %v3108 = vld [vmem:[%s5 + $0x690] sm:$0xf]
      %v3109 = vld [vmem:[%s5 + $0x694] sm:$0xf]
      %v3110 = vld [vmem:[%s5 + $0x698] sm:$0xf]
      %v3111 = vld [vmem:[%s5 + $0x69c] sm:$0xf]
      %v3112 = vld [vmem:[%s5 + $0x6a0] sm:$0xf]
      %v3113 = vld [vmem:[%s5 + $0x6a4] sm:$0xf]
      %v3114 = vld [vmem:[%s5 + $0x6a8] sm:$0xf]
      %v3115 = vld [vmem:[%s5 + $0x6ac] sm:$0xf]
      %v3116 = vld [vmem:[%s5 + $0x6b0] sm:$0xf]
      %v3117 = vld [vmem:[%s5 + $0x6b4] sm:$0xf]
      %v3118 = vld [vmem:[%s5 + $0x6b8] sm:$0xf]
      %v3119 = vld [vmem:[%s5 + $0x6bc] sm:$0xf]
      %v3120 = vld [vmem:[%s5 + $0x6c0] sm:$0xf]
      %v3121 = vld [vmem:[%s5 + $0x6c4] sm:$0xf]
      %v3122 = vld [vmem:[%s5 + $0x6c8] sm:$0xf]
      %v3123 = vld [vmem:[%s5 + $0x6cc] sm:$0xf]
      %v3124 = vld [vmem:[%s5 + $0x6d0] sm:$0xf]
      %v3125 = vld [vmem:[%s5 + $0x6d4] sm:$0xf]
      %v3126 = vld [vmem:[%s5 + $0x6d8] sm:$0xf]
      %v3127 = vld [vmem:[%s5 + $0x6dc] sm:$0xf]
      %v3128 = vld [vmem:[%s5 + $0x6e0] sm:$0xf]
      %v3129 = vld [vmem:[%s5 + $0x6e4] sm:$0xf]
      %v3130 = vld [vmem:[%s5 + $0x6e8] sm:$0xf]
      %v3131 = vld [vmem:[%s5 + $0x6ec] sm:$0xf]
      %v3132 = vld [vmem:[%s5 + $0x6f0] sm:$0xf]
      %v3133 = vld [vmem:[%s5 + $0x6f4] sm:$0xf]
      %v3134 = vld [vmem:[%s5 + $0x6f8] sm:$0xf]
      %v3135 = vld [vmem:[%s5 + $0x6fc] sm:$0xf]
      %v3136 = vld [vmem:[%s5 + $0x700] sm:$0xf]
      %v3137 = vld [vmem:[%s5 + $0x704] sm:$0xf]
      %v3138 = vld [vmem:[%s5 + $0x708] sm:$0xf]
      %v3139 = vld [vmem:[%s5 + $0x70c] sm:$0xf]
      %v3140 = vld [vmem:[%s5 + $0x710] sm:$0xf]
      %v3141 = vld [vmem:[%s5 + $0x714] sm:$0xf]
      %v3142 = vld [vmem:[%s5 + $0x718] sm:$0xf]
      %v3143 = vld [vmem:[%s5 + $0x71c] sm:$0xf]
      %v3144 = vld [vmem:[%s5 + $0x720] sm:$0xf]
      %v3145 = vld [vmem:[%s5 + $0x724] sm:$0xf]
      %v3146 = vld [vmem:[%s5 + $0x728] sm:$0xf]
      %v3147 = vld [vmem:[%s5 + $0x72c] sm:$0xf]
      %v3148 = vld [vmem:[%s5 + $0x730] sm:$0xf]
      %v3149 = vld [vmem:[%s5 + $0x734] sm:$0xf]
      %v3150 = vld [vmem:[%s5 + $0x738] sm:$0xf]
      %v3151 = vld [vmem:[%s5 + $0x73c] sm:$0xf]
      %v3152 = vld [vmem:[%s5 + $0x740] sm:$0xf]
      %v3153 = vld [vmem:[%s5 + $0x744] sm:$0xf]
      %v3154 = vld [vmem:[%s5 + $0x748] sm:$0xf]
      %v3155 = vld [vmem:[%s5 + $0x74c] sm:$0xf]
      %v3156 = vld [vmem:[%s5 + $0x750] sm:$0xf]
      %v3157 = vld [vmem:[%s5 + $0x754] sm:$0xf]
      %v3158 = vld [vmem:[%s5 + $0x758] sm:$0xf]
      %v3159 = vld [vmem:[%s5 + $0x75c] sm:$0xf]
      %v3160 = vld [vmem:[%s5 + $0x760] sm:$0xf]
      %v3161 = vld [vmem:[%s5 + $0x764] sm:$0xf]
      %v3162 = vld [vmem:[%s5 + $0x768] sm:$0xf]
      %v3163 = vld [vmem:[%s5 + $0x76c] sm:$0xf]
      %v3164 = vld [vmem:[%s5 + $0x770] sm:$0xf]
      %v3165 = vld [vmem:[%s5 + $0x774] sm:$0xf]
      %v3166 = vld [vmem:[%s5 + $0x778] sm:$0xf]
      %v3167 = vld [vmem:[%s5 + $0x77c] sm:$0xf]
      %v3168 = vld [vmem:[%s5 + $0x780] sm:$0xf]
      %v3169 = vld [vmem:[%s5 + $0x784] sm:$0xf]
      %v3170 = vld [vmem:[%s5 + $0x788] sm:$0xf]
      %v3171 = vld [vmem:[%s5 + $0x78c] sm:$0xf]
      %v3172 = vld [vmem:[%s5 + $0x790] sm:$0xf]
      %v3173 = vld [vmem:[%s5 + $0x794] sm:$0xf]
      %v3174 = vld [vmem:[%s5 + $0x798] sm:$0xf]
      %v3175 = vld [vmem:[%s5 + $0x79c] sm:$0xf]
      %v3176 = vld [vmem:[%s5 + $0x7a0] sm:$0xf]
      %v3177 = vld [vmem:[%s5 + $0x7a4] sm:$0xf]
      %v3178 = vld [vmem:[%s5 + $0x7a8] sm:$0xf]
      %v3179 = vld [vmem:[%s5 + $0x7ac] sm:$0xf]
      %v3180 = vld [vmem:[%s5 + $0x7b0] sm:$0xf]
      %v3181 = vld [vmem:[%s5 + $0x7b4] sm:$0xf]
      %v3182 = vld [vmem:[%s5 + $0x7b8] sm:$0xf]
      %v3183 = vld [vmem:[%s5 + $0x7bc] sm:$0xf]
      %v3184 = vld [vmem:[%s5 + $0x7c0] sm:$0xf]
      %v3185 = vld [vmem:[%s5 + $0x7c4] sm:$0xf]
      %v3186 = vld [vmem:[%s5 + $0x7c8] sm:$0xf]
      %v3187 = vld [vmem:[%s5 + $0x7cc] sm:$0xf]
      %v3188 = vld [vmem:[%s5 + $0x7d0] sm:$0xf]
      %v3189 = vld [vmem:[%s5 + $0x7d4] sm:$0xf]
      %v3190 = vld [vmem:[%s5 + $0x7d8] sm:$0xf]
      %v3191 = vld [vmem:[%s5 + $0x7dc] sm:$0xf]
      %v3192 = vld [vmem:[%s5 + $0x7e0] sm:$0xf]
      %v3193 = vld [vmem:[%s5 + $0x7e4] sm:$0xf]
      %v3194 = vld [vmem:[%s5 + $0x7e8] sm:$0xf]
      %v3195 = vld [vmem:[%s5 + $0x7ec] sm:$0xf]
      %v3196 = vld [vmem:[%s5 + $0x7f0] sm:$0xf]
      %v3197 = vld [vmem:[%s5 + $0x7f4] sm:$0xf]
      %v3198 = vld [vmem:[%s5 + $0x7f8] sm:$0xf]
      %v3199 = vld [vmem:[%s5 + $0x7fc] sm:$0xf]
      %v3200 = vld [vmem:[%s6] sm:$0x1]
      %v3713 = vunpack.c.l.b16 %v2688
      %v3714 = vunpack.c.l.b16 %v2689
      %v3715 = vunpack.c.l.b16 %v2690
      %v3716 = vunpack.c.l.b16 %v2691
      %v3717 = vunpack.c.l.b16 %v2692
      %v3718 = vunpack.c.l.b16 %v2693
      %v3719 = vunpack.c.l.b16 %v2694
      %v3720 = vunpack.c.l.b16 %v2695
      %v3721 = vunpack.c.l.b16 %v2696
      %v3722 = vunpack.c.l.b16 %v2697
      %v3723 = vunpack.c.l.b16 %v2698
      %v3724 = vunpack.c.l.b16 %v2699
      %v3725 = vunpack.c.l.b16 %v2700
      %v3726 = vunpack.c.l.b16 %v2701
      %v3727 = vunpack.c.l.b16 %v2702
      %v3728 = vunpack.c.l.b16 %v2703
      %v3729 = vunpack.c.l.b16 %v2704
      %v3730 = vunpack.c.l.b16 %v2705
      %v3731 = vunpack.c.l.b16 %v2706
      %v3732 = vunpack.c.l.b16 %v2707
      %v3733 = vunpack.c.l.b16 %v2708
      %v3734 = vunpack.c.l.b16 %v2709
      %v3735 = vunpack.c.l.b16 %v2710
      %v3736 = vunpack.c.l.b16 %v2711
      %v3737 = vunpack.c.l.b16 %v2712
      %v3738 = vunpack.c.l.b16 %v2713
      %v3739 = vunpack.c.l.b16 %v2714
      %v3740 = vunpack.c.l.b16 %v2715
      %v3741 = vunpack.c.l.b16 %v2716
      %v3742 = vunpack.c.l.b16 %v2717
      %v3743 = vunpack.c.l.b16 %v2718
      %v3744 = vunpack.c.l.b16 %v2719
      %v3745 = vunpack.c.l.b16 %v2720
      %v3746 = vunpack.c.l.b16 %v2721
      %v3747 = vunpack.c.l.b16 %v2722
      %v3748 = vunpack.c.l.b16 %v2723
      %v3749 = vunpack.c.l.b16 %v2724
      %v3750 = vunpack.c.l.b16 %v2725
      %v3751 = vunpack.c.l.b16 %v2726
      %v3752 = vunpack.c.l.b16 %v2727
      %v3753 = vunpack.c.l.b16 %v2728
      %v3754 = vunpack.c.l.b16 %v2729
      %v3755 = vunpack.c.l.b16 %v2730
      %v3756 = vunpack.c.l.b16 %v2731
      %v3757 = vunpack.c.l.b16 %v2732
      %v3758 = vunpack.c.l.b16 %v2733
      %v3759 = vunpack.c.l.b16 %v2734
      %v3760 = vunpack.c.l.b16 %v2735
      %v3761 = vunpack.c.l.b16 %v2736
      %v3762 = vunpack.c.l.b16 %v2737
      %v3763 = vunpack.c.l.b16 %v2738
      %v3764 = vunpack.c.l.b16 %v2739
      %v3765 = vunpack.c.l.b16 %v2740
      %v3766 = vunpack.c.l.b16 %v2741
      %v3767 = vunpack.c.l.b16 %v2742
      %v3768 = vunpack.c.l.b16 %v2743
      %v3769 = vunpack.c.l.b16 %v2744
      %v3770 = vunpack.c.l.b16 %v2745
      %v3771 = vunpack.c.l.b16 %v2746
      %v3772 = vunpack.c.l.b16 %v2747
      %v3773 = vunpack.c.l.b16 %v2748
      %v3774 = vunpack.c.l.b16 %v2749
      %v3775 = vunpack.c.l.b16 %v2750
      %v3776 = vunpack.c.l.b16 %v2751
      %v3777 = vunpack.c.l.b16 %v2752
      %v3778 = vunpack.c.l.b16 %v2753
      %v3779 = vunpack.c.l.b16 %v2754
      %v3780 = vunpack.c.l.b16 %v2755
      %v3781 = vunpack.c.l.b16 %v2756
      %v3782 = vunpack.c.l.b16 %v2757
      %v3783 = vunpack.c.l.b16 %v2758
      %v3784 = vunpack.c.l.b16 %v2759
      %v3785 = vunpack.c.l.b16 %v2760
      %v3786 = vunpack.c.l.b16 %v2761
      %v3787 = vunpack.c.l.b16 %v2762
      %v3788 = vunpack.c.l.b16 %v2763
      %v3789 = vunpack.c.l.b16 %v2764
      %v3790 = vunpack.c.l.b16 %v2765
      %v3791 = vunpack.c.l.b16 %v2766
      %v3792 = vunpack.c.l.b16 %v2767
      %v3793 = vunpack.c.l.b16 %v2768
      %v3794 = vunpack.c.l.b16 %v2769
      %v3795 = vunpack.c.l.b16 %v2770
      %v3796 = vunpack.c.l.b16 %v2771
      %v3797 = vunpack.c.l.b16 %v2772
      %v3798 = vunpack.c.l.b16 %v2773
      %v3799 = vunpack.c.l.b16 %v2774
      %v3800 = vunpack.c.l.b16 %v2775
      %v3801 = vunpack.c.l.b16 %v2776
      %v3802 = vunpack.c.l.b16 %v2777
      %v3803 = vunpack.c.l.b16 %v2778
      %v3804 = vunpack.c.l.b16 %v2779
      %v3805 = vunpack.c.l.b16 %v2780
      %v3806 = vunpack.c.l.b16 %v2781
      %v3807 = vunpack.c.l.b16 %v2782
      %v3808 = vunpack.c.l.b16 %v2783
      %v3809 = vunpack.c.l.b16 %v2784
      %v3810 = vunpack.c.l.b16 %v2785
      %v3811 = vunpack.c.l.b16 %v2786
      %v3812 = vunpack.c.l.b16 %v2787
      %v3813 = vunpack.c.l.b16 %v2788
      %v3814 = vunpack.c.l.b16 %v2789
      %v3815 = vunpack.c.l.b16 %v2790
      %v3816 = vunpack.c.l.b16 %v2791
      %v3817 = vunpack.c.l.b16 %v2792
      %v3818 = vunpack.c.l.b16 %v2793
      %v3819 = vunpack.c.l.b16 %v2794
      %v3820 = vunpack.c.l.b16 %v2795
      %v3821 = vunpack.c.l.b16 %v2796
      %v3822 = vunpack.c.l.b16 %v2797
      %v3823 = vunpack.c.l.b16 %v2798
      %v3824 = vunpack.c.l.b16 %v2799
      %v3825 = vunpack.c.l.b16 %v2800
      %v3826 = vunpack.c.l.b16 %v2801
      %v3827 = vunpack.c.l.b16 %v2802
      %v3828 = vunpack.c.l.b16 %v2803
      %v3829 = vunpack.c.l.b16 %v2804
      %v3830 = vunpack.c.l.b16 %v2805
      %v3831 = vunpack.c.l.b16 %v2806
      %v3832 = vunpack.c.l.b16 %v2807
      %v3833 = vunpack.c.l.b16 %v2808
      %v3834 = vunpack.c.l.b16 %v2809
      %v3835 = vunpack.c.l.b16 %v2810
      %v3836 = vunpack.c.l.b16 %v2811
      %v3837 = vunpack.c.l.b16 %v2812
      %v3838 = vunpack.c.l.b16 %v2813
      %v3839 = vunpack.c.l.b16 %v2814
      %v3840 = vunpack.c.l.b16 %v2815
      %v3841 = vunpack.c.l.b16 %v2816
      %v3842 = vunpack.c.l.b16 %v2817
      %v3843 = vunpack.c.l.b16 %v2818
      %v3844 = vunpack.c.l.b16 %v2819
      %v3845 = vunpack.c.l.b16 %v2820
      %v3846 = vunpack.c.l.b16 %v2821
      %v3847 = vunpack.c.l.b16 %v2822
      %v3848 = vunpack.c.l.b16 %v2823
      %v3849 = vunpack.c.l.b16 %v2824
      %v3850 = vunpack.c.l.b16 %v2825
      %v3851 = vunpack.c.l.b16 %v2826
      %v3852 = vunpack.c.l.b16 %v2827
      %v3853 = vunpack.c.l.b16 %v2828
      %v3854 = vunpack.c.l.b16 %v2829
      %v3855 = vunpack.c.l.b16 %v2830
      %v3856 = vunpack.c.l.b16 %v2831
      %v3857 = vunpack.c.l.b16 %v2832
      %v3858 = vunpack.c.l.b16 %v2833
      %v3859 = vunpack.c.l.b16 %v2834
      %v3860 = vunpack.c.l.b16 %v2835
      %v3861 = vunpack.c.l.b16 %v2836
      %v3862 = vunpack.c.l.b16 %v2837
      %v3863 = vunpack.c.l.b16 %v2838
      %v3864 = vunpack.c.l.b16 %v2839
      %v3865 = vunpack.c.l.b16 %v2840
      %v3866 = vunpack.c.l.b16 %v2841
      %v3867 = vunpack.c.l.b16 %v2842
      %v3868 = vunpack.c.l.b16 %v2843
      %v3869 = vunpack.c.l.b16 %v2844
      %v3870 = vunpack.c.l.b16 %v2845
      %v3871 = vunpack.c.l.b16 %v2846
      %v3872 = vunpack.c.l.b16 %v2847
      %v3873 = vunpack.c.l.b16 %v2848
      %v3874 = vunpack.c.l.b16 %v2849
      %v3875 = vunpack.c.l.b16 %v2850
      %v3876 = vunpack.c.l.b16 %v2851
      %v3877 = vunpack.c.l.b16 %v2852
      %v3878 = vunpack.c.l.b16 %v2853
      %v3879 = vunpack.c.l.b16 %v2854
      %v3880 = vunpack.c.l.b16 %v2855
      %v3881 = vunpack.c.l.b16 %v2856
      %v3882 = vunpack.c.l.b16 %v2857
      %v3883 = vunpack.c.l.b16 %v2858
      %v3884 = vunpack.c.l.b16 %v2859
      %v3885 = vunpack.c.l.b16 %v2860
      %v3886 = vunpack.c.l.b16 %v2861
      %v3887 = vunpack.c.l.b16 %v2862
      %v3888 = vunpack.c.l.b16 %v2863
      %v3889 = vunpack.c.l.b16 %v2864
      %v3890 = vunpack.c.l.b16 %v2865
      %v3891 = vunpack.c.l.b16 %v2866
      %v3892 = vunpack.c.l.b16 %v2867
      %v3893 = vunpack.c.l.b16 %v2868
      %v3894 = vunpack.c.l.b16 %v2869
      %v3895 = vunpack.c.l.b16 %v2870
      %v3896 = vunpack.c.l.b16 %v2871
      %v3897 = vunpack.c.l.b16 %v2872
      %v3898 = vunpack.c.l.b16 %v2873
      %v3899 = vunpack.c.l.b16 %v2874
      %v3900 = vunpack.c.l.b16 %v2875
      %v3901 = vunpack.c.l.b16 %v2876
      %v3902 = vunpack.c.l.b16 %v2877
      %v3903 = vunpack.c.l.b16 %v2878
      %v3904 = vunpack.c.l.b16 %v2879
      %v3905 = vunpack.c.l.b16 %v2880
      %v3906 = vunpack.c.l.b16 %v2881
      %v3907 = vunpack.c.l.b16 %v2882
      %v3908 = vunpack.c.l.b16 %v2883
      %v3909 = vunpack.c.l.b16 %v2884
      %v3910 = vunpack.c.l.b16 %v2885
      %v3911 = vunpack.c.l.b16 %v2886
      %v3912 = vunpack.c.l.b16 %v2887
      %v3913 = vunpack.c.l.b16 %v2888
      %v3914 = vunpack.c.l.b16 %v2889
      %v3915 = vunpack.c.l.b16 %v2890
      %v3916 = vunpack.c.l.b16 %v2891
      %v3917 = vunpack.c.l.b16 %v2892
      %v3918 = vunpack.c.l.b16 %v2893
      %v3919 = vunpack.c.l.b16 %v2894
      %v3920 = vunpack.c.l.b16 %v2895
      %v3921 = vunpack.c.l.b16 %v2896
      %v3922 = vunpack.c.l.b16 %v2897
      %v3923 = vunpack.c.l.b16 %v2898
      %v3924 = vunpack.c.l.b16 %v2899
      %v3925 = vunpack.c.l.b16 %v2900
      %v3926 = vunpack.c.l.b16 %v2901
      %v3927 = vunpack.c.l.b16 %v2902
      %v3928 = vunpack.c.l.b16 %v2903
      %v3929 = vunpack.c.l.b16 %v2904
      %v3930 = vunpack.c.l.b16 %v2905
      %v3931 = vunpack.c.l.b16 %v2906
      %v3932 = vunpack.c.l.b16 %v2907
      %v3933 = vunpack.c.l.b16 %v2908
      %v3934 = vunpack.c.l.b16 %v2909
      %v3935 = vunpack.c.l.b16 %v2910
      %v3936 = vunpack.c.l.b16 %v2911
      %v3937 = vunpack.c.l.b16 %v2912
      %v3938 = vunpack.c.l.b16 %v2913
      %v3939 = vunpack.c.l.b16 %v2914
      %v3940 = vunpack.c.l.b16 %v2915
      %v3941 = vunpack.c.l.b16 %v2916
      %v3942 = vunpack.c.l.b16 %v2917
      %v3943 = vunpack.c.l.b16 %v2918
      %v3944 = vunpack.c.l.b16 %v2919
      %v3945 = vunpack.c.l.b16 %v2920
      %v3946 = vunpack.c.l.b16 %v2921
      %v3947 = vunpack.c.l.b16 %v2922
      %v3948 = vunpack.c.l.b16 %v2923
      %v3949 = vunpack.c.l.b16 %v2924
      %v3950 = vunpack.c.l.b16 %v2925
      %v3951 = vunpack.c.l.b16 %v2926
      %v3952 = vunpack.c.l.b16 %v2927
      %v3953 = vunpack.c.l.b16 %v2928
      %v3954 = vunpack.c.l.b16 %v2929
      %v3955 = vunpack.c.l.b16 %v2930
      %v3956 = vunpack.c.l.b16 %v2931
      %v3957 = vunpack.c.l.b16 %v2932
      %v3958 = vunpack.c.l.b16 %v2933
      %v3959 = vunpack.c.l.b16 %v2934
      %v3960 = vunpack.c.l.b16 %v2935
      %v3961 = vunpack.c.l.b16 %v2936
      %v3962 = vunpack.c.l.b16 %v2937
      %v3963 = vunpack.c.l.b16 %v2938
      %v3964 = vunpack.c.l.b16 %v2939
      %v3965 = vunpack.c.l.b16 %v2940
      %v3966 = vunpack.c.l.b16 %v2941
      %v3967 = vunpack.c.l.b16 %v2942
      %v3968 = vunpack.c.l.b16 %v2943
      %v3969 = vunpack.c.l.b16 %v2944
      %v3970 = vunpack.c.l.b16 %v2945
      %v3971 = vunpack.c.l.b16 %v2946
      %v3972 = vunpack.c.l.b16 %v2947
      %v3973 = vunpack.c.l.b16 %v2948
      %v3974 = vunpack.c.l.b16 %v2949
      %v3975 = vunpack.c.l.b16 %v2950
      %v3976 = vunpack.c.l.b16 %v2951
      %v3977 = vunpack.c.l.b16 %v2952
      %v3978 = vunpack.c.l.b16 %v2953
      %v3979 = vunpack.c.l.b16 %v2954
      %v3980 = vunpack.c.l.b16 %v2955
      %v3981 = vunpack.c.l.b16 %v2956
      %v3982 = vunpack.c.l.b16 %v2957
      %v3983 = vunpack.c.l.b16 %v2958
      %v3984 = vunpack.c.l.b16 %v2959
      %v3985 = vunpack.c.l.b16 %v2960
      %v3986 = vunpack.c.l.b16 %v2961
      %v3987 = vunpack.c.l.b16 %v2962
      %v3988 = vunpack.c.l.b16 %v2963
      %v3989 = vunpack.c.l.b16 %v2964
      %v3990 = vunpack.c.l.b16 %v2965
      %v3991 = vunpack.c.l.b16 %v2966
      %v3992 = vunpack.c.l.b16 %v2967
      %v3993 = vunpack.c.l.b16 %v2968
      %v3994 = vunpack.c.l.b16 %v2969
      %v3995 = vunpack.c.l.b16 %v2970
      %v3996 = vunpack.c.l.b16 %v2971
      %v3997 = vunpack.c.l.b16 %v2972
      %v3998 = vunpack.c.l.b16 %v2973
      %v3999 = vunpack.c.l.b16 %v2974
      %v4000 = vunpack.c.l.b16 %v2975
      %v4001 = vunpack.c.l.b16 %v2976
      %v4002 = vunpack.c.l.b16 %v2977
      %v4003 = vunpack.c.l.b16 %v2978
      %v4004 = vunpack.c.l.b16 %v2979
      %v4005 = vunpack.c.l.b16 %v2980
      %v4006 = vunpack.c.l.b16 %v2981
      %v4007 = vunpack.c.l.b16 %v2982
      %v4008 = vunpack.c.l.b16 %v2983
      %v4009 = vunpack.c.l.b16 %v2984
      %v4010 = vunpack.c.l.b16 %v2985
      %v4011 = vunpack.c.l.b16 %v2986
      %v4012 = vunpack.c.l.b16 %v2987
      %v4013 = vunpack.c.l.b16 %v2988
      %v4014 = vunpack.c.l.b16 %v2989
      %v4015 = vunpack.c.l.b16 %v2990
      %v4016 = vunpack.c.l.b16 %v2991
      %v4017 = vunpack.c.l.b16 %v2992
      %v4018 = vunpack.c.l.b16 %v2993
      %v4019 = vunpack.c.l.b16 %v2994
      %v4020 = vunpack.c.l.b16 %v2995
      %v4021 = vunpack.c.l.b16 %v2996
      %v4022 = vunpack.c.l.b16 %v2997
      %v4023 = vunpack.c.l.b16 %v2998
      %v4024 = vunpack.c.l.b16 %v2999
      %v4025 = vunpack.c.l.b16 %v3000
      %v4026 = vunpack.c.l.b16 %v3001
      %v4027 = vunpack.c.l.b16 %v3002
      %v4028 = vunpack.c.l.b16 %v3003
      %v4029 = vunpack.c.l.b16 %v3004
      %v4030 = vunpack.c.l.b16 %v3005
      %v4031 = vunpack.c.l.b16 %v3006
      %v4032 = vunpack.c.l.b16 %v3007
      %v4033 = vunpack.c.l.b16 %v3008
      %v4034 = vunpack.c.l.b16 %v3009
      %v4035 = vunpack.c.l.b16 %v3010
      %v4036 = vunpack.c.l.b16 %v3011
      %v4037 = vunpack.c.l.b16 %v3012
      %v4038 = vunpack.c.l.b16 %v3013
      %v4039 = vunpack.c.l.b16 %v3014
      %v4040 = vunpack.c.l.b16 %v3015
      %v4041 = vunpack.c.l.b16 %v3016
      %v4042 = vunpack.c.l.b16 %v3017
      %v4043 = vunpack.c.l.b16 %v3018
      %v4044 = vunpack.c.l.b16 %v3019
      %v4045 = vunpack.c.l.b16 %v3020
      %v4046 = vunpack.c.l.b16 %v3021
      %v4047 = vunpack.c.l.b16 %v3022
      %v4048 = vunpack.c.l.b16 %v3023
      %v4049 = vunpack.c.l.b16 %v3024
      %v4050 = vunpack.c.l.b16 %v3025
      %v4051 = vunpack.c.l.b16 %v3026
      %v4052 = vunpack.c.l.b16 %v3027
      %v4053 = vunpack.c.l.b16 %v3028
      %v4054 = vunpack.c.l.b16 %v3029
      %v4055 = vunpack.c.l.b16 %v3030
      %v4056 = vunpack.c.l.b16 %v3031
      %v4057 = vunpack.c.l.b16 %v3032
      %v4058 = vunpack.c.l.b16 %v3033
      %v4059 = vunpack.c.l.b16 %v3034
      %v4060 = vunpack.c.l.b16 %v3035
      %v4061 = vunpack.c.l.b16 %v3036
      %v4062 = vunpack.c.l.b16 %v3037
      %v4063 = vunpack.c.l.b16 %v3038
      %v4064 = vunpack.c.l.b16 %v3039
      %v4065 = vunpack.c.l.b16 %v3040
      %v4066 = vunpack.c.l.b16 %v3041
      %v4067 = vunpack.c.l.b16 %v3042
      %v4068 = vunpack.c.l.b16 %v3043
      %v4069 = vunpack.c.l.b16 %v3044
      %v4070 = vunpack.c.l.b16 %v3045
      %v4071 = vunpack.c.l.b16 %v3046
      %v4072 = vunpack.c.l.b16 %v3047
      %v4073 = vunpack.c.l.b16 %v3048
      %v4074 = vunpack.c.l.b16 %v3049
      %v4075 = vunpack.c.l.b16 %v3050
      %v4076 = vunpack.c.l.b16 %v3051
      %v4077 = vunpack.c.l.b16 %v3052
      %v4078 = vunpack.c.l.b16 %v3053
      %v4079 = vunpack.c.l.b16 %v3054
      %v4080 = vunpack.c.l.b16 %v3055
      %v4081 = vunpack.c.l.b16 %v3056
      %v4082 = vunpack.c.l.b16 %v3057
      %v4083 = vunpack.c.l.b16 %v3058
      %v4084 = vunpack.c.l.b16 %v3059
      %v4085 = vunpack.c.l.b16 %v3060
      %v4086 = vunpack.c.l.b16 %v3061
      %v4087 = vunpack.c.l.b16 %v3062
      %v4088 = vunpack.c.l.b16 %v3063
      %v4089 = vunpack.c.l.b16 %v3064
      %v4090 = vunpack.c.l.b16 %v3065
      %v4091 = vunpack.c.l.b16 %v3066
      %v4092 = vunpack.c.l.b16 %v3067
      %v4093 = vunpack.c.l.b16 %v3068
      %v4094 = vunpack.c.l.b16 %v3069
      %v4095 = vunpack.c.l.b16 %v3070
      %v4096 = vunpack.c.l.b16 %v3071
      %v4097 = vunpack.c.l.b16 %v3072
      %v4098 = vunpack.c.l.b16 %v3073
      %v4099 = vunpack.c.l.b16 %v3074
      %v4100 = vunpack.c.l.b16 %v3075
      %v4101 = vunpack.c.l.b16 %v3076
      %v4102 = vunpack.c.l.b16 %v3077
      %v4103 = vunpack.c.l.b16 %v3078
      %v4104 = vunpack.c.l.b16 %v3079
      %v4105 = vunpack.c.l.b16 %v3080
      %v4106 = vunpack.c.l.b16 %v3081
      %v4107 = vunpack.c.l.b16 %v3082
      %v4108 = vunpack.c.l.b16 %v3083
      %v4109 = vunpack.c.l.b16 %v3084
      %v4110 = vunpack.c.l.b16 %v3085
      %v4111 = vunpack.c.l.b16 %v3086
      %v4112 = vunpack.c.l.b16 %v3087
      %v4113 = vunpack.c.l.b16 %v3088
      %v4114 = vunpack.c.l.b16 %v3089
      %v4115 = vunpack.c.l.b16 %v3090
      %v4116 = vunpack.c.l.b16 %v3091
      %v4117 = vunpack.c.l.b16 %v3092
      %v4118 = vunpack.c.l.b16 %v3093
      %v4119 = vunpack.c.l.b16 %v3094
      %v4120 = vunpack.c.l.b16 %v3095
      %v4121 = vunpack.c.l.b16 %v3096
      %v4122 = vunpack.c.l.b16 %v3097
      %v4123 = vunpack.c.l.b16 %v3098
      %v4124 = vunpack.c.l.b16 %v3099
      %v4125 = vunpack.c.l.b16 %v3100
      %v4126 = vunpack.c.l.b16 %v3101
      %v4127 = vunpack.c.l.b16 %v3102
      %v4128 = vunpack.c.l.b16 %v3103
      %v4129 = vunpack.c.l.b16 %v3104
      %v4130 = vunpack.c.l.b16 %v3105
      %v4131 = vunpack.c.l.b16 %v3106
      %v4132 = vunpack.c.l.b16 %v3107
      %v4133 = vunpack.c.l.b16 %v3108
      %v4134 = vunpack.c.l.b16 %v3109
      %v4135 = vunpack.c.l.b16 %v3110
      %v4136 = vunpack.c.l.b16 %v3111
      %v4137 = vunpack.c.l.b16 %v3112
      %v4138 = vunpack.c.l.b16 %v3113
      %v4139 = vunpack.c.l.b16 %v3114
      %v4140 = vunpack.c.l.b16 %v3115
      %v4141 = vunpack.c.l.b16 %v3116
      %v4142 = vunpack.c.l.b16 %v3117
      %v4143 = vunpack.c.l.b16 %v3118
      %v4144 = vunpack.c.l.b16 %v3119
      %v4145 = vunpack.c.l.b16 %v3120
      %v4146 = vunpack.c.l.b16 %v3121
      %v4147 = vunpack.c.l.b16 %v3122
      %v4148 = vunpack.c.l.b16 %v3123
      %v4149 = vunpack.c.l.b16 %v3124
      %v4150 = vunpack.c.l.b16 %v3125
      %v4151 = vunpack.c.l.b16 %v3126
      %v4152 = vunpack.c.l.b16 %v3127
      %v4153 = vunpack.c.l.b16 %v3128
      %v4154 = vunpack.c.l.b16 %v3129
      %v4155 = vunpack.c.l.b16 %v3130
      %v4156 = vunpack.c.l.b16 %v3131
      %v4157 = vunpack.c.l.b16 %v3132
      %v4158 = vunpack.c.l.b16 %v3133
      %v4159 = vunpack.c.l.b16 %v3134
      %v4160 = vunpack.c.l.b16 %v3135
      %v4161 = vunpack.c.l.b16 %v3136
      %v4162 = vunpack.c.l.b16 %v3137
      %v4163 = vunpack.c.l.b16 %v3138
      %v4164 = vunpack.c.l.b16 %v3139
      %v4165 = vunpack.c.l.b16 %v3140
      %v4166 = vunpack.c.l.b16 %v3141
      %v4167 = vunpack.c.l.b16 %v3142
      %v4168 = vunpack.c.l.b16 %v3143
      %v4169 = vunpack.c.l.b16 %v3144
      %v4170 = vunpack.c.l.b16 %v3145
      %v4171 = vunpack.c.l.b16 %v3146
      %v4172 = vunpack.c.l.b16 %v3147
      %v4173 = vunpack.c.l.b16 %v3148
      %v4174 = vunpack.c.l.b16 %v3149
      %v4175 = vunpack.c.l.b16 %v3150
      %v4176 = vunpack.c.l.b16 %v3151
      %v4177 = vunpack.c.l.b16 %v3152
      %v4178 = vunpack.c.l.b16 %v3153
      %v4179 = vunpack.c.l.b16 %v3154
      %v4180 = vunpack.c.l.b16 %v3155
      %v4181 = vunpack.c.l.b16 %v3156
      %v4182 = vunpack.c.l.b16 %v3157
      %v4183 = vunpack.c.l.b16 %v3158
      %v4184 = vunpack.c.l.b16 %v3159
      %v4185 = vunpack.c.l.b16 %v3160
      %v4186 = vunpack.c.l.b16 %v3161
      %v4187 = vunpack.c.l.b16 %v3162
      %v4188 = vunpack.c.l.b16 %v3163
      %v4189 = vunpack.c.l.b16 %v3164
      %v4190 = vunpack.c.l.b16 %v3165
      %v4191 = vunpack.c.l.b16 %v3166
      %v4192 = vunpack.c.l.b16 %v3167
      %v4193 = vunpack.c.l.b16 %v3168
      %v4194 = vunpack.c.l.b16 %v3169
      %v4195 = vunpack.c.l.b16 %v3170
      %v4196 = vunpack.c.l.b16 %v3171
      %v4197 = vunpack.c.l.b16 %v3172
      %v4198 = vunpack.c.l.b16 %v3173
      %v4199 = vunpack.c.l.b16 %v3174
      %v4200 = vunpack.c.l.b16 %v3175
      %v4201 = vunpack.c.l.b16 %v3176
      %v4202 = vunpack.c.l.b16 %v3177
      %v4203 = vunpack.c.l.b16 %v3178
      %v4204 = vunpack.c.l.b16 %v3179
      %v4205 = vunpack.c.l.b16 %v3180
      %v4206 = vunpack.c.l.b16 %v3181
      %v4207 = vunpack.c.l.b16 %v3182
      %v4208 = vunpack.c.l.b16 %v3183
      %v4209 = vunpack.c.l.b16 %v3184
      %v4210 = vunpack.c.l.b16 %v3185
      %v4211 = vunpack.c.l.b16 %v3186
      %v4212 = vunpack.c.l.b16 %v3187
      %v4213 = vunpack.c.l.b16 %v3188
      %v4214 = vunpack.c.l.b16 %v3189
      %v4215 = vunpack.c.l.b16 %v3190
      %v4216 = vunpack.c.l.b16 %v3191
      %v4217 = vunpack.c.l.b16 %v3192
      %v4218 = vunpack.c.l.b16 %v3193
      %v4219 = vunpack.c.l.b16 %v3194
      %v4220 = vunpack.c.l.b16 %v3195
      %v4221 = vunpack.c.l.b16 %v3196
      %v4222 = vunpack.c.l.b16 %v3197
      %v4223 = vunpack.c.l.b16 %v3198
      %v4224 = vunpack.c.l.b16 %v3199
      %v4225 = vpack.c.b16 %v3714, %v3713
      %v4226 = vpack.c.b16 %v3716, %v3715
      %v4227 = vpack.c.b16 %v3718, %v3717
      %v4228 = vpack.c.b16 %v3720, %v3719
      %v4229 = vpack.c.b16 %v3722, %v3721
      %v4230 = vpack.c.b16 %v3724, %v3723
      %v4231 = vpack.c.b16 %v3726, %v3725
      %v4232 = vpack.c.b16 %v3728, %v3727
      %v4233 = vpack.c.b16 %v3730, %v3729
      %v4234 = vpack.c.b16 %v3732, %v3731
      %v4235 = vpack.c.b16 %v3734, %v3733
      %v4236 = vpack.c.b16 %v3736, %v3735
      %v4237 = vpack.c.b16 %v3738, %v3737
      %v4238 = vpack.c.b16 %v3740, %v3739
      %v4239 = vpack.c.b16 %v3742, %v3741
      %v4240 = vpack.c.b16 %v3744, %v3743
      %v4241 = vpack.c.b16 %v3746, %v3745
      %v4242 = vpack.c.b16 %v3748, %v3747
      %v4243 = vpack.c.b16 %v3750, %v3749
      %v4244 = vpack.c.b16 %v3752, %v3751
      %v4245 = vpack.c.b16 %v3754, %v3753
      %v4246 = vpack.c.b16 %v3756, %v3755
      %v4247 = vpack.c.b16 %v3758, %v3757
      %v4248 = vpack.c.b16 %v3760, %v3759
      %v4249 = vpack.c.b16 %v3762, %v3761
      %v4250 = vpack.c.b16 %v3764, %v3763
      %v4251 = vpack.c.b16 %v3766, %v3765
      %v4252 = vpack.c.b16 %v3768, %v3767
      %v4253 = vpack.c.b16 %v3770, %v3769
      %v4254 = vpack.c.b16 %v3772, %v3771
      %v4255 = vpack.c.b16 %v3774, %v3773
      %v4256 = vpack.c.b16 %v3776, %v3775
      %v4257 = vpack.c.b16 %v3778, %v3777
      %v4258 = vpack.c.b16 %v3780, %v3779
      %v4259 = vpack.c.b16 %v3782, %v3781
      %v4260 = vpack.c.b16 %v3784, %v3783
      %v4261 = vpack.c.b16 %v3786, %v3785
      %v4262 = vpack.c.b16 %v3788, %v3787
      %v4263 = vpack.c.b16 %v3790, %v3789
      %v4264 = vpack.c.b16 %v3792, %v3791
      %v4265 = vpack.c.b16 %v3794, %v3793
      %v4266 = vpack.c.b16 %v3796, %v3795
      %v4267 = vpack.c.b16 %v3798, %v3797
      %v4268 = vpack.c.b16 %v3800, %v3799
      %v4269 = vpack.c.b16 %v3802, %v3801
      %v4270 = vpack.c.b16 %v3804, %v3803
      %v4271 = vpack.c.b16 %v3806, %v3805
      %v4272 = vpack.c.b16 %v3808, %v3807
      %v4273 = vpack.c.b16 %v3810, %v3809
      %v4274 = vpack.c.b16 %v3812, %v3811
      %v4275 = vpack.c.b16 %v3814, %v3813
      %v4276 = vpack.c.b16 %v3816, %v3815
      %v4277 = vpack.c.b16 %v3818, %v3817
      %v4278 = vpack.c.b16 %v3820, %v3819
      %v4279 = vpack.c.b16 %v3822, %v3821
      %v4280 = vpack.c.b16 %v3824, %v3823
      %v4281 = vpack.c.b16 %v3826, %v3825
      %v4282 = vpack.c.b16 %v3828, %v3827
      %v4283 = vpack.c.b16 %v3830, %v3829
      %v4284 = vpack.c.b16 %v3832, %v3831
      %v4285 = vpack.c.b16 %v3834, %v3833
      %v4286 = vpack.c.b16 %v3836, %v3835
      %v4287 = vpack.c.b16 %v3838, %v3837
      %v4288 = vpack.c.b16 %v3840, %v3839
      %v4289 = vpack.c.b16 %v3842, %v3841
      %v4290 = vpack.c.b16 %v3844, %v3843
      %v4291 = vpack.c.b16 %v3846, %v3845
      %v4292 = vpack.c.b16 %v3848, %v3847
      %v4293 = vpack.c.b16 %v3850, %v3849
      %v4294 = vpack.c.b16 %v3852, %v3851
      %v4295 = vpack.c.b16 %v3854, %v3853
      %v4296 = vpack.c.b16 %v3856, %v3855
      %v4297 = vpack.c.b16 %v3858, %v3857
      %v4298 = vpack.c.b16 %v3860, %v3859
      %v4299 = vpack.c.b16 %v3862, %v3861
      %v4300 = vpack.c.b16 %v3864, %v3863
      %v4301 = vpack.c.b16 %v3866, %v3865
      %v4302 = vpack.c.b16 %v3868, %v3867
      %v4303 = vpack.c.b16 %v3870, %v3869
      %v4304 = vpack.c.b16 %v3872, %v3871
      %v4305 = vpack.c.b16 %v3874, %v3873
      %v4306 = vpack.c.b16 %v3876, %v3875
      %v4307 = vpack.c.b16 %v3878, %v3877
      %v4308 = vpack.c.b16 %v3880, %v3879
      %v4309 = vpack.c.b16 %v3882, %v3881
      %v4310 = vpack.c.b16 %v3884, %v3883
      %v4311 = vpack.c.b16 %v3886, %v3885
      %v4312 = vpack.c.b16 %v3888, %v3887
      %v4313 = vpack.c.b16 %v3890, %v3889
      %v4314 = vpack.c.b16 %v3892, %v3891
      %v4315 = vpack.c.b16 %v3894, %v3893
      %v4316 = vpack.c.b16 %v3896, %v3895
      %v4317 = vpack.c.b16 %v3898, %v3897
      %v4318 = vpack.c.b16 %v3900, %v3899
      %v4319 = vpack.c.b16 %v3902, %v3901
      %v4320 = vpack.c.b16 %v3904, %v3903
      %v4321 = vpack.c.b16 %v3906, %v3905
      %v4322 = vpack.c.b16 %v3908, %v3907
      %v4323 = vpack.c.b16 %v3910, %v3909
      %v4324 = vpack.c.b16 %v3912, %v3911
      %v4325 = vpack.c.b16 %v3914, %v3913
      %v4326 = vpack.c.b16 %v3916, %v3915
      %v4327 = vpack.c.b16 %v3918, %v3917
      %v4328 = vpack.c.b16 %v3920, %v3919
      %v4329 = vpack.c.b16 %v3922, %v3921
      %v4330 = vpack.c.b16 %v3924, %v3923
      %v4331 = vpack.c.b16 %v3926, %v3925
      %v4332 = vpack.c.b16 %v3928, %v3927
      %v4333 = vpack.c.b16 %v3930, %v3929
      %v4334 = vpack.c.b16 %v3932, %v3931
      %v4335 = vpack.c.b16 %v3934, %v3933
      %v4336 = vpack.c.b16 %v3936, %v3935
      %v4337 = vpack.c.b16 %v3938, %v3937
      %v4338 = vpack.c.b16 %v3940, %v3939
      %v4339 = vpack.c.b16 %v3942, %v3941
      %v4340 = vpack.c.b16 %v3944, %v3943
      %v4341 = vpack.c.b16 %v3946, %v3945
      %v4342 = vpack.c.b16 %v3948, %v3947
      %v4343 = vpack.c.b16 %v3950, %v3949
      %v4344 = vpack.c.b16 %v3952, %v3951
      %v4345 = vpack.c.b16 %v3954, %v3953
      %v4346 = vpack.c.b16 %v3956, %v3955
      %v4347 = vpack.c.b16 %v3958, %v3957
      %v4348 = vpack.c.b16 %v3960, %v3959
      %v4349 = vpack.c.b16 %v3962, %v3961
      %v4350 = vpack.c.b16 %v3964, %v3963
      %v4351 = vpack.c.b16 %v3966, %v3965
      %v4352 = vpack.c.b16 %v3968, %v3967
      %v4353 = vpack.c.b16 %v3970, %v3969
      %v4354 = vpack.c.b16 %v3972, %v3971
      %v4355 = vpack.c.b16 %v3974, %v3973
      %v4356 = vpack.c.b16 %v3976, %v3975
      %v4357 = vpack.c.b16 %v3978, %v3977
      %v4358 = vpack.c.b16 %v3980, %v3979
      %v4359 = vpack.c.b16 %v3982, %v3981
      %v4360 = vpack.c.b16 %v3984, %v3983
      %v4361 = vpack.c.b16 %v3986, %v3985
      %v4362 = vpack.c.b16 %v3988, %v3987
      %v4363 = vpack.c.b16 %v3990, %v3989
      %v4364 = vpack.c.b16 %v3992, %v3991
      %v4365 = vpack.c.b16 %v3994, %v3993
      %v4366 = vpack.c.b16 %v3996, %v3995
      %v4367 = vpack.c.b16 %v3998, %v3997
      %v4368 = vpack.c.b16 %v4000, %v3999
      %v4369 = vpack.c.b16 %v4002, %v4001
      %v4370 = vpack.c.b16 %v4004, %v4003
      %v4371 = vpack.c.b16 %v4006, %v4005
      %v4372 = vpack.c.b16 %v4008, %v4007
      %v4373 = vpack.c.b16 %v4010, %v4009
      %v4374 = vpack.c.b16 %v4012, %v4011
      %v4375 = vpack.c.b16 %v4014, %v4013
      %v4376 = vpack.c.b16 %v4016, %v4015
      %v4377 = vpack.c.b16 %v4018, %v4017
      %v4378 = vpack.c.b16 %v4020, %v4019
      %v4379 = vpack.c.b16 %v4022, %v4021
      %v4380 = vpack.c.b16 %v4024, %v4023
      %v4381 = vpack.c.b16 %v4026, %v4025
      %v4382 = vpack.c.b16 %v4028, %v4027
      %v4383 = vpack.c.b16 %v4030, %v4029
      %v4384 = vpack.c.b16 %v4032, %v4031
      %v4385 = vpack.c.b16 %v4034, %v4033
      %v4386 = vpack.c.b16 %v4036, %v4035
      %v4387 = vpack.c.b16 %v4038, %v4037
      %v4388 = vpack.c.b16 %v4040, %v4039
      %v4389 = vpack.c.b16 %v4042, %v4041
      %v4390 = vpack.c.b16 %v4044, %v4043
      %v4391 = vpack.c.b16 %v4046, %v4045
      %v4392 = vpack.c.b16 %v4048, %v4047
      %v4393 = vpack.c.b16 %v4050, %v4049
      %v4394 = vpack.c.b16 %v4052, %v4051
      %v4395 = vpack.c.b16 %v4054, %v4053
      %v4396 = vpack.c.b16 %v4056, %v4055
      %v4397 = vpack.c.b16 %v4058, %v4057
      %v4398 = vpack.c.b16 %v4060, %v4059
      %v4399 = vpack.c.b16 %v4062, %v4061
      %v4400 = vpack.c.b16 %v4064, %v4063
      %v4401 = vpack.c.b16 %v4066, %v4065
      %v4402 = vpack.c.b16 %v4068, %v4067
      %v4403 = vpack.c.b16 %v4070, %v4069
      %v4404 = vpack.c.b16 %v4072, %v4071
      %v4405 = vpack.c.b16 %v4074, %v4073
      %v4406 = vpack.c.b16 %v4076, %v4075
      %v4407 = vpack.c.b16 %v4078, %v4077
      %v4408 = vpack.c.b16 %v4080, %v4079
      %v4409 = vpack.c.b16 %v4082, %v4081
      %v4410 = vpack.c.b16 %v4084, %v4083
      %v4411 = vpack.c.b16 %v4086, %v4085
      %v4412 = vpack.c.b16 %v4088, %v4087
      %v4413 = vpack.c.b16 %v4090, %v4089
      %v4414 = vpack.c.b16 %v4092, %v4091
      %v4415 = vpack.c.b16 %v4094, %v4093
      %v4416 = vpack.c.b16 %v4096, %v4095
      %v4417 = vpack.c.b16 %v4098, %v4097
      %v4418 = vpack.c.b16 %v4100, %v4099
      %v4419 = vpack.c.b16 %v4102, %v4101
      %v4420 = vpack.c.b16 %v4104, %v4103
      %v4421 = vpack.c.b16 %v4106, %v4105
      %v4422 = vpack.c.b16 %v4108, %v4107
      %v4423 = vpack.c.b16 %v4110, %v4109
      %v4424 = vpack.c.b16 %v4112, %v4111
      %v4425 = vpack.c.b16 %v4114, %v4113
      %v4426 = vpack.c.b16 %v4116, %v4115
      %v4427 = vpack.c.b16 %v4118, %v4117
      %v4428 = vpack.c.b16 %v4120, %v4119
      %v4429 = vpack.c.b16 %v4122, %v4121
      %v4430 = vpack.c.b16 %v4124, %v4123
      %v4431 = vpack.c.b16 %v4126, %v4125
      %v4432 = vpack.c.b16 %v4128, %v4127
      %v4433 = vpack.c.b16 %v4130, %v4129
      %v4434 = vpack.c.b16 %v4132, %v4131
      %v4435 = vpack.c.b16 %v4134, %v4133
      %v4436 = vpack.c.b16 %v4136, %v4135
      %v4437 = vpack.c.b16 %v4138, %v4137
      %v4438 = vpack.c.b16 %v4140, %v4139
      %v4439 = vpack.c.b16 %v4142, %v4141
      %v4440 = vpack.c.b16 %v4144, %v4143
      %v4441 = vpack.c.b16 %v4146, %v4145
      %v4442 = vpack.c.b16 %v4148, %v4147
      %v4443 = vpack.c.b16 %v4150, %v4149
      %v4444 = vpack.c.b16 %v4152, %v4151
      %v4445 = vpack.c.b16 %v4154, %v4153
      %v4446 = vpack.c.b16 %v4156, %v4155
      %v4447 = vpack.c.b16 %v4158, %v4157
      %v4448 = vpack.c.b16 %v4160, %v4159
      %v4449 = vpack.c.b16 %v4162, %v4161
      %v4450 = vpack.c.b16 %v4164, %v4163
      %v4451 = vpack.c.b16 %v4166, %v4165
      %v4452 = vpack.c.b16 %v4168, %v4167
      %v4453 = vpack.c.b16 %v4170, %v4169
      %v4454 = vpack.c.b16 %v4172, %v4171
      %v4455 = vpack.c.b16 %v4174, %v4173
      %v4456 = vpack.c.b16 %v4176, %v4175
      %v4457 = vpack.c.b16 %v4178, %v4177
      %v4458 = vpack.c.b16 %v4180, %v4179
      %v4459 = vpack.c.b16 %v4182, %v4181
      %v4460 = vpack.c.b16 %v4184, %v4183
      %v4461 = vpack.c.b16 %v4186, %v4185
      %v4462 = vpack.c.b16 %v4188, %v4187
      %v4463 = vpack.c.b16 %v4190, %v4189
      %v4464 = vpack.c.b16 %v4192, %v4191
      %v4465 = vpack.c.b16 %v4194, %v4193
      %v4466 = vpack.c.b16 %v4196, %v4195
      %v4467 = vpack.c.b16 %v4198, %v4197
      %v4468 = vpack.c.b16 %v4200, %v4199
      %v4469 = vpack.c.b16 %v4202, %v4201
      %v4470 = vpack.c.b16 %v4204, %v4203
      %v4471 = vpack.c.b16 %v4206, %v4205
      %v4472 = vpack.c.b16 %v4208, %v4207
      %v4473 = vpack.c.b16 %v4210, %v4209
      %v4474 = vpack.c.b16 %v4212, %v4211
      %v4475 = vpack.c.b16 %v4214, %v4213
      %v4476 = vpack.c.b16 %v4216, %v4215
      %v4477 = vpack.c.b16 %v4218, %v4217
      %v4478 = vpack.c.b16 %v4220, %v4219
      %v4479 = vpack.c.b16 %v4222, %v4221
      %v4480 = vpack.c.b16 %v4224, %v4223
      %4737 = vmatpush.bf16.msra.mxu0 %v4232
      %4738 = vmatpush.bf16.msra.mxu0 %v4231
      %4739 = vmatpush.bf16.msra.mxu0 %v4230
      %4740 = vmatpush.bf16.msra.mxu0 %v4229
      %4741 = vmatpush.bf16.msra.mxu0 %v4228
      %4742 = vmatpush.bf16.msra.mxu0 %v4227
      %4743 = vmatpush.bf16.msra.mxu0 %v4226
      %4744 = vmatpush.bf16.msra.mxu0 %v4225
      %4745 = vmatmul.bf16.gmra.mxu0 %v2618
      %v4746 = vpop.f32.mrf.mxu0
      %v4747 = vadd.f32 %v3200, %v4746
      %v4748 = vpop.f32.mrf.mxu0
      %4749 = vdwg.mxu0
      %4750 = vmatpush.bf16.msra.mxu0 %v4240
      %4751 = vmatpush.bf16.msra.mxu0 %v4239
      %4752 = vmatpush.bf16.msra.mxu0 %v4238
      %4753 = vmatpush.bf16.msra.mxu0 %v4237
      %4754 = vmatpush.bf16.msra.mxu0 %v4236
      %4755 = vmatpush.bf16.msra.mxu0 %v4235
      %4756 = vmatpush.bf16.msra.mxu0 %v4234
      %4757 = vmatpush.bf16.msra.mxu0 %v4233
      %4758 = vmatmul.bf16.gmra.mxu0 %v2619
      %v4759 = vpop.f32.mrf.mxu0
      %v4760 = vadd.f32 %v4747, %v4759
      %v4761 = vpop.f32.mrf.mxu0
      %4762 = vdwg.mxu0
      %4763 = vmatpush.bf16.msra.mxu0 %v4248
      %4764 = vmatpush.bf16.msra.mxu0 %v4247
      %4765 = vmatpush.bf16.msra.mxu0 %v4246
      %4766 = vmatpush.bf16.msra.mxu0 %v4245
      %4767 = vmatpush.bf16.msra.mxu0 %v4244
      %4768 = vmatpush.bf16.msra.mxu0 %v4243
      %4769 = vmatpush.bf16.msra.mxu0 %v4242
      %4770 = vmatpush.bf16.msra.mxu0 %v4241
      %4771 = vmatmul.bf16.gmra.mxu0 %v2620
      %v4772 = vpop.f32.mrf.mxu0
      %v4773 = vadd.f32 %v4760, %v4772
      %v4774 = vpop.f32.mrf.mxu0
      %4775 = vdwg.mxu0
      %4776 = vmatpush.bf16.msra.mxu0 %v4256
      %4777 = vmatpush.bf16.msra.mxu0 %v4255
      %4778 = vmatpush.bf16.msra.mxu0 %v4254
      %4779 = vmatpush.bf16.msra.mxu0 %v4253
      %4780 = vmatpush.bf16.msra.mxu0 %v4252
      %4781 = vmatpush.bf16.msra.mxu0 %v4251
      %4782 = vmatpush.bf16.msra.mxu0 %v4250
      %4783 = vmatpush.bf16.msra.mxu0 %v4249
      %4784 = vmatmul.bf16.gmra.mxu0 %v2621
      %v4785 = vpop.f32.mrf.mxu0
      %v4786 = vadd.f32 %v4773, %v4785
      %v4787 = vpop.f32.mrf.mxu0
      %4788 = vdwg.mxu0
      %4789 = vmatpush.bf16.msra.mxu0 %v4264
      %4790 = vmatpush.bf16.msra.mxu0 %v4263
      %4791 = vmatpush.bf16.msra.mxu0 %v4262
      %4792 = vmatpush.bf16.msra.mxu0 %v4261
      %4793 = vmatpush.bf16.msra.mxu0 %v4260
      %4794 = vmatpush.bf16.msra.mxu0 %v4259
      %4795 = vmatpush.bf16.msra.mxu0 %v4258
      %4796 = vmatpush.bf16.msra.mxu0 %v4257
      %4797 = vmatmul.bf16.gmra.mxu0 %v2626
      %v4798 = vpop.f32.mrf.mxu0
      %v4799 = vadd.f32 %v4786, %v4798
      %v4800 = vpop.f32.mrf.mxu0
      %4801 = vdwg.mxu0
      %4802 = vmatpush.bf16.msra.mxu0 %v4272
      %4803 = vmatpush.bf16.msra.mxu0 %v4271
      %4804 = vmatpush.bf16.msra.mxu0 %v4270
      %4805 = vmatpush.bf16.msra.mxu0 %v4269
      %4806 = vmatpush.bf16.msra.mxu0 %v4268
      %4807 = vmatpush.bf16.msra.mxu0 %v4267
      %4808 = vmatpush.bf16.msra.mxu0 %v4266
      %4809 = vmatpush.bf16.msra.mxu0 %v4265
      %4810 = vmatmul.bf16.gmra.mxu0 %v2627
      %v4811 = vpop.f32.mrf.mxu0
      %v4812 = vadd.f32 %v4799, %v4811
      %v4813 = vpop.f32.mrf.mxu0
      %4814 = vdwg.mxu0
      %4815 = vmatpush.bf16.msra.mxu0 %v4280
      %4816 = vmatpush.bf16.msra.mxu0 %v4279
      %4817 = vmatpush.bf16.msra.mxu0 %v4278
      %4818 = vmatpush.bf16.msra.mxu0 %v4277
      %4819 = vmatpush.bf16.msra.mxu0 %v4276
      %4820 = vmatpush.bf16.msra.mxu0 %v4275
      %4821 = vmatpush.bf16.msra.mxu0 %v4274
      %4822 = vmatpush.bf16.msra.mxu0 %v4273
      %4823 = vmatmul.bf16.gmra.mxu0 %v2628
      %v4824 = vpop.f32.mrf.mxu0
      %v4825 = vadd.f32 %v4812, %v4824
      %v4826 = vpop.f32.mrf.mxu0
      %4827 = vdwg.mxu0
      %4828 = vmatpush.bf16.msra.mxu0 %v4288
      %4829 = vmatpush.bf16.msra.mxu0 %v4287
      %4830 = vmatpush.bf16.msra.mxu0 %v4286
      %4831 = vmatpush.bf16.msra.mxu0 %v4285
      %4832 = vmatpush.bf16.msra.mxu0 %v4284
      %4833 = vmatpush.bf16.msra.mxu0 %v4283
      %4834 = vmatpush.bf16.msra.mxu0 %v4282
      %4835 = vmatpush.bf16.msra.mxu0 %v4281
      %4836 = vmatmul.bf16.gmra.mxu0 %v2629
      %v4837 = vpop.f32.mrf.mxu0
      %v4838 = vadd.f32 %v4825, %v4837
      %v4839 = vpop.f32.mrf.mxu0
      %4840 = vdwg.mxu0
      %4841 = vmatpush.bf16.msra.mxu0 %v4296
      %4842 = vmatpush.bf16.msra.mxu0 %v4295
      %4843 = vmatpush.bf16.msra.mxu0 %v4294
      %4844 = vmatpush.bf16.msra.mxu0 %v4293
      %4845 = vmatpush.bf16.msra.mxu0 %v4292
      %4846 = vmatpush.bf16.msra.mxu0 %v4291
      %4847 = vmatpush.bf16.msra.mxu0 %v4290
      %4848 = vmatpush.bf16.msra.mxu0 %v4289
      %4849 = vmatmul.bf16.gmra.mxu0 %v2634
      %v4850 = vpop.f32.mrf.mxu0
      %v4851 = vadd.f32 %v4838, %v4850
      %v4852 = vpop.f32.mrf.mxu0
      %4853 = vdwg.mxu0
      %4854 = vmatpush.bf16.msra.mxu0 %v4304
      %4855 = vmatpush.bf16.msra.mxu0 %v4303
      %4856 = vmatpush.bf16.msra.mxu0 %v4302
      %4857 = vmatpush.bf16.msra.mxu0 %v4301
      %4858 = vmatpush.bf16.msra.mxu0 %v4300
      %4859 = vmatpush.bf16.msra.mxu0 %v4299
      %4860 = vmatpush.bf16.msra.mxu0 %v4298
      %4861 = vmatpush.bf16.msra.mxu0 %v4297
      %4862 = vmatmul.bf16.gmra.mxu0 %v2635
      %v4863 = vpop.f32.mrf.mxu0
      %v4864 = vadd.f32 %v4851, %v4863
      %v4865 = vpop.f32.mrf.mxu0
      %4866 = vdwg.mxu0
      %4867 = vmatpush.bf16.msra.mxu0 %v4312
      %4868 = vmatpush.bf16.msra.mxu0 %v4311
      %4869 = vmatpush.bf16.msra.mxu0 %v4310
      %4870 = vmatpush.bf16.msra.mxu0 %v4309
      %4871 = vmatpush.bf16.msra.mxu0 %v4308
      %4872 = vmatpush.bf16.msra.mxu0 %v4307
      %4873 = vmatpush.bf16.msra.mxu0 %v4306
      %4874 = vmatpush.bf16.msra.mxu0 %v4305
      %4875 = vmatmul.bf16.gmra.mxu0 %v2636
      %v4876 = vpop.f32.mrf.mxu0
      %v4877 = vadd.f32 %v4864, %v4876
      %v4878 = vpop.f32.mrf.mxu0
      %4879 = vdwg.mxu0
      %4880 = vmatpush.bf16.msra.mxu0 %v4320
      %4881 = vmatpush.bf16.msra.mxu0 %v4319
      %4882 = vmatpush.bf16.msra.mxu0 %v4318
      %4883 = vmatpush.bf16.msra.mxu0 %v4317
      %4884 = vmatpush.bf16.msra.mxu0 %v4316
      %4885 = vmatpush.bf16.msra.mxu0 %v4315
      %4886 = vmatpush.bf16.msra.mxu0 %v4314
      %4887 = vmatpush.bf16.msra.mxu0 %v4313
      %4888 = vmatmul.bf16.gmra.mxu0 %v2637
      %v4889 = vpop.f32.mrf.mxu0
      %v4890 = vadd.f32 %v4877, %v4889
      %v4891 = vpop.f32.mrf.mxu0
      %4892 = vdwg.mxu0
      %4893 = vmatpush.bf16.msra.mxu0 %v4328
      %4894 = vmatpush.bf16.msra.mxu0 %v4327
      %4895 = vmatpush.bf16.msra.mxu0 %v4326
      %4896 = vmatpush.bf16.msra.mxu0 %v4325
      %4897 = vmatpush.bf16.msra.mxu0 %v4324
      %4898 = vmatpush.bf16.msra.mxu0 %v4323
      %4899 = vmatpush.bf16.msra.mxu0 %v4322
      %4900 = vmatpush.bf16.msra.mxu0 %v4321
      %4901 = vmatmul.bf16.gmra.mxu0 %v2642
      %v4902 = vpop.f32.mrf.mxu0
      %v4903 = vadd.f32 %v4890, %v4902
      %v4904 = vpop.f32.mrf.mxu0
      %4905 = vdwg.mxu0
      %4906 = vmatpush.bf16.msra.mxu0 %v4336
      %4907 = vmatpush.bf16.msra.mxu0 %v4335
      %4908 = vmatpush.bf16.msra.mxu0 %v4334
      %4909 = vmatpush.bf16.msra.mxu0 %v4333
      %4910 = vmatpush.bf16.msra.mxu0 %v4332
      %4911 = vmatpush.bf16.msra.mxu0 %v4331
      %4912 = vmatpush.bf16.msra.mxu0 %v4330
      %4913 = vmatpush.bf16.msra.mxu0 %v4329
      %4914 = vmatmul.bf16.gmra.mxu0 %v2643
      %v4915 = vpop.f32.mrf.mxu0
      %v4916 = vadd.f32 %v4903, %v4915
      %v4917 = vpop.f32.mrf.mxu0
      %4918 = vdwg.mxu0
      %4919 = vmatpush.bf16.msra.mxu0 %v4344
      %4920 = vmatpush.bf16.msra.mxu0 %v4343
      %4921 = vmatpush.bf16.msra.mxu0 %v4342
      %4922 = vmatpush.bf16.msra.mxu0 %v4341
      %4923 = vmatpush.bf16.msra.mxu0 %v4340
      %4924 = vmatpush.bf16.msra.mxu0 %v4339
      %4925 = vmatpush.bf16.msra.mxu0 %v4338
      %4926 = vmatpush.bf16.msra.mxu0 %v4337
      %4927 = vmatmul.bf16.gmra.mxu0 %v2644
      %v4928 = vpop.f32.mrf.mxu0
      %v4929 = vadd.f32 %v4916, %v4928
      %v4930 = vpop.f32.mrf.mxu0
      %4931 = vdwg.mxu0
      %4932 = vmatpush.bf16.msra.mxu0 %v4352
      %4933 = vmatpush.bf16.msra.mxu0 %v4351
      %4934 = vmatpush.bf16.msra.mxu0 %v4350
      %4935 = vmatpush.bf16.msra.mxu0 %v4349
      %4936 = vmatpush.bf16.msra.mxu0 %v4348
      %4937 = vmatpush.bf16.msra.mxu0 %v4347
      %4938 = vmatpush.bf16.msra.mxu0 %v4346
      %4939 = vmatpush.bf16.msra.mxu0 %v4345
      %4940 = vmatmul.bf16.gmra.mxu0 %v2645
      %v4941 = vpop.f32.mrf.mxu0
      %v4942 = vadd.f32 %v4929, %v4941
      %v4943 = vpop.f32.mrf.mxu0
      %4944 = vdwg.mxu0
      %4945 = vmatpush.bf16.msra.mxu0 %v4360
      %4946 = vmatpush.bf16.msra.mxu0 %v4359
      %4947 = vmatpush.bf16.msra.mxu0 %v4358
      %4948 = vmatpush.bf16.msra.mxu0 %v4357
      %4949 = vmatpush.bf16.msra.mxu0 %v4356
      %4950 = vmatpush.bf16.msra.mxu0 %v4355
      %4951 = vmatpush.bf16.msra.mxu0 %v4354
      %4952 = vmatpush.bf16.msra.mxu0 %v4353
      %4953 = vmatmul.bf16.gmra.mxu0 %v2656
      %v4954 = vpop.f32.mrf.mxu0
      %v4955 = vadd.f32 %v4942, %v4954
      %v4956 = vpop.f32.mrf.mxu0
      %4957 = vdwg.mxu0
      %4958 = vmatpush.bf16.msra.mxu0 %v4368
      %4959 = vmatpush.bf16.msra.mxu0 %v4367
      %4960 = vmatpush.bf16.msra.mxu0 %v4366
      %4961 = vmatpush.bf16.msra.mxu0 %v4365
      %4962 = vmatpush.bf16.msra.mxu0 %v4364
      %4963 = vmatpush.bf16.msra.mxu0 %v4363
      %4964 = vmatpush.bf16.msra.mxu0 %v4362
      %4965 = vmatpush.bf16.msra.mxu0 %v4361
      %4966 = vmatmul.bf16.gmra.mxu0 %v2657
      %v4967 = vpop.f32.mrf.mxu0
      %v4968 = vadd.f32 %v4955, %v4967
      %v4969 = vpop.f32.mrf.mxu0
      %4970 = vdwg.mxu0
      %4971 = vmatpush.bf16.msra.mxu0 %v4376
      %4972 = vmatpush.bf16.msra.mxu0 %v4375
      %4973 = vmatpush.bf16.msra.mxu0 %v4374
      %4974 = vmatpush.bf16.msra.mxu0 %v4373
      %4975 = vmatpush.bf16.msra.mxu0 %v4372
      %4976 = vmatpush.bf16.msra.mxu0 %v4371
      %4977 = vmatpush.bf16.msra.mxu0 %v4370
      %4978 = vmatpush.bf16.msra.mxu0 %v4369
      %4979 = vmatmul.bf16.gmra.mxu0 %v2658
      %v4980 = vpop.f32.mrf.mxu0
      %v4981 = vadd.f32 %v4968, %v4980
      %v4982 = vpop.f32.mrf.mxu0
      %4983 = vdwg.mxu0
      %4984 = vmatpush.bf16.msra.mxu0 %v4384
      %4985 = vmatpush.bf16.msra.mxu0 %v4383
      %4986 = vmatpush.bf16.msra.mxu0 %v4382
      %4987 = vmatpush.bf16.msra.mxu0 %v4381
      %4988 = vmatpush.bf16.msra.mxu0 %v4380
      %4989 = vmatpush.bf16.msra.mxu0 %v4379
      %4990 = vmatpush.bf16.msra.mxu0 %v4378
      %4991 = vmatpush.bf16.msra.mxu0 %v4377
      %4992 = vmatmul.bf16.gmra.mxu0 %v2659
      %v4993 = vpop.f32.mrf.mxu0
      %v4994 = vadd.f32 %v4981, %v4993
      %v4995 = vpop.f32.mrf.mxu0
      %4996 = vdwg.mxu0
      %4997 = vmatpush.bf16.msra.mxu0 %v4392
      %4998 = vmatpush.bf16.msra.mxu0 %v4391
      %4999 = vmatpush.bf16.msra.mxu0 %v4390
      %5000 = vmatpush.bf16.msra.mxu0 %v4389
      %5001 = vmatpush.bf16.msra.mxu0 %v4388
      %5002 = vmatpush.bf16.msra.mxu0 %v4387
      %5003 = vmatpush.bf16.msra.mxu0 %v4386
      %5004 = vmatpush.bf16.msra.mxu0 %v4385
      %5005 = vmatmul.bf16.gmra.mxu0 %v2664
      %v5006 = vpop.f32.mrf.mxu0
      %v5007 = vadd.f32 %v4994, %v5006
      %v5008 = vpop.f32.mrf.mxu0
      %5009 = vdwg.mxu0
      %5010 = vmatpush.bf16.msra.mxu0 %v4400
      %5011 = vmatpush.bf16.msra.mxu0 %v4399
      %5012 = vmatpush.bf16.msra.mxu0 %v4398
      %5013 = vmatpush.bf16.msra.mxu0 %v4397
      %5014 = vmatpush.bf16.msra.mxu0 %v4396
      %5015 = vmatpush.bf16.msra.mxu0 %v4395
      %5016 = vmatpush.bf16.msra.mxu0 %v4394
      %5017 = vmatpush.bf16.msra.mxu0 %v4393
      %5018 = vmatmul.bf16.gmra.mxu0 %v2665
      %v5019 = vpop.f32.mrf.mxu0
      %v5020 = vadd.f32 %v5007, %v5019
      %v5021 = vpop.f32.mrf.mxu0
      %5022 = vdwg.mxu0
      %5023 = vmatpush.bf16.msra.mxu0 %v4408
      %5024 = vmatpush.bf16.msra.mxu0 %v4407
      %5025 = vmatpush.bf16.msra.mxu0 %v4406
      %5026 = vmatpush.bf16.msra.mxu0 %v4405
      %5027 = vmatpush.bf16.msra.mxu0 %v4404
      %5028 = vmatpush.bf16.msra.mxu0 %v4403
      %5029 = vmatpush.bf16.msra.mxu0 %v4402
      %5030 = vmatpush.bf16.msra.mxu0 %v4401
      %5031 = vmatmul.bf16.gmra.mxu0 %v2666
      %v5032 = vpop.f32.mrf.mxu0
      %v5033 = vadd.f32 %v5020, %v5032
      %v5034 = vpop.f32.mrf.mxu0
      %5035 = vdwg.mxu0
      %5036 = vmatpush.bf16.msra.mxu0 %v4416
      %5037 = vmatpush.bf16.msra.mxu0 %v4415
      %5038 = vmatpush.bf16.msra.mxu0 %v4414
      %5039 = vmatpush.bf16.msra.mxu0 %v4413
      %5040 = vmatpush.bf16.msra.mxu0 %v4412
      %5041 = vmatpush.bf16.msra.mxu0 %v4411
      %5042 = vmatpush.bf16.msra.mxu0 %v4410
      %5043 = vmatpush.bf16.msra.mxu0 %v4409
      %5044 = vmatmul.bf16.gmra.mxu0 %v2667
      %v5045 = vpop.f32.mrf.mxu0
      %v5046 = vadd.f32 %v5033, %v5045
      %v5047 = vpop.f32.mrf.mxu0
      %5048 = vdwg.mxu0
      %5049 = vmatpush.bf16.msra.mxu0 %v4424
      %5050 = vmatpush.bf16.msra.mxu0 %v4423
      %5051 = vmatpush.bf16.msra.mxu0 %v4422
      %5052 = vmatpush.bf16.msra.mxu0 %v4421
      %5053 = vmatpush.bf16.msra.mxu0 %v4420
      %5054 = vmatpush.bf16.msra.mxu0 %v4419
      %5055 = vmatpush.bf16.msra.mxu0 %v4418
      %5056 = vmatpush.bf16.msra.mxu0 %v4417
      %5057 = vmatmul.bf16.gmra.mxu0 %v2672
      %v5058 = vpop.f32.mrf.mxu0
      %v5059 = vadd.f32 %v5046, %v5058
      %v5060 = vpop.f32.mrf.mxu0
      %5061 = vdwg.mxu0
      %5062 = vmatpush.bf16.msra.mxu0 %v4432
      %5063 = vmatpush.bf16.msra.mxu0 %v4431
      %5064 = vmatpush.bf16.msra.mxu0 %v4430
      %5065 = vmatpush.bf16.msra.mxu0 %v4429
      %5066 = vmatpush.bf16.msra.mxu0 %v4428
      %5067 = vmatpush.bf16.msra.mxu0 %v4427
      %5068 = vmatpush.bf16.msra.mxu0 %v4426
      %5069 = vmatpush.bf16.msra.mxu0 %v4425
      %5070 = vmatmul.bf16.gmra.mxu0 %v2673
      %v5071 = vpop.f32.mrf.mxu0
      %v5072 = vadd.f32 %v5059, %v5071
      %v5073 = vpop.f32.mrf.mxu0
      %5074 = vdwg.mxu0
      %5075 = vmatpush.bf16.msra.mxu0 %v4440
      %5076 = vmatpush.bf16.msra.mxu0 %v4439
      %5077 = vmatpush.bf16.msra.mxu0 %v4438
      %5078 = vmatpush.bf16.msra.mxu0 %v4437
      %5079 = vmatpush.bf16.msra.mxu0 %v4436
      %5080 = vmatpush.bf16.msra.mxu0 %v4435
      %5081 = vmatpush.bf16.msra.mxu0 %v4434
      %5082 = vmatpush.bf16.msra.mxu0 %v4433
      %5083 = vmatmul.bf16.gmra.mxu0 %v2674
      %v5084 = vpop.f32.mrf.mxu0
      %v5085 = vadd.f32 %v5072, %v5084
      %v5086 = vpop.f32.mrf.mxu0
      %5087 = vdwg.mxu0
      %5088 = vmatpush.bf16.msra.mxu0 %v4448
      %5089 = vmatpush.bf16.msra.mxu0 %v4447
      %5090 = vmatpush.bf16.msra.mxu0 %v4446
      %5091 = vmatpush.bf16.msra.mxu0 %v4445
      %5092 = vmatpush.bf16.msra.mxu0 %v4444
      %5093 = vmatpush.bf16.msra.mxu0 %v4443
      %5094 = vmatpush.bf16.msra.mxu0 %v4442
      %5095 = vmatpush.bf16.msra.mxu0 %v4441
      %5096 = vmatmul.bf16.gmra.mxu0 %v2675
      %v5097 = vpop.f32.mrf.mxu0
      %v5098 = vadd.f32 %v5085, %v5097
      %v5099 = vpop.f32.mrf.mxu0
      %5100 = vdwg.mxu0
      %5101 = vmatpush.bf16.msra.mxu0 %v4456
      %5102 = vmatpush.bf16.msra.mxu0 %v4455
      %5103 = vmatpush.bf16.msra.mxu0 %v4454
      %5104 = vmatpush.bf16.msra.mxu0 %v4453
      %5105 = vmatpush.bf16.msra.mxu0 %v4452
      %5106 = vmatpush.bf16.msra.mxu0 %v4451
      %5107 = vmatpush.bf16.msra.mxu0 %v4450
      %5108 = vmatpush.bf16.msra.mxu0 %v4449
      %5109 = vmatmul.bf16.gmra.mxu0 %v2680
      %v5110 = vpop.f32.mrf.mxu0
      %v5111 = vadd.f32 %v5098, %v5110
      %v5112 = vpop.f32.mrf.mxu0
      %5113 = vdwg.mxu0
      %5114 = vmatpush.bf16.msra.mxu0 %v4464
      %5115 = vmatpush.bf16.msra.mxu0 %v4463
      %5116 = vmatpush.bf16.msra.mxu0 %v4462
      %5117 = vmatpush.bf16.msra.mxu0 %v4461
      %5118 = vmatpush.bf16.msra.mxu0 %v4460
      %5119 = vmatpush.bf16.msra.mxu0 %v4459
      %5120 = vmatpush.bf16.msra.mxu0 %v4458
      %5121 = vmatpush.bf16.msra.mxu0 %v4457
      %5122 = vmatmul.bf16.gmra.mxu0 %v2681
      %v5123 = vpop.f32.mrf.mxu0
      %v5124 = vadd.f32 %v5111, %v5123
      %v5125 = vpop.f32.mrf.mxu0
      %5126 = vdwg.mxu0
      %5127 = vmatpush.bf16.msra.mxu0 %v4472
      %5128 = vmatpush.bf16.msra.mxu0 %v4471
      %5129 = vmatpush.bf16.msra.mxu0 %v4470
      %5130 = vmatpush.bf16.msra.mxu0 %v4469
      %5131 = vmatpush.bf16.msra.mxu0 %v4468
      %5132 = vmatpush.bf16.msra.mxu0 %v4467
      %5133 = vmatpush.bf16.msra.mxu0 %v4466
      %5134 = vmatpush.bf16.msra.mxu0 %v4465
      %5135 = vmatmul.bf16.gmra.mxu0 %v2682
      %v5136 = vpop.f32.mrf.mxu0
      %v5137 = vadd.f32 %v5124, %v5136
      %v5138 = vpop.f32.mrf.mxu0
      %5139 = vdwg.mxu0
      %5140 = vmatpush.bf16.msra.mxu0 %v4480
      %5141 = vmatpush.bf16.msra.mxu0 %v4479
      %5142 = vmatpush.bf16.msra.mxu0 %v4478
      %5143 = vmatpush.bf16.msra.mxu0 %v4477
      %5144 = vmatpush.bf16.msra.mxu0 %v4476
      %5145 = vmatpush.bf16.msra.mxu0 %v4475
      %5146 = vmatpush.bf16.msra.mxu0 %v4474
      %5147 = vmatpush.bf16.msra.mxu0 %v4473
      %5148 = vmatmul.bf16.gmra.mxu0 %v2683
      %v5149 = vpop.f32.mrf.mxu0
      %v5150 = vadd.f32 %v5137, %v5149
      %v5151 = vpop.f32.mrf.mxu0
      %5152 = vdwg.mxu0
      %v5153 = vmax.f32 %v5150, 0.0
      %v5154 = vld [vmem:[%s7] sm:$0xff]
      %v5155 = vld [vmem:[%s7 + $0x8] sm:$0xff]
      %v5156 = vld [vmem:[%s7 + $0x10] sm:$0xff]
      %v5157 = vld [vmem:[%s7 + $0x18] sm:$0xff]
      %v5158 = vld [vmem:[%s7 + $0x20] sm:$0xff]
      %v5159 = vld [vmem:[%s7 + $0x28] sm:$0xff]
      %v5160 = vld [vmem:[%s7 + $0x30] sm:$0xff]
      %v5161 = vld [vmem:[%s7 + $0x38] sm:$0xff]
      %v5162 = vld [vmem:[%s8] sm:$0x1]
      %vm5163 = vcmask 523264
      %v5165 = vsel %vm5163, %v5153, 0
      %5167 = vmatpush.msra.mxu0 0.0
      %5168 = vmatpush.msra.mxu0 0.0
      %5169 = vmatpush.msra.mxu0 0.0
      %5170 = vmatpush.msra.mxu0 0.0
      %5171 = vmatpush.msra.mxu0 0.0
      %5172 = vmatpush.msra.mxu0 0.0
      %5173 = vmatpush.msra.mxu0 0.0
      %5174 = vmatpush.msra.mxu0 0.0
      %5175 = vmatpush.msra.mxu0 %v5161
      %5176 = vmatpush.msra.mxu0 %v5160
      %5177 = vmatpush.msra.mxu0 %v5159
      %5178 = vmatpush.msra.mxu0 %v5158
      %5179 = vmatpush.msra.mxu0 %v5157
      %5180 = vmatpush.msra.mxu0 %v5156
      %5181 = vmatpush.msra.mxu0 %v5155
      %5182 = vmatpush.msra.mxu0 %v5154
      %5183 = vmatmul.f32.gmra.mxu0 %v5165
      %v5184 = vpop.f32.mrf.mxu0
      %v5185 = vadd.f32 %v5162, %v5184
      %5186 = vdwg.mxu0
      %5187 = vst [vmem:[%s328] sm:$0x1] %v5185
      %p5188 = scmp.lt.s32.totalorder %s20, 1
      %s5189 = scalar_select %p5188, %s20, 1
      %s5190 = scalar_lea.vmem %s9, %s5189
      // Predicated region
      $region57: #{custom_model_forward.1} parent=55 // pred_check
        %p5191 = pneg %p232
      $region58: #{custom_model_forward.1} parent=55 // pred_check_branch
        %5193 = sbr.rel (%p5191) target = $region60
      $region59: #{custom_model_forward.1} parent=55 // pred_region
        _
      $region60: #{custom_model_forward.1} parent=55 // pred_fallthru
        _
    $region56: #{custom_model_forward.1} parent=5 // pred_fallthru
      _
    %p5194 = scmp.le.s32.totalorder 2, %s15
    // Predicated region
    $region61: #{custom_model_forward.1} parent=5 // pred_check
      %p5195 = pneg %p5194
    $region62: #{custom_model_forward.1} parent=5 // pred_check_branch
      %5197 = sbr.rel (%p5195) target = $region64
    $region63: #{custom_model_forward.1} parent=5 // pred_region
      %s5198 = ssub.s32 %s15, 2
      // Predicated region
      $region65: #{custom_model_forward.1} parent=63 // pred_check
        %p5199 = pneg %p238
      $region66: #{custom_model_forward.1} parent=63 // pred_check_branch
        %5201 = sbr.rel (%p5199) target = $region68
      $region67: #{custom_model_forward.1} parent=63 // pred_region
        %p5202 = scmp.lt.s32.totalorder %s21, 1
        %s5203 = scalar_select %p5202, %s21, 1
        %s5204 = scalar_lea.vmem %s9, %s5203
      $region68: #{custom_model_forward.1} parent=63 // pred_fallthru
        _
    $region64: #{custom_model_forward.1} parent=5 // pred_fallthru
      _
  $region6: #{custom_model_forward.1} parent=0 // loop_footer
    %s19 = sadd.s32 1, %s15
  $region7: #{custom_model_forward.1} parent=0 // loop_footer_branch
    %14 = sbr.rel target = $region3
  $region8: #{custom_model_forward.1} parent=0 // loop_exit
    _

</llo_original>
